<compile_context>
chip_gen: v5e
topology: v5e:2x2
jax: 0.10.0
libtpu: 0.0.40
codegen_flags: <defaults>
</compile_context>

<pallas_src>
import functools
import math

import jax
import jax.numpy as jnp
from jax.experimental import pallas as pl
from jax.experimental.pallas import tpu as pltpu

_BF16 = jnp.bfloat16
_EPS = 1e-5


def _round_up(v, m):
    return ((v + m - 1) // m) * m


# ------------------------------ in-kernel math -------------------------------

def _ln(x, g, b, eps):
    """Row-wise LayerNorm in f32. g, b are (1, D)."""
    mu = jnp.mean(x, axis=-1, keepdims=True)
    var = jnp.mean(jnp.square(x - mu), axis=-1, keepdims=True)
    return (x - mu) * jax.lax.rsqrt(var + eps) * g + b


def _erf(x):
    """Abramowitz & Stegun 7.1.26 erf approximation, |abs err| <= 1.5e-7."""
    a1, a2, a3, a4, a5 = (0.254829592, -0.284496736, 1.421413741,
                          -1.453152027, 1.061405429)
    p = 0.3275911
    sgn = jnp.where(x < 0.0, -1.0, 1.0)
    ax = jnp.abs(x)
    t = 1.0 / (1.0 + p * ax)
    poly = ((((a5 * t + a4) * t + a3) * t + a2) * t + a1) * t
    return sgn * (1.0 - poly * jnp.exp(-ax * ax))


def _gelu_exact(x):
    """Matches torch.nn.GELU() (erf form) to ~1e-7."""
    return 0.5 * x * (1.0 + _erf(x * 0.7071067811865476))


# --------------------------------- stem kernel -------------------------------
# embed -> (reg token + pos-embed insert) -> proj -> LayerNorm -> ReLU,
# all n*L_pad rows in a single grid step (batch folded into M).

def _stem_kernel(x_ref, we_ref, be_ref, add_ref, wp_ref, bp_ref, g_ref,
                 beta_ref, o_ref, tok_ref, *, n, l, L_pad, eps):
    # x_ref: (n*l, in_dim).  add_ref: (n*L_pad, E) holds pos_embedding[1..l] on
    # data rows, reg_token + pos_embedding[0] on each batch's reg row (index l),
    # zeros on pad rows.
    emb = jnp.dot(x_ref[...].astype(_BF16), we_ref[...],
                  preferred_element_type=jnp.float32) + be_ref[...]   # (n*l, E)
    tok_ref[...] = add_ref[...]
    for b in range(n):                       # static, 8-row aligned copies
        rd = b * L_pad
        rs = b * l
        tok_ref[rd:rd + l, :] = tok_ref[rd:rd + l, :] + emb[rs:rs + l, :]
    y = jnp.dot(tok_ref[...].astype(_BF16), wp_ref[...],
                preferred_element_type=jnp.float32) + bp_ref[...]     # (n*L_pad, dim)
    y = _ln(y, g_ref[...], beta_ref[...], eps)
    o_ref[...] = jnp.maximum(y, 0.0)


def stem(x_flat, we_bf, be, add_const, wp_bf, bp, g, beta, *, n, l, L_pad,
         eps=_EPS):
    E = we_bf.shape[1]
    dim = wp_bf.shape[1]
    vspec = lambda: pl.BlockSpec(memory_space=pltpu.MemorySpace.VMEM)
    return pl.pallas_call(
        functools.partial(_stem_kernel, n=n, l=l, L_pad=L_pad, eps=eps),
        in_specs=[vspec() for _ in range(8)],
        out_specs=vspec(),
        out_shape=jax.ShapeDtypeStruct((n * L_pad, dim), jnp.float32),
        scratch_shapes=[pltpu.VMEM((n * L_pad, E), jnp.float32)],
    )(x_flat, we_bf, be, add_const, wp_bf, bp, g, beta)


# ------------------------------ fused transformer ----------------------------
# grid=(batch_blocks, depth); h resident in out_ref across the depth axis.

def _transformer_kernel(h_ref, g1_ref, b1_ref, wqkv_ref, wo_ref, bo_ref,
                        g2_ref, b2_ref, w1_ref, bb1_ref, w2_ref, bb2_ref,
                        out_ref, attn_ref, *, n_blk, L_pad, n_valid, heads,
                        dim_head, scale, eps):
    @pl.when(pl.program_id(1) == 0)
    def _init():
        out_ref[...] = h_ref[...]

    inner = heads * dim_head
    h = out_ref[...]                                          # (M_blk, dim) f32

    # ---- PreNorm multi-head self-attention + residual -----------------------
    hn = _ln(h, g1_ref[...], b1_ref[...], eps)
    qkv = jnp.dot(hn.astype(_BF16), wqkv_ref[...],
                  preferred_element_type=jnp.float32)         # (M_blk, 3*inner)
    for b in range(n_blk):                                    # static loops
        r0 = b * L_pad
        for hd in range(heads):
            c0 = hd * dim_head
            q = qkv[r0:r0 + L_pad, c0:c0 + dim_head]
            k = qkv[r0:r0 + L_pad, inner + c0:inner + c0 + dim_head]
            v = qkv[r0:r0 + L_pad, 2 * inner + c0:2 * inner + c0 + dim_head]
            s = jax.lax.dot_general(q.astype(_BF16), k.astype(_BF16),
                                    (((1,), (1,)), ((), ())),
                                    preferred_element_type=jnp.float32) * scale
            col = jax.lax.broadcasted_iota(jnp.int32, s.shape, 1)
            s = jnp.where(col < n_valid, s, -1e30)            # mask padded keys
            s = s - jnp.max(s, axis=-1, keepdims=True)
            p = jnp.exp(s)
            p = p * pl.reciprocal(jnp.sum(p, axis=-1, keepdims=True), approx=True)
            attn_ref[r0:r0 + L_pad, c0:c0 + dim_head] = jnp.dot(
                p.astype(_BF16), v.astype(_BF16),
                preferred_element_type=jnp.float32)
    # one full-K out-projection over all rows / heads
    h1 = h + jnp.dot(attn_ref[...].astype(_BF16), wo_ref[...],
                     preferred_element_type=jnp.float32) + bo_ref[...]

    # ---- PreNorm feed-forward + residual -------------------------------------
    hn2 = _ln(h1, g2_ref[...], b2_ref[...], eps)
    f = jnp.dot(hn2.astype(_BF16), w1_ref[...],
                preferred_element_type=jnp.float32) + bb1_ref[...]
    f = _gelu_exact(f)
    h2 = h1 + jnp.dot(f.astype(_BF16), w2_ref[...],
                      preferred_element_type=jnp.float32) + bb2_ref[...]
    out_ref[...] = h2


def transformer(h, params, *, heads, dim_head, n, L_pad, n_valid,
                batch_blocks=1, eps=_EPS):
    M, dim = h.shape
    depth = params["w_qkv"].shape[0]
    inner = heads * dim_head
    mlp = params["w_ff1"].shape[2]
    assert M == n * L_pad and n % batch_blocks == 0
    n_blk = n // batch_blocks
    M_blk = n_blk * L_pad
    scale = dim_head ** -0.5

    hspec = pl.BlockSpec((M_blk, dim), lambda b, d: (b, 0))

    def lspec(*trailing):
        nd = len(trailing)
        return pl.BlockSpec((None,) + tuple(trailing),
                            lambda b, d, _nd=nd: (d,) + (0,) * _nd)

    # advisory cost estimate for the XLA scheduler
    per_layer_flops = (2 * M * dim * 3 * inner
                       + 4 * n * heads * L_pad * L_pad * dim_head
                       + 2 * M * inner * dim
                       + 4 * M * dim * mlp)
    per_layer_trans = n * heads * L_pad * L_pad + M * mlp
    weight_bytes = 2 * (params["w_qkv"].size + params["w_out"].size
                        + params["w_ff1"].size + params["w_ff2"].size)
    cost = pl.CostEstimate(flops=int(depth * per_layer_flops),
                           transcendentals=int(depth * per_layer_trans),
                           bytes_accessed=int(weight_bytes + 2 * M * dim * 4))

    return pl.pallas_call(
        functools.partial(_transformer_kernel, n_blk=n_blk, L_pad=L_pad,
                          n_valid=n_valid, heads=heads, dim_head=dim_head,
                          scale=scale, eps=eps),
        grid=(batch_blocks, depth),
        in_specs=[hspec,
                  lspec(1, dim), lspec(1, dim),
                  lspec(dim, 3 * inner),
                  lspec(inner, dim), lspec(1, dim),
                  lspec(1, dim), lspec(1, dim),
                  lspec(dim, mlp), lspec(1, mlp),
                  lspec(mlp, dim), lspec(1, dim)],
        out_specs=hspec,
        out_shape=jax.ShapeDtypeStruct((M, dim), jnp.float32),
        scratch_shapes=[pltpu.VMEM((M_blk, inner), jnp.float32)],
        input_output_aliases={0: 0},        # h buffer reused as the output
        compiler_params=pltpu.CompilerParams(
            dimension_semantics=("parallel", "arbitrary"),
            vmem_limit_bytes=32 * 1024 * 1024),
        cost_estimate=cost,
    )(h,
      params["ln1_g"], params["ln1_b"],
      params["w_qkv"], params["w_out"], params["b_out"],
      params["ln2_g"], params["ln2_b"],
      params["w_ff1"], params["b_ff1"],
      params["w_ff2"], params["b_ff2"])


# ---------------------------------- CLIP head --------------------------------

def _head_kernel(x_ref, p_ref, wp_ref, bp_ref, s_ref, o_ref):
    x = x_ref[...]                                             # (n, dim) f32
    xn = x * jax.lax.rsqrt(jnp.sum(x * x, axis=-1, keepdims=True))
    pf = jnp.dot(p_ref[...].astype(_BF16), wp_ref[...],
                 preferred_element_type=jnp.float32) + bp_ref[...]
    pn = pf * jax.lax.rsqrt(jnp.sum(pf * pf, axis=-1, keepdims=True))
    ls = jnp.exp(s_ref[...])                                   # (1, 1)
    o_ref[...] = ls * jax.lax.dot_general(
        xn, pn, (((1,), (1,)), ((), ())), preferred_element_type=jnp.float32)


def clip_head(cls, pmp, wp_bf, bp, logit_scale):
    n = cls.shape[0]
    m = pmp.shape[0]
    vspec = lambda: pl.BlockSpec(memory_space=pltpu.MemorySpace.VMEM)
    return pl.pallas_call(
        _head_kernel,
        in_specs=[vspec() for _ in range(5)],
        out_specs=vspec(),
        out_shape=jax.ShapeDtypeStruct((n, m), jnp.float32),
    )(cls, pmp, wp_bf, bp, logit_scale)


# ------------------------------ parameter setup -------------------------------

def init_params(key, *, in_length, in_dim, embed_dim, dim, depth, heads,
                dim_head, mlp_dim, n_prompts):
    inner = heads * dim_head
    ks = jax.random.split(key, 16)

    def rnd(k, shape, scale=0.05):
        return jax.random.normal(k, shape, jnp.float32) * scale

    def rnd_bf(k, shape, scale=0.05):          # matmul weights pre-cast ONCE
        return rnd(k, shape, scale).astype(_BF16)

    return {
        "pos_embedding": rnd(ks[0], (in_length + 1, embed_dim)),
        "reg_token": rnd(ks[1], (1, embed_dim)),
        "embed_w": rnd_bf(ks[2], (in_dim, embed_dim)),
        "embed_b": rnd(ks[3], (1, embed_dim)),
        "proj_w": rnd_bf(ks[4], (embed_dim, dim)),
        "proj_b": rnd(ks[5], (1, dim)),
        "ln_g": jnp.ones((1, dim), jnp.float32),    # self.bn = nn.LayerNorm(dim)
        "ln_b": jnp.zeros((1, dim), jnp.float32),
        "pmp_w": rnd_bf(ks[6], (512, dim)),
        "pmp_b": rnd(ks[7], (1, dim)),
        "logit_scale": jnp.full((1, 1), math.log(1.0 / 0.07), jnp.float32),
        "prompt_dict": jax.random.normal(ks[8], (n_prompts, 512), jnp.float32),
        # stacked transformer layer params (leading depth axis)
        "ln1_g": jnp.ones((depth, 1, dim), jnp.float32),
        "ln1_b": jnp.zeros((depth, 1, dim), jnp.float32),
        "w_qkv": rnd_bf(ks[9], (depth, dim, 3 * inner)),       # bias=False
        "w_out": rnd_bf(ks[10], (depth, inner, dim)),
        "b_out": rnd(ks[11], (depth, 1, dim)),
        "ln2_g": jnp.ones((depth, 1, dim), jnp.float32),
        "ln2_b": jnp.zeros((depth, 1, dim), jnp.float32),
        "w_ff1": rnd_bf(ks[12], (depth, dim, mlp_dim)),
        "b_ff1": rnd(ks[13], (depth, 1, mlp_dim)),
        "w_ff2": rnd_bf(ks[14], (depth, mlp_dim, dim)),
        "b_ff2": rnd(ks[15], (depth, 1, dim)),
    }


# -------------------------------- forward pass --------------------------------

def tst_clip_forward(params, x, pmp1, *, heads, dim_head, batch_blocks=1,
                     val=False):
    # eval semantics: dropout = identity; pool == 'reg'; mlp_head unused.
    n, l, _ = x.shape
    L_pad = _round_up(l + 1, 8)            # sublane-aligned sequence length
    E = params["pos_embedding"].shape[1]
    dim = params["proj_w"].shape[1]

    # Token layout per batch block of L_pad rows:
    #   rows [0, l) : data tokens  (carry pos_embedding[1..l])
    #   row  l      : reg token    (carries pos_embedding[0])
    #   rows (l, ..): zero padding (masked out of attention keys)
    # A permutation of the reference order; attention/LN/FF are permutation-
    # equivariant, so the reg-row output equals the reference row-0 output.
    x_flat = x.reshape(n * l, -1)
    pos = params["pos_embedding"][: l + 1]
    add_one = jnp.concatenate(
        [pos[1:], pos[:1] + params["reg_token"],
         jnp.zeros((L_pad - l - 1, E), jnp.float32)], axis=0)      # (L_pad, E)
    add_const = jnp.tile(add_one, (n, 1))                          # (n*L_pad, E)

    h = stem(x_flat, params["embed_w"], params["embed_b"], add_const,
             params["proj_w"], params["proj_b"], params["ln_g"],
             params["ln_b"], n=n, l=l, L_pad=L_pad)                # (n*L_pad, dim)

    h = transformer(h, params, heads=heads, dim_head=dim_head, n=n,
                    L_pad=L_pad, n_valid=l + 1, batch_blocks=batch_blocks)

    cls = h.reshape(n, L_pad, dim)[:, l, :]                        # pool == 'reg'

    logits_per_x = clip_head(cls, pmp1, params["pmp_w"], params["pmp_b"],
                             params["logit_scale"])
    logits_per_pmp1 = logits_per_x.T

    if val:
        logits_per_pred = clip_head(cls, params["prompt_dict"], params["pmp_w"],
                                    params["pmp_b"], params["logit_scale"])
        return logits_per_x, logits_per_pmp1, logits_per_pred
    return logits_per_x, logits_per_pmp1


# ------------------------------------ main ------------------------------------

if __name__ == "__main__":
    N = 2             # batch
    IN_LENGTH = 8     # sequence length (L = 9 with reg token -> padded to 16)
    IN_DIM = 16
    EMBED_DIM = 128
    DIM = 128
    DEPTH = 2
    HEADS = 2
    DIM_HEAD = 64     # module default -> inner = 128 (lane-dense)
    MLP_DIM = 256
    N_PROMPTS = 4
    # Set to 2 on v7x to shard the transformer across both TensorCores
    # (batch blocks are "parallel"); 1 maximizes MXU row utilization per step.
    BATCH_BLOCKS = 1

    key = jax.random.PRNGKey(0)
    kp, kx, kpmp = jax.random.split(key, 3)

    params = init_params(kp, in_length=IN_LENGTH, in_dim=IN_DIM,
                         embed_dim=EMBED_DIM, dim=DIM, depth=DEPTH,
                         heads=HEADS, dim_head=DIM_HEAD, mlp_dim=MLP_DIM,
                         n_prompts=N_PROMPTS)

    x = jax.random.normal(kx, (N, IN_LENGTH, IN_DIM), jnp.float32)
    pmp1 = jax.random.normal(kpmp, (N, 512), jnp.float32)
    # aux, pmp2, pmp3 are unused by the reference forward pass.

    fwd = jax.jit(functools.partial(tst_clip_forward, heads=HEADS,
                                    dim_head=DIM_HEAD,
                                    batch_blocks=BATCH_BLOCKS, val=False))
    logits_per_x, logits_per_pmp1 = fwd(params, x, pmp1)
    jax.block_until_ready((logits_per_x, logits_per_pmp1))

    assert logits_per_x.shape == (N, N)
    assert logits_per_pmp1.shape == (N, N)
    assert bool(jnp.all(jnp.isfinite(logits_per_x)))
    print("KERNEL_OK")
</pallas_src>

<mosaic_0001>
module attributes {stable_mosaic.version = 11 : i64} {
  func.func @_stem_kernel(%arg0: memref<16x16xf32, #tpu.memory_space<vmem>>, %arg1: memref<16x128xbf16, #tpu.memory_space<vmem>>, %arg2: memref<1x128xf32, #tpu.memory_space<vmem>>, %arg3: memref<32x128xf32, #tpu.memory_space<vmem>>, %arg4: memref<128x128xbf16, #tpu.memory_space<vmem>>, %arg5: memref<1x128xf32, #tpu.memory_space<vmem>>, %arg6: memref<1x128xf32, #tpu.memory_space<vmem>>, %arg7: memref<1x128xf32, #tpu.memory_space<vmem>>, %arg8: memref<32x128xf32, #tpu.memory_space<vmem>>, %arg9: memref<32x128xf32, #tpu.memory_space<vmem>>) attributes {dimension_semantics = [], scalar_prefetch = 0 : i64, scratch_operands = 1 : i64, tpu.core_type = #tpu.core_type<tc>} {
    %c0 = arith.constant 0 : index
    %c0_0 = arith.constant 0 : index
    %0 = vector.load %arg0[%c0, %c0_0] : memref<16x16xf32, #tpu.memory_space<vmem>>, vector<16x16xf32>
    %1 = arith.truncf %0 : vector<16x16xf32> to vector<16x16xbf16>
    %c0_1 = arith.constant 0 : index
    %c0_2 = arith.constant 0 : index
    %2 = vector.load %arg1[%c0_1, %c0_2] : memref<16x128xbf16, #tpu.memory_space<vmem>>, vector<16x128xbf16>
    %cst = arith.constant dense<0.000000e+00> : vector<16x128xf32>
    %3 = tpu.matmul %1, %2, %cst {dimension_numbers = #tpu.dot_dimension_numbers<[1], [0], [0], [1], [0, 0, 1, 1], [], []>} : vector<16x16xbf16>, vector<16x128xbf16>, vector<16x128xf32> -> vector<16x128xf32>
    %c0_3 = arith.constant 0 : index
    %c0_4 = arith.constant 0 : index
    %4 = vector.load %arg2[%c0_3, %c0_4] : memref<1x128xf32, #tpu.memory_space<vmem>>, vector<1x128xf32>
    %5 = vector.broadcast %4 : vector<1x128xf32> to vector<16x128xf32>
    %6 = arith.addf %3, %5 : vector<16x128xf32>
    %c0_5 = arith.constant 0 : index
    %c0_6 = arith.constant 0 : index
    %7 = vector.load %arg3[%c0_5, %c0_6] : memref<32x128xf32, #tpu.memory_space<vmem>>, vector<32x128xf32>
    %c0_7 = arith.constant 0 : index
    %c0_8 = arith.constant 0 : index
    %8 = vector.load %arg9[%c0_7, %c0_8] : memref<32x128xf32, #tpu.memory_space<vmem>>, vector<32x128xf32>
    tpu.vector_store %arg9[%c0_7, %c0_8], %7 {strides = array<i32>} : memref<32x128xf32, #tpu.memory_space<vmem>>, vector<32x128xf32>,
    %c0_9 = arith.constant 0 : index
    %c0_10 = arith.constant 0 : index
    %9 = vector.load %arg9[%c0_9, %c0_10] : memref<32x128xf32, #tpu.memory_space<vmem>>, vector<8x128xf32>
    %10 = vector.extract_strided_slice %6 {offsets = [0, 0], sizes = [8, 128], strides = [1, 1]} : vector<16x128xf32> to vector<8x128xf32>
    %11 = arith.addf %9, %10 : vector<8x128xf32>
    %c0_11 = arith.constant 0 : index
    %c0_12 = arith.constant 0 : index
    %12 = vector.load %arg9[%c0_11, %c0_12] : memref<32x128xf32, #tpu.memory_space<vmem>>, vector<8x128xf32>
    tpu.vector_store %arg9[%c0_11, %c0_12], %11 {strides = array<i32>} : memref<32x128xf32, #tpu.memory_space<vmem>>, vector<8x128xf32>,
    %c16 = arith.constant 16 : index
    %c0_13 = arith.constant 0 : index
    %13 = vector.load %arg9[%c16, %c0_13] : memref<32x128xf32, #tpu.memory_space<vmem>>, vector<8x128xf32>
    %14 = vector.extract_strided_slice %6 {offsets = [8, 0], sizes = [8, 128], strides = [1, 1]} : vector<16x128xf32> to vector<8x128xf32>
    %15 = arith.addf %13, %14 : vector<8x128xf32>
    %c16_14 = arith.constant 16 : index
    %c0_15 = arith.constant 0 : index
    %16 = vector.load %arg9[%c16_14, %c0_15] : memref<32x128xf32, #tpu.memory_space<vmem>>, vector<8x128xf32>
    tpu.vector_store %arg9[%c16_14, %c0_15], %15 {strides = array<i32>} : memref<32x128xf32, #tpu.memory_space<vmem>>, vector<8x128xf32>,
    %c0_16 = arith.constant 0 : index
    %c0_17 = arith.constant 0 : index
    %17 = vector.load %arg9[%c0_16, %c0_17] : memref<32x128xf32, #tpu.memory_space<vmem>>, vector<32x128xf32>
    %18 = arith.truncf %17 : vector<32x128xf32> to vector<32x128xbf16>
    %c0_18 = arith.constant 0 : index
    %c0_19 = arith.constant 0 : index
    %19 = vector.load %arg4[%c0_18, %c0_19] : memref<128x128xbf16, #tpu.memory_space<vmem>>, vector<128x128xbf16>
    %cst_20 = arith.constant dense<0.000000e+00> : vector<32x128xf32>
    %20 = tpu.matmul %18, %19, %cst_20 {dimension_numbers = #tpu.dot_dimension_numbers<[1], [0], [0], [1], [0, 0, 1, 1], [], []>} : vector<32x128xbf16>, vector<128x128xbf16>, vector<32x128xf32> -> vector<32x128xf32>
    %c0_21 = arith.constant 0 : index
    %c0_22 = arith.constant 0 : index
    %21 = vector.load %arg5[%c0_21, %c0_22] : memref<1x128xf32, #tpu.memory_space<vmem>>, vector<1x128xf32>
    %22 = vector.broadcast %21 : vector<1x128xf32> to vector<32x128xf32>
    %23 = arith.addf %20, %22 : vector<32x128xf32>
    %c0_23 = arith.constant 0 : index
    %c0_24 = arith.constant 0 : index
    %24 = vector.load %arg6[%c0_23, %c0_24] : memref<1x128xf32, #tpu.memory_space<vmem>>, vector<1x128xf32>
    %c0_25 = arith.constant 0 : index
    %c0_26 = arith.constant 0 : index
    %25 = vector.load %arg7[%c0_25, %c0_26] : memref<1x128xf32, #tpu.memory_space<vmem>>, vector<1x128xf32>
    %cst_27 = arith.constant dense<0.000000e+00> : vector<32xf32>
    %26 = vector.multi_reduction <add>, %23, %cst_27 [1] : vector<32x128xf32> to vector<32xf32>
    %27 = vector.shape_cast %26 : vector<32xf32> to vector<32x1xf32>
    %cst_28 = arith.constant 1.280000e+02 : f32
    %28 = vector.broadcast %cst_28 : f32 to vector<32x1xf32>
    %29 = arith.divf %27, %28 : vector<32x1xf32>
    %30 = vector.broadcast %29 : vector<32x1xf32> to vector<32x128xf32>
    %31 = arith.subf %23, %30 : vector<32x128xf32>
    %32 = arith.mulf %31, %31 : vector<32x128xf32>
    %cst_29 = arith.constant dense<0.000000e+00> : vector<32xf32>
    %33 = vector.multi_reduction <add>, %32, %cst_29 [1] : vector<32x128xf32> to vector<32xf32>
    %34 = vector.shape_cast %33 : vector<32xf32> to vector<32x1xf32>
    %cst_30 = arith.constant 1.280000e+02 : f32
    %35 = vector.broadcast %cst_30 : f32 to vector<32x1xf32>
    %36 = arith.divf %34, %35 : vector<32x1xf32>
    %37 = vector.broadcast %29 : vector<32x1xf32> to vector<32x128xf32>
    %38 = arith.subf %23, %37 : vector<32x128xf32>
    %cst_31 = arith.constant 9.99999974E-6 : f32
    %39 = vector.broadcast %cst_31 : f32 to vector<32x1xf32>
    %40 = arith.addf %36, %39 : vector<32x1xf32>
    %41 = math.rsqrt %40 : vector<32x1xf32>
    %42 = vector.broadcast %41 : vector<32x1xf32> to vector<32x128xf32>
    %43 = arith.mulf %38, %42 : vector<32x128xf32>
    %44 = vector.broadcast %24 : vector<1x128xf32> to vector<32x128xf32>
    %45 = arith.mulf %43, %44 : vector<32x128xf32>
    %46 = vector.broadcast %25 : vector<1x128xf32> to vector<32x128xf32>
    %47 = arith.addf %45, %46 : vector<32x128xf32>
    %cst_32 = arith.constant 0.000000e+00 : f32
    %48 = vector.broadcast %cst_32 : f32 to vector<32x128xf32>
    %49 = arith.maximumf %47, %48 : vector<32x128xf32>
    %c0_33 = arith.constant 0 : index
    %c0_34 = arith.constant 0 : index
    %50 = vector.load %arg8[%c0_33, %c0_34] : memref<32x128xf32, #tpu.memory_space<vmem>>, vector<32x128xf32>
    tpu.vector_store %arg8[%c0_33, %c0_34], %49 {strides = array<i32>} : memref<32x128xf32, #tpu.memory_space<vmem>>, vector<32x128xf32>,
    return
  }
}

module attributes {stable_mosaic.version = 11 : i64} {
  func.func @_head_kernel(%arg0: memref<2x128xf32, #tpu.memory_space<vmem>>, %arg1: memref<2x512xf32, #tpu.memory_space<vmem>>, %arg2: memref<512x128xbf16, #tpu.memory_space<vmem>>, %arg3: memref<1x128xf32, #tpu.memory_space<vmem>>, %arg4: memref<1x1xf32, #tpu.memory_space<vmem>>, %arg5: memref<2x2xf32, #tpu.memory_space<vmem>>) attributes {dimension_semantics = [], scalar_prefetch = 0 : i64, scratch_operands = 0 : i64, tpu.core_type = #tpu.core_type<tc>} {
    %c0 = arith.constant 0 : index
    %c0_0 = arith.constant 0 : index
    %0 = vector.load %arg0[%c0, %c0_0] : memref<2x128xf32, #tpu.memory_space<vmem>>, vector<2x128xf32>
    %1 = arith.mulf %0, %0 : vector<2x128xf32>
    %cst = arith.constant dense<0.000000e+00> : vector<2xf32>
    %2 = vector.multi_reduction <add>, %1, %cst [1] : vector<2x128xf32> to vector<2xf32>
    %3 = vector.shape_cast %2 : vector<2xf32> to vector<2x1xf32>
    %4 = math.rsqrt %3 : vector<2x1xf32>
    %5 = vector.broadcast %4 : vector<2x1xf32> to vector<2x128xf32>
    %6 = arith.mulf %0, %5 : vector<2x128xf32>
    %c0_1 = arith.constant 0 : index
    %c0_2 = arith.constant 0 : index
    %7 = vector.load %arg1[%c0_1, %c0_2] : memref<2x512xf32, #tpu.memory_space<vmem>>, vector<2x512xf32>
    %8 = arith.truncf %7 : vector<2x512xf32> to vector<2x512xbf16>
    %c0_3 = arith.constant 0 : index
    %c0_4 = arith.constant 0 : index
    %9 = vector.load %arg2[%c0_3, %c0_4] : memref<512x128xbf16, #tpu.memory_space<vmem>>, vector<512x128xbf16>
    %cst_5 = arith.constant dense<0.000000e+00> : vector<2x128xf32>
    %10 = tpu.matmul %8, %9, %cst_5 {dimension_numbers = #tpu.dot_dimension_numbers<[1], [0], [0], [1], [0, 0, 1, 1], [], []>} : vector<2x512xbf16>, vector<512x128xbf16>, vector<2x128xf32> -> vector<2x128xf32>
    %c0_6 = arith.constant 0 : index
    %c0_7 = arith.constant 0 : index
    %11 = vector.load %arg3[%c0_6, %c0_7] : memref<1x128xf32, #tpu.memory_space<vmem>>, vector<1x128xf32>
    %12 = vector.broadcast %11 : vector<1x128xf32> to vector<2x128xf32>
    %13 = arith.addf %10, %12 : vector<2x128xf32>
    %14 = arith.mulf %13, %13 : vector<2x128xf32>
    %cst_8 = arith.constant dense<0.000000e+00> : vector<2xf32>
    %15 = vector.multi_reduction <add>, %14, %cst_8 [1] : vector<2x128xf32> to vector<2xf32>
    %16 = vector.shape_cast %15 : vector<2xf32> to vector<2x1xf32>
    %17 = math.rsqrt %16 : vector<2x1xf32>
    %18 = vector.broadcast %17 : vector<2x1xf32> to vector<2x128xf32>
    %19 = arith.mulf %13, %18 : vector<2x128xf32>
    %c0_9 = arith.constant 0 : index
    %c0_10 = arith.constant 0 : index
    %20 = vector.load %arg4[%c0_9, %c0_10] : memref<1x1xf32, #tpu.memory_space<vmem>>, vector<1x1xf32>
    %21 = math.exp %20 : vector<1x1xf32>
    %cst_11 = arith.constant dense<0.000000e+00> : vector<2x2xf32>
    %22 = tpu.matmul %6, %19, %cst_11 {dimension_numbers = #tpu.dot_dimension_numbers<[1], [1], [0], [0], [0, 0, 1, 0], [], []>} : vector<2x128xf32>, vector<2x128xf32>, vector<2x2xf32> -> vector<2x2xf32>
    %23 = vector.broadcast %21 : vector<1x1xf32> to vector<2x2xf32>
    %24 = arith.mulf %23, %22 : vector<2x2xf32>
    %c0_12 = arith.constant 0 : index
    %c0_13 = arith.constant 0 : index
    %25 = vector.load %arg5[%c0_12, %c0_13] : memref<2x2xf32, #tpu.memory_space<vmem>>, vector<2x2xf32>
    tpu.vector_store %arg5[%c0_12, %c0_13], %24 {strides = array<i32>} : memref<2x2xf32, #tpu.memory_space<vmem>>, vector<2x2xf32>,
    return
  }
}

module attributes {stable_mosaic.version = 11 : i64} {
  func.func @_transformer_kernel(%arg0: i32, %arg1: i32, %arg2: memref<32x128xf32, #tpu.memory_space<vmem>>, %arg3: memref<1x1x128xf32, #tpu.memory_space<vmem>>, %arg4: memref<1x1x128xf32, #tpu.memory_space<vmem>>, %arg5: memref<1x128x384xbf16, #tpu.memory_space<vmem>>, %arg6: memref<1x128x128xbf16, #tpu.memory_space<vmem>>, %arg7: memref<1x1x128xf32, #tpu.memory_space<vmem>>, %arg8: memref<1x1x128xf32, #tpu.memory_space<vmem>>, %arg9: memref<1x1x128xf32, #tpu.memory_space<vmem>>, %arg10: memref<1x128x256xbf16, #tpu.memory_space<vmem>>, %arg11: memref<1x1x256xf32, #tpu.memory_space<vmem>>, %arg12: memref<1x256x128xbf16, #tpu.memory_space<vmem>>, %arg13: memref<1x1x128xf32, #tpu.memory_space<vmem>>, %arg14: memref<32x128xf32, #tpu.memory_space<vmem>>, %arg15: memref<32x128xf32, #tpu.memory_space<vmem>>) attributes {dimension_semantics = [#tpu.dimension_semantics<parallel>, #tpu.dimension_semantics<arbitrary>], iteration_bounds = array<i64: 1, 2>, scalar_prefetch = 0 : i64, scratch_operands = 1 : i64, tpu.core_type = #tpu.core_type<tc>, window_params = [{transform_indices = @transform_0, window_bounds = array<i64: 32, 128>}, {transform_indices = @transform_1, window_bounds = array<i64: 1, 1, 128>}, {transform_indices = @transform_2, window_bounds = array<i64: 1, 1, 128>}, {transform_indices = @transform_3, window_bounds = array<i64: 1, 128, 384>}, {transform_indices = @transform_4, window_bounds = array<i64: 1, 128, 128>}, {transform_indices = @transform_5, window_bounds = array<i64: 1, 1, 128>}, {transform_indices = @transform_6, window_bounds = array<i64: 1, 1, 128>}, {transform_indices = @transform_7, window_bounds = array<i64: 1, 1, 128>}, {transform_indices = @transform_8, window_bounds = array<i64: 1, 128, 256>}, {transform_indices = @transform_9, window_bounds = array<i64: 1, 1, 256>}, {transform_indices = @transform_10, window_bounds = array<i64: 1, 256, 128>}, {transform_indices = @transform_11, window_bounds = array<i64: 1, 1, 128>}, {transform_indices = @transform_12, window_bounds = array<i64: 32, 128>}]} {
    %c0_i32 = arith.constant 0 : i32
    %0 = arith.cmpi eq, %arg1, %c0_i32 : i32
    %1 = arith.extui %0 : i1 to i32
    %c0_i32_0 = arith.constant 0 : i32
    %2 = arith.cmpi ne, %1, %c0_i32_0 : i32
    scf.if %2 {
      %c0_101 = arith.constant 0 : index
      %c0_102 = arith.constant 0 : index
      %237 = vector.load %arg2[%c0_101, %c0_102] : memref<32x128xf32, #tpu.memory_space<vmem>>, vector<32x128xf32>
      %c0_103 = arith.constant 0 : index
      %c0_104 = arith.constant 0 : index
      %238 = vector.load %arg14[%c0_103, %c0_104] : memref<32x128xf32, #tpu.memory_space<vmem>>, vector<32x128xf32>
      tpu.vector_store %arg14[%c0_103, %c0_104], %237 {strides = array<i32>} : memref<32x128xf32, #tpu.memory_space<vmem>>, vector<32x128xf32>,
    } else {
    }
    %c0 = arith.constant 0 : index
    %c0_1 = arith.constant 0 : index
    %3 = vector.load %arg14[%c0, %c0_1] : memref<32x128xf32, #tpu.memory_space<vmem>>, vector<32x128xf32>
    %c0_2 = arith.constant 0 : index
    %c0_3 = arith.constant 0 : index
    %c0_4 = arith.constant 0 : index
    %4 = vector.load %arg3[%c0_2, %c0_3, %c0_4] : memref<1x1x128xf32, #tpu.memory_space<vmem>>, vector<1x1x128xf32>
    %5 = vector.shape_cast %4 : vector<1x1x128xf32> to vector<1x128xf32>
    %c0_5 = arith.constant 0 : index
    %c0_6 = arith.constant 0 : index
    %c0_7 = arith.constant 0 : index
    %6 = vector.load %arg4[%c0_5, %c0_6, %c0_7] : memref<1x1x128xf32, #tpu.memory_space<vmem>>, vector<1x1x128xf32>
    %7 = vector.shape_cast %6 : vector<1x1x128xf32> to vector<1x128xf32>
    %cst = arith.constant dense<0.000000e+00> : vector<32xf32>
    %8 = vector.multi_reduction <add>, %3, %cst [1] : vector<32x128xf32> to vector<32xf32>
    %9 = vector.shape_cast %8 : vector<32xf32> to vector<32x1xf32>
    %cst_8 = arith.constant 1.280000e+02 : f32
    %10 = vector.broadcast %cst_8 : f32 to vector<32x1xf32>
    %11 = arith.divf %9, %10 : vector<32x1xf32>
    %12 = vector.broadcast %11 : vector<32x1xf32> to vector<32x128xf32>
    %13 = arith.subf %3, %12 : vector<32x128xf32>
    %14 = arith.mulf %13, %13 : vector<32x128xf32>
    %cst_9 = arith.constant dense<0.000000e+00> : vector<32xf32>
    %15 = vector.multi_reduction <add>, %14, %cst_9 [1] : vector<32x128xf32> to vector<32xf32>
    %16 = vector.shape_cast %15 : vector<32xf32> to vector<32x1xf32>
    %cst_10 = arith.constant 1.280000e+02 : f32
    %17 = vector.broadcast %cst_10 : f32 to vector<32x1xf32>
    %18 = arith.divf %16, %17 : vector<32x1xf32>
    %19 = vector.broadcast %11 : vector<32x1xf32> to vector<32x128xf32>
    %20 = arith.subf %3, %19 : vector<32x128xf32>
    %cst_11 = arith.constant 9.99999974E-6 : f32
    %21 = vector.broadcast %cst_11 : f32 to vector<32x1xf32>
    %22 = arith.addf %18, %21 : vector<32x1xf32>
    %23 = math.rsqrt %22 : vector<32x1xf32>
    %24 = vector.broadcast %23 : vector<32x1xf32> to vector<32x128xf32>
    %25 = arith.mulf %20, %24 : vector<32x128xf32>
    %26 = vector.broadcast %5 : vector<1x128xf32> to vector<32x128xf32>
    %27 = arith.mulf %25, %26 : vector<32x128xf32>
    %28 = vector.broadcast %7 : vector<1x128xf32> to vector<32x128xf32>
    %29 = arith.addf %27, %28 : vector<32x128xf32>
    %30 = arith.truncf %29 : vector<32x128xf32> to vector<32x128xbf16>
    %c0_12 = arith.constant 0 : index
    %c0_13 = arith.constant 0 : index
    %c0_14 = arith.constant 0 : index
    %31 = vector.load %arg5[%c0_12, %c0_13, %c0_14] : memref<1x128x384xbf16, #tpu.memory_space<vmem>>, vector<1x128x384xbf16>
    %32 = vector.shape_cast %31 : vector<1x128x384xbf16> to vector<128x384xbf16>
    %cst_15 = arith.constant dense<0.000000e+00> : vector<32x384xf32>
    %33 = tpu.matmul %30, %32, %cst_15 {dimension_numbers = #tpu.dot_dimension_numbers<[1], [0], [0], [1], [0, 0, 1, 1], [], []>} : vector<32x128xbf16>, vector<128x384xbf16>, vector<32x384xf32> -> vector<32x384xf32>
    %34 = vector.extract_strided_slice %33 {offsets = [0, 0], sizes = [16, 64], strides = [1, 1]} : vector<32x384xf32> to vector<16x64xf32>
    %35 = vector.extract_strided_slice %33 {offsets = [0, 128], sizes = [16, 64], strides = [1, 1]} : vector<32x384xf32> to vector<16x64xf32>
    %36 = vector.extract_strided_slice %33 {offsets = [0, 256], sizes = [16, 64], strides = [1, 1]} : vector<32x384xf32> to vector<16x64xf32>
    %37 = arith.truncf %34 : vector<16x64xf32> to vector<16x64xbf16>
    %38 = arith.truncf %35 : vector<16x64xf32> to vector<16x64xbf16>
    %cst_16 = arith.constant dense<0.000000e+00> : vector<16x16xf32>
    %39 = tpu.matmul %37, %38, %cst_16 {dimension_numbers = #tpu.dot_dimension_numbers<[1], [1], [0], [0], [0, 0, 1, 0], [], []>} : vector<16x64xbf16>, vector<16x64xbf16>, vector<16x16xf32> -> vector<16x16xf32>
    %cst_17 = arith.constant 1.250000e-01 : f32
    %40 = vector.broadcast %cst_17 : f32 to vector<16x16xf32>
    %41 = arith.mulf %39, %40 : vector<16x16xf32>
    %42 = tpu.iota {dimensions = array<i32: 1>} : vector<16x16xi32>
    %c9_i32 = arith.constant 9 : i32
    %43 = vector.broadcast %c9_i32 : i32 to vector<16x16xi32>
    %44 = arith.cmpi slt, %42, %43 : vector<16x16xi32>
    %cst_18 = arith.constant -1.000000e+30 : f32
    %45 = vector.broadcast %cst_18 : f32 to vector<16x16xf32>
    %46 = arith.select %44, %41, %45 : vector<16x16xi1>, vector<16x16xf32>
    %cst_19 = arith.constant dense<0xFF800000> : vector<16xf32>
    %47 = vector.multi_reduction <maximumf>, %46, %cst_19 [1] : vector<16x16xf32> to vector<16xf32>
    %48 = vector.shape_cast %47 : vector<16xf32> to vector<16x1xf32>
    %49 = vector.broadcast %48 : vector<16x1xf32> to vector<16x16xf32>
    %50 = arith.subf %46, %49 : vector<16x16xf32>
    %51 = math.exp %50 : vector<16x16xf32>
    %cst_20 = arith.constant dense<0.000000e+00> : vector<16xf32>
    %52 = vector.multi_reduction <add>, %51, %cst_20 [1] : vector<16x16xf32> to vector<16xf32>
    %53 = vector.shape_cast %52 : vector<16xf32> to vector<16x1xf32>
    %54 = tpu.reciprocal %53 {approx = true} : vector<16x1xf32> -> vector<16x1xf32>
    %55 = vector.broadcast %54 : vector<16x1xf32> to vector<16x16xf32>
    %56 = arith.mulf %51, %55 : vector<16x16xf32>
    %57 = arith.truncf %56 : vector<16x16xf32> to vector<16x16xbf16>
    %58 = arith.truncf %36 : vector<16x64xf32> to vector<16x64xbf16>
    %cst_21 = arith.constant dense<0.000000e+00> : vector<16x64xf32>
    %59 = tpu.matmul %57, %58, %cst_21 {dimension_numbers = #tpu.dot_dimension_numbers<[1], [0], [0], [1], [0, 0, 1, 1], [], []>} : vector<16x16xbf16>, vector<16x64xbf16>, vector<16x64xf32> -> vector<16x64xf32>
    %c0_22 = arith.constant 0 : index
    %c0_23 = arith.constant 0 : index
    %60 = vector.load %arg15[%c0_22, %c0_23] : memref<32x128xf32, #tpu.memory_space<vmem>>, vector<16x64xf32>
    tpu.vector_store %arg15[%c0_22, %c0_23], %59 {strides = array<i32>} : memref<32x128xf32, #tpu.memory_space<vmem>>, vector<16x64xf32>,
    %61 = vector.extract_strided_slice %33 {offsets = [0, 64], sizes = [16, 64], strides = [1, 1]} : vector<32x384xf32> to vector<16x64xf32>
    %62 = vector.extract_strided_slice %33 {offsets = [0, 192], sizes = [16, 64], strides = [1, 1]} : vector<32x384xf32> to vector<16x64xf32>
    %63 = vector.extract_strided_slice %33 {offsets = [0, 320], sizes = [16, 64], strides = [1, 1]} : vector<32x384xf32> to vector<16x64xf32>
    %64 = arith.truncf %61 : vector<16x64xf32> to vector<16x64xbf16>
    %65 = arith.truncf %62 : vector<16x64xf32> to vector<16x64xbf16>
    %cst_24 = arith.constant dense<0.000000e+00> : vector<16x16xf32>
    %66 = tpu.matmul %64, %65, %cst_24 {dimension_numbers = #tpu.dot_dimension_numbers<[1], [1], [0], [0], [0, 0, 1, 0], [], []>} : vector<16x64xbf16>, vector<16x64xbf16>, vector<16x16xf32> -> vector<16x16xf32>
    %cst_25 = arith.constant 1.250000e-01 : f32
    %67 = vector.broadcast %cst_25 : f32 to vector<16x16xf32>
    %68 = arith.mulf %66, %67 : vector<16x16xf32>
    %69 = tpu.iota {dimensions = array<i32: 1>} : vector<16x16xi32>
    %c9_i32_26 = arith.constant 9 : i32
    %70 = vector.broadcast %c9_i32_26 : i32 to vector<16x16xi32>
    %71 = arith.cmpi slt, %69, %70 : vector<16x16xi32>
    %cst_27 = arith.constant -1.000000e+30 : f32
    %72 = vector.broadcast %cst_27 : f32 to vector<16x16xf32>
    %73 = arith.select %71, %68, %72 : vector<16x16xi1>, vector<16x16xf32>
    %cst_28 = arith.constant dense<0xFF800000> : vector<16xf32>
    %74 = vector.multi_reduction <maximumf>, %73, %cst_28 [1] : vector<16x16xf32> to vector<16xf32>
    %75 = vector.shape_cast %74 : vector<16xf32> to vector<16x1xf32>
    %76 = vector.broadcast %75 : vector<16x1xf32> to vector<16x16xf32>
    %77 = arith.subf %73, %76 : vector<16x16xf32>
    %78 = math.exp %77 : vector<16x16xf32>
    %cst_29 = arith.constant dense<0.000000e+00> : vector<16xf32>
    %79 = vector.multi_reduction <add>, %78, %cst_29 [1] : vector<16x16xf32> to vector<16xf32>
    %80 = vector.shape_cast %79 : vector<16xf32> to vector<16x1xf32>
    %81 = tpu.reciprocal %80 {approx = true} : vector<16x1xf32> -> vector<16x1xf32>
    %82 = vector.broadcast %81 : vector<16x1xf32> to vector<16x16xf32>
    %83 = arith.mulf %78, %82 : vector<16x16xf32>
    %84 = arith.truncf %83 : vector<16x16xf32> to vector<16x16xbf16>
    %85 = arith.truncf %63 : vector<16x64xf32> to vector<16x64xbf16>
    %cst_30 = arith.constant dense<0.000000e+00> : vector<16x64xf32>
    %86 = tpu.matmul %84, %85, %cst_30 {dimension_numbers = #tpu.dot_dimension_numbers<[1], [0], [0], [1], [0, 0, 1, 1], [], []>} : vector<16x16xbf16>, vector<16x64xbf16>, vector<16x64xf32> -> vector<16x64xf32>
    %c0_31 = arith.constant 0 : index
    %c64 = arith.constant 64 : index
    %87 = vector.load %arg15[%c0_31, %c64] : memref<32x128xf32, #tpu.memory_space<vmem>>, vector<16x64xf32>
    tpu.vector_store %arg15[%c0_31, %c64], %86 {strides = array<i32>} : memref<32x128xf32, #tpu.memory_space<vmem>>, vector<16x64xf32>,
    %88 = vector.extract_strided_slice %33 {offsets = [16, 0], sizes = [16, 64], strides = [1, 1]} : vector<32x384xf32> to vector<16x64xf32>
    %89 = vector.extract_strided_slice %33 {offsets = [16, 128], sizes = [16, 64], strides = [1, 1]} : vector<32x384xf32> to vector<16x64xf32>
    %90 = vector.extract_strided_slice %33 {offsets = [16, 256], sizes = [16, 64], strides = [1, 1]} : vector<32x384xf32> to vector<16x64xf32>
    %91 = arith.truncf %88 : vector<16x64xf32> to vector<16x64xbf16>
    %92 = arith.truncf %89 : vector<16x64xf32> to vector<16x64xbf16>
    %cst_32 = arith.constant dense<0.000000e+00> : vector<16x16xf32>
    %93 = tpu.matmul %91, %92, %cst_32 {dimension_numbers = #tpu.dot_dimension_numbers<[1], [1], [0], [0], [0, 0, 1, 0], [], []>} : vector<16x64xbf16>, vector<16x64xbf16>, vector<16x16xf32> -> vector<16x16xf32>
    %cst_33 = arith.constant 1.250000e-01 : f32
    %94 = vector.broadcast %cst_33 : f32 to vector<16x16xf32>
    %95 = arith.mulf %93, %94 : vector<16x16xf32>
    %96 = tpu.iota {dimensions = array<i32: 1>} : vector<16x16xi32>
    %c9_i32_34 = arith.constant 9 : i32
    %97 = vector.broadcast %c9_i32_34 : i32 to vector<16x16xi32>
    %98 = arith.cmpi slt, %96, %97 : vector<16x16xi32>
    %cst_35 = arith.constant -1.000000e+30 : f32
    %99 = vector.broadcast %cst_35 : f32 to vector<16x16xf32>
    %100 = arith.select %98, %95, %99 : vector<16x16xi1>, vector<16x16xf32>
    %cst_36 = arith.constant dense<0xFF800000> : vector<16xf32>
    %101 = vector.multi_reduction <maximumf>, %100, %cst_36 [1] : vector<16x16xf32> to vector<16xf32>
    %102 = vector.shape_cast %101 : vector<16xf32> to vector<16x1xf32>
    %103 = vector.broadcast %102 : vector<16x1xf32> to vector<16x16xf32>
    %104 = arith.subf %100, %103 : vector<16x16xf32>
    %105 = math.exp %104 : vector<16x16xf32>
    %cst_37 = arith.constant dense<0.000000e+00> : vector<16xf32>
    %106 = vector.multi_reduction <add>, %105, %cst_37 [1] : vector<16x16xf32> to vector<16xf32>
    %107 = vector.shape_cast %106 : vector<16xf32> to vector<16x1xf32>
    %108 = tpu.reciprocal %107 {approx = true} : vector<16x1xf32> -> vector<16x1xf32>
    %109 = vector.broadcast %108 : vector<16x1xf32> to vector<16x16xf32>
    %110 = arith.mulf %105, %109 : vector<16x16xf32>
    %111 = arith.truncf %110 : vector<16x16xf32> to vector<16x16xbf16>
    %112 = arith.truncf %90 : vector<16x64xf32> to vector<16x64xbf16>
    %cst_38 = arith.constant dense<0.000000e+00> : vector<16x64xf32>
    %113 = tpu.matmul %111, %112, %cst_38 {dimension_numbers = #tpu.dot_dimension_numbers<[1], [0], [0], [1], [0, 0, 1, 1], [], []>} : vector<16x16xbf16>, vector<16x64xbf16>, vector<16x64xf32> -> vector<16x64xf32>
    %c16 = arith.constant 16 : index
    %c0_39 = arith.constant 0 : index
    %114 = vector.load %arg15[%c16, %c0_39] : memref<32x128xf32, #tpu.memory_space<vmem>>, vector<16x64xf32>
    tpu.vector_store %arg15[%c16, %c0_39], %113 {strides = array<i32>} : memref<32x128xf32, #tpu.memory_space<vmem>>, vector<16x64xf32>,
    %115 = vector.extract_strided_slice %33 {offsets = [16, 64], sizes = [16, 64], strides = [1, 1]} : vector<32x384xf32> to vector<16x64xf32>
    %116 = vector.extract_strided_slice %33 {offsets = [16, 192], sizes = [16, 64], strides = [1, 1]} : vector<32x384xf32> to vector<16x64xf32>
    %117 = vector.extract_strided_slice %33 {offsets = [16, 320], sizes = [16, 64], strides = [1, 1]} : vector<32x384xf32> to vector<16x64xf32>
    %118 = arith.truncf %115 : vector<16x64xf32> to vector<16x64xbf16>
    %119 = arith.truncf %116 : vector<16x64xf32> to vector<16x64xbf16>
    %cst_40 = arith.constant dense<0.000000e+00> : vector<16x16xf32>
    %120 = tpu.matmul %118, %119, %cst_40 {dimension_numbers = #tpu.dot_dimension_numbers<[1], [1], [0], [0], [0, 0, 1, 0], [], []>} : vector<16x64xbf16>, vector<16x64xbf16>, vector<16x16xf32> -> vector<16x16xf32>
    %cst_41 = arith.constant 1.250000e-01 : f32
    %121 = vector.broadcast %cst_41 : f32 to vector<16x16xf32>
    %122 = arith.mulf %120, %121 : vector<16x16xf32>
    %123 = tpu.iota {dimensions = array<i32: 1>} : vector<16x16xi32>
    %c9_i32_42 = arith.constant 9 : i32
    %124 = vector.broadcast %c9_i32_42 : i32 to vector<16x16xi32>
    %125 = arith.cmpi slt, %123, %124 : vector<16x16xi32>
    %cst_43 = arith.constant -1.000000e+30 : f32
    %126 = vector.broadcast %cst_43 : f32 to vector<16x16xf32>
    %127 = arith.select %125, %122, %126 : vector<16x16xi1>, vector<16x16xf32>
    %cst_44 = arith.constant dense<0xFF800000> : vector<16xf32>
    %128 = vector.multi_reduction <maximumf>, %127, %cst_44 [1] : vector<16x16xf32> to vector<16xf32>
    %129 = vector.shape_cast %128 : vector<16xf32> to vector<16x1xf32>
    %130 = vector.broadcast %129 : vector<16x1xf32> to vector<16x16xf32>
    %131 = arith.subf %127, %130 : vector<16x16xf32>
    %132 = math.exp %131 : vector<16x16xf32>
    %cst_45 = arith.constant dense<0.000000e+00> : vector<16xf32>
    %133 = vector.multi_reduction <add>, %132, %cst_45 [1] : vector<16x16xf32> to vector<16xf32>
    %134 = vector.shape_cast %133 : vector<16xf32> to vector<16x1xf32>
    %135 = tpu.reciprocal %134 {approx = true} : vector<16x1xf32> -> vector<16x1xf32>
    %136 = vector.broadcast %135 : vector<16x1xf32> to vector<16x16xf32>
    %137 = arith.mulf %132, %136 : vector<16x16xf32>
    %138 = arith.truncf %137 : vector<16x16xf32> to vector<16x16xbf16>
    %139 = arith.truncf %117 : vector<16x64xf32> to vector<16x64xbf16>
    %cst_46 = arith.constant dense<0.000000e+00> : vector<16x64xf32>
    %140 = tpu.matmul %138, %139, %cst_46 {dimension_numbers = #tpu.dot_dimension_numbers<[1], [0], [0], [1], [0, 0, 1, 1], [], []>} : vector<16x16xbf16>, vector<16x64xbf16>, vector<16x64xf32> -> vector<16x64xf32>
    %c16_47 = arith.constant 16 : index
    %c64_48 = arith.constant 64 : index
    %141 = vector.load %arg15[%c16_47, %c64_48] : memref<32x128xf32, #tpu.memory_space<vmem>>, vector<16x64xf32>
    tpu.vector_store %arg15[%c16_47, %c64_48], %140 {strides = array<i32>} : memref<32x128xf32, #tpu.memory_space<vmem>>, vector<16x64xf32>,
    %c0_49 = arith.constant 0 : index
    %c0_50 = arith.constant 0 : index
    %142 = vector.load %arg15[%c0_49, %c0_50] : memref<32x128xf32, #tpu.memory_space<vmem>>, vector<32x128xf32>
    %143 = arith.truncf %142 : vector<32x128xf32> to vector<32x128xbf16>
    %c0_51 = arith.constant 0 : index
    %c0_52 = arith.constant 0 : index
    %c0_53 = arith.constant 0 : index
    %144 = vector.load %arg6[%c0_51, %c0_52, %c0_53] : memref<1x128x128xbf16, #tpu.memory_space<vmem>>, vector<1x128x128xbf16>
    %145 = vector.shape_cast %144 : vector<1x128x128xbf16> to vector<128x128xbf16>
    %cst_54 = arith.constant dense<0.000000e+00> : vector<32x128xf32>
    %146 = tpu.matmul %143, %145, %cst_54 {dimension_numbers = #tpu.dot_dimension_numbers<[1], [0], [0], [1], [0, 0, 1, 1], [], []>} : vector<32x128xbf16>, vector<128x128xbf16>, vector<32x128xf32> -> vector<32x128xf32>
    %147 = arith.addf %3, %146 : vector<32x128xf32>
    %c0_55 = arith.constant 0 : index
    %c0_56 = arith.constant 0 : index
    %c0_57 = arith.constant 0 : index
    %148 = vector.load %arg7[%c0_55, %c0_56, %c0_57] : memref<1x1x128xf32, #tpu.memory_space<vmem>>, vector<1x1x128xf32>
    %149 = vector.shape_cast %148 : vector<1x1x128xf32> to vector<1x128xf32>
    %150 = vector.broadcast %149 : vector<1x128xf32> to vector<32x128xf32>
    %151 = arith.addf %147, %150 : vector<32x128xf32>
    %c0_58 = arith.constant 0 : index
    %c0_59 = arith.constant 0 : index
    %c0_60 = arith.constant 0 : index
    %152 = vector.load %arg8[%c0_58, %c0_59, %c0_60] : memref<1x1x128xf32, #tpu.memory_space<vmem>>, vector<1x1x128xf32>
    %153 = vector.shape_cast %152 : vector<1x1x128xf32> to vector<1x128xf32>
    %c0_61 = arith.constant 0 : index
    %c0_62 = arith.constant 0 : index
    %c0_63 = arith.constant 0 : index
    %154 = vector.load %arg9[%c0_61, %c0_62, %c0_63] : memref<1x1x128xf32, #tpu.memory_space<vmem>>, vector<1x1x128xf32>
    %155 = vector.shape_cast %154 : vector<1x1x128xf32> to vector<1x128xf32>
    %cst_64 = arith.constant dense<0.000000e+00> : vector<32xf32>
    %156 = vector.multi_reduction <add>, %151, %cst_64 [1] : vector<32x128xf32> to vector<32xf32>
    %157 = vector.shape_cast %156 : vector<32xf32> to vector<32x1xf32>
    %cst_65 = arith.constant 1.280000e+02 : f32
    %158 = vector.broadcast %cst_65 : f32 to vector<32x1xf32>
    %159 = arith.divf %157, %158 : vector<32x1xf32>
    %160 = vector.broadcast %159 : vector<32x1xf32> to vector<32x128xf32>
    %161 = arith.subf %151, %160 : vector<32x128xf32>
    %162 = arith.mulf %161, %161 : vector<32x128xf32>
    %cst_66 = arith.constant dense<0.000000e+00> : vector<32xf32>
    %163 = vector.multi_reduction <add>, %162, %cst_66 [1] : vector<32x128xf32> to vector<32xf32>
    %164 = vector.shape_cast %163 : vector<32xf32> to vector<32x1xf32>
    %cst_67 = arith.constant 1.280000e+02 : f32
    %165 = vector.broadcast %cst_67 : f32 to vector<32x1xf32>
    %166 = arith.divf %164, %165 : vector<32x1xf32>
    %167 = vector.broadcast %159 : vector<32x1xf32> to vector<32x128xf32>
    %168 = arith.subf %151, %167 : vector<32x128xf32>
    %cst_68 = arith.constant 9.99999974E-6 : f32
    %169 = vector.broadcast %cst_68 : f32 to vector<32x1xf32>
    %170 = arith.addf %166, %169 : vector<32x1xf32>
    %171 = math.rsqrt %170 : vector<32x1xf32>
    %172 = vector.broadcast %171 : vector<32x1xf32> to vector<32x128xf32>
    %173 = arith.mulf %168, %172 : vector<32x128xf32>
    %174 = vector.broadcast %153 : vector<1x128xf32> to vector<32x128xf32>
    %175 = arith.mulf %173, %174 : vector<32x128xf32>
    %176 = vector.broadcast %155 : vector<1x128xf32> to vector<32x128xf32>
    %177 = arith.addf %175, %176 : vector<32x128xf32>
    %178 = arith.truncf %177 : vector<32x128xf32> to vector<32x128xbf16>
    %c0_69 = arith.constant 0 : index
    %c0_70 = arith.constant 0 : index
    %c0_71 = arith.constant 0 : index
    %179 = vector.load %arg10[%c0_69, %c0_70, %c0_71] : memref<1x128x256xbf16, #tpu.memory_space<vmem>>, vector<1x128x256xbf16>
    %180 = vector.shape_cast %179 : vector<1x128x256xbf16> to vector<128x256xbf16>
    %cst_72 = arith.constant dense<0.000000e+00> : vector<32x256xf32>
    %181 = tpu.matmul %178, %180, %cst_72 {dimension_numbers = #tpu.dot_dimension_numbers<[1], [0], [0], [1], [0, 0, 1, 1], [], []>} : vector<32x128xbf16>, vector<128x256xbf16>, vector<32x256xf32> -> vector<32x256xf32>
    %c0_73 = arith.constant 0 : index
    %c0_74 = arith.constant 0 : index
    %c0_75 = arith.constant 0 : index
    %182 = vector.load %arg11[%c0_73, %c0_74, %c0_75] : memref<1x1x256xf32, #tpu.memory_space<vmem>>, vector<1x1x256xf32>
    %183 = vector.shape_cast %182 : vector<1x1x256xf32> to vector<1x256xf32>
    %184 = vector.broadcast %183 : vector<1x256xf32> to vector<32x256xf32>
    %185 = arith.addf %181, %184 : vector<32x256xf32>
    %cst_76 = arith.constant 5.000000e-01 : f32
    %186 = vector.broadcast %cst_76 : f32 to vector<32x256xf32>
    %187 = arith.mulf %186, %185 : vector<32x256xf32>
    %cst_77 = arith.constant 0.707106769 : f32
    %188 = vector.broadcast %cst_77 : f32 to vector<32x256xf32>
    %189 = arith.mulf %185, %188 : vector<32x256xf32>
    %cst_78 = arith.constant 0.000000e+00 : f32
    %190 = vector.broadcast %cst_78 : f32 to vector<32x256xf32>
    %191 = arith.cmpf olt, %189, %190 : vector<32x256xf32>
    %cst_79 = arith.constant -1.000000e+00 : f32
    %cst_80 = arith.constant 1.000000e+00 : f32
    %192 = vector.broadcast %cst_79 : f32 to vector<32x256xf32>
    %193 = vector.broadcast %cst_80 : f32 to vector<32x256xf32>
    %194 = arith.select %191, %192, %193 : vector<32x256xi1>, vector<32x256xf32>
    %195 = math.absf %189 : vector<32x256xf32>
    %cst_81 = arith.constant 0.327591091 : f32
    %196 = vector.broadcast %cst_81 : f32 to vector<32x256xf32>
    %197 = arith.mulf %196, %195 : vector<32x256xf32>
    %cst_82 = arith.constant 1.000000e+00 : f32
    %198 = vector.broadcast %cst_82 : f32 to vector<32x256xf32>
    %199 = arith.addf %198, %197 : vector<32x256xf32>
    %cst_83 = arith.constant 1.000000e+00 : f32
    %200 = vector.broadcast %cst_83 : f32 to vector<32x256xf32>
    %201 = arith.divf %200, %199 : vector<32x256xf32>
    %cst_84 = arith.constant 1.06140542 : f32
    %202 = vector.broadcast %cst_84 : f32 to vector<32x256xf32>
    %203 = arith.mulf %202, %201 : vector<32x256xf32>
    %cst_85 = arith.constant -1.45315206 : f32
    %204 = vector.broadcast %cst_85 : f32 to vector<32x256xf32>
    %205 = arith.addf %203, %204 : vector<32x256xf32>
    %206 = arith.mulf %205, %201 : vector<32x256xf32>
    %cst_86 = arith.constant 1.42141378 : f32
    %207 = vector.broadcast %cst_86 : f32 to vector<32x256xf32>
    %208 = arith.addf %206, %207 : vector<32x256xf32>
    %209 = arith.mulf %208, %201 : vector<32x256xf32>
    %cst_87 = arith.constant -0.284496725 : f32
    %210 = vector.broadcast %cst_87 : f32 to vector<32x256xf32>
    %211 = arith.addf %209, %210 : vector<32x256xf32>
    %212 = arith.mulf %211, %201 : vector<32x256xf32>
    %cst_88 = arith.constant 0.254829586 : f32
    %213 = vector.broadcast %cst_88 : f32 to vector<32x256xf32>
    %214 = arith.addf %212, %213 : vector<32x256xf32>
    %215 = arith.mulf %214, %201 : vector<32x256xf32>
    %cst_89 = arith.constant 0.000000e+00 : f32
    %216 = vector.broadcast %cst_89 : f32 to vector<32x256xf32>
    %217 = arith.subf %216, %195 : vector<32x256xf32>
    %218 = arith.mulf %217, %195 : vector<32x256xf32>
    %219 = math.exp %218 : vector<32x256xf32>
    %220 = arith.mulf %215, %219 : vector<32x256xf32>
    %cst_90 = arith.constant 1.000000e+00 : f32
    %221 = vector.broadcast %cst_90 : f32 to vector<32x256xf32>
    %222 = arith.subf %221, %220 : vector<32x256xf32>
    %223 = arith.mulf %194, %222 : vector<32x256xf32>
    %cst_91 = arith.constant 1.000000e+00 : f32
    %224 = vector.broadcast %cst_91 : f32 to vector<32x256xf32>
    %225 = arith.addf %224, %223 : vector<32x256xf32>
    %226 = arith.mulf %187, %225 : vector<32x256xf32>
    %227 = arith.truncf %226 : vector<32x256xf32> to vector<32x256xbf16>
    %c0_92 = arith.constant 0 : index
    %c0_93 = arith.constant 0 : index
    %c0_94 = arith.constant 0 : index
    %228 = vector.load %arg12[%c0_92, %c0_93, %c0_94] : memref<1x256x128xbf16, #tpu.memory_space<vmem>>, vector<1x256x128xbf16>
    %229 = vector.shape_cast %228 : vector<1x256x128xbf16> to vector<256x128xbf16>
    %cst_95 = arith.constant dense<0.000000e+00> : vector<32x128xf32>
    %230 = tpu.matmul %227, %229, %cst_95 {dimension_numbers = #tpu.dot_dimension_numbers<[1], [0], [0], [1], [0, 0, 1, 1], [], []>} : vector<32x256xbf16>, vector<256x128xbf16>, vector<32x128xf32> -> vector<32x128xf32>
    %231 = arith.addf %151, %230 : vector<32x128xf32>
    %c0_96 = arith.constant 0 : index
    %c0_97 = arith.constant 0 : index
    %c0_98 = arith.constant 0 : index
    %232 = vector.load %arg13[%c0_96, %c0_97, %c0_98] : memref<1x1x128xf32, #tpu.memory_space<vmem>>, vector<1x1x128xf32>
    %233 = vector.shape_cast %232 : vector<1x1x128xf32> to vector<1x128xf32>
    %234 = vector.broadcast %233 : vector<1x128xf32> to vector<32x128xf32>
    %235 = arith.addf %231, %234 : vector<32x128xf32>
    %c0_99 = arith.constant 0 : index
    %c0_100 = arith.constant 0 : index
    %236 = vector.load %arg14[%c0_99, %c0_100] : memref<32x128xf32, #tpu.memory_space<vmem>>, vector<32x128xf32>
    tpu.vector_store %arg14[%c0_99, %c0_100], %235 {strides = array<i32>} : memref<32x128xf32, #tpu.memory_space<vmem>>, vector<32x128xf32>,
    return
  }
  func.func @transform_0(%arg0: i32, %arg1: i32) -> (i32, i32) {
    %c0_i32 = arith.constant 0 : i32
    %c0_i32_0 = arith.constant 0 : i32
    return %arg0, %c0_i32 : i32, i32
  }
  func.func @transform_1(%arg0: i32, %arg1: i32) -> (i32, i32, i32) {
    %c0_i32 = arith.constant 0 : i32
    %c0_i32_0 = arith.constant 0 : i32
    %c0_i32_1 = arith.constant 0 : i32
    return %arg1, %c0_i32, %c0_i32_0 : i32, i32, i32
  }
  func.func @transform_2(%arg0: i32, %arg1: i32) -> (i32, i32, i32) {
    %c0_i32 = arith.constant 0 : i32
    %c0_i32_0 = arith.constant 0 : i32
    %c0_i32_1 = arith.constant 0 : i32
    return %arg1, %c0_i32, %c0_i32_0 : i32, i32, i32
  }
  func.func @transform_3(%arg0: i32, %arg1: i32) -> (i32, i32, i32) {
    %c0_i32 = arith.constant 0 : i32
    %c0_i32_0 = arith.constant 0 : i32
    %c0_i32_1 = arith.constant 0 : i32
    return %arg1, %c0_i32, %c0_i32_0 : i32, i32, i32
  }
  func.func @transform_4(%arg0: i32, %arg1: i32) -> (i32, i32, i32) {
    %c0_i32 = arith.constant 0 : i32
    %c0_i32_0 = arith.constant 0 : i32
    %c0_i32_1 = arith.constant 0 : i32
    return %arg1, %c0_i32, %c0_i32_0 : i32, i32, i32
  }
  func.func @transform_5(%arg0: i32, %arg1: i32) -> (i32, i32, i32) {
    %c0_i32 = arith.constant 0 : i32
    %c0_i32_0 = arith.constant 0 : i32
    %c0_i32_1 = arith.constant 0 : i32
    return %arg1, %c0_i32, %c0_i32_0 : i32, i32, i32
  }
  func.func @transform_6(%arg0: i32, %arg1: i32) -> (i32, i32, i32) {
    %c0_i32 = arith.constant 0 : i32
    %c0_i32_0 = arith.constant 0 : i32
    %c0_i32_1 = arith.constant 0 : i32
    return %arg1, %c0_i32, %c0_i32_0 : i32, i32, i32
  }
  func.func @transform_7(%arg0: i32, %arg1: i32) -> (i32, i32, i32) {
    %c0_i32 = arith.constant 0 : i32
    %c0_i32_0 = arith.constant 0 : i32
    %c0_i32_1 = arith.constant 0 : i32
    return %arg1, %c0_i32, %c0_i32_0 : i32, i32, i32
  }
  func.func @transform_8(%arg0: i32, %arg1: i32) -> (i32, i32, i32) {
    %c0_i32 = arith.constant 0 : i32
    %c0_i32_0 = arith.constant 0 : i32
    %c0_i32_1 = arith.constant 0 : i32
    return %arg1, %c0_i32, %c0_i32_0 : i32, i32, i32
  }
  func.func @transform_9(%arg0: i32, %arg1: i32) -> (i32, i32, i32) {
    %c0_i32 = arith.constant 0 : i32
    %c0_i32_0 = arith.constant 0 : i32
    %c0_i32_1 = arith.constant 0 : i32
    return %arg1, %c0_i32, %c0_i32_0 : i32, i32, i32
  }
  func.func @transform_10(%arg0: i32, %arg1: i32) -> (i32, i32, i32) {
    %c0_i32 = arith.constant 0 : i32
    %c0_i32_0 = arith.constant 0 : i32
    %c0_i32_1 = arith.constant 0 : i32
    return %arg1, %c0_i32, %c0_i32_0 : i32, i32, i32
  }
  func.func @transform_11(%arg0: i32, %arg1: i32) -> (i32, i32, i32) {
    %c0_i32 = arith.constant 0 : i32
    %c0_i32_0 = arith.constant 0 : i32
    %c0_i32_1 = arith.constant 0 : i32
    return %arg1, %c0_i32, %c0_i32_0 : i32, i32, i32
  }
  func.func @transform_12(%arg0: i32, %arg1: i32) -> (i32, i32) {
    %c0_i32 = arith.constant 0 : i32
    %c0_i32_0 = arith.constant 0 : i32
    return %arg0, %c0_i32 : i32, i32
  }
}

</mosaic_0001>

<llo_original>
// kernel: tst_clip_forward.3
$region0: #{tst_clip_forward.3}
  #allocation0 [shape = 'u32[]', space=smem, size = 0x4, offset = 0x4, fixed_abs, tag = 'smem constant byte address 0x4 - core index']
  #allocation1 [shape = 'u32[72,128]{1,0:T(1,128)}', space=vmem, size = 0x9000, scoped, tag = 'internal scratch']
  #allocation2 [shape = 'f32[32,128]{1,0:T(8,128)}', space=vmem, size = 0x4000, scoped, tag = 'scratch operand']
  %s0 = inlined_call_operand.vmem [shape: f32[16,16], index: 0, kind: input, shape index: {}]
  %s1 = inlined_call_operand.vmem [shape: bf16[16,128], index: 1, kind: input, shape index: {}]
  %s2 = inlined_call_operand.vmem [shape: f32[1,128], index: 2, kind: input, shape index: {}]
  %s3 = inlined_call_operand.vmem [shape: f32[32,128], index: 3, kind: input, shape index: {}]
  %s4 = inlined_call_operand.vmem [shape: bf16[128,128], index: 4, kind: input, shape index: {}]
  %s5 = inlined_call_operand.hbm [shape: f32[1,128], index: 5, kind: input, shape index: {}]
  %s6 = inlined_call_operand.hbm [shape: f32[1,128], index: 6, kind: input, shape index: {}]
  %s7 = inlined_call_operand.hbm [shape: f32[1,128], index: 7, kind: input, shape index: {}]
  %s8 = inlined_call_operand.vmem [shape: f32[32,128], index: 8, kind: output, shape index: {}]
  %s9 = sld [smem:[#allocation0]]
  $region54: #{tst_clip_forward.3} parent=0
    _
  %s11 = ssub.s32 1, %s9
  %s12 = scalar_select 0, %s11, %s9
  $region1: #{tst_clip_forward.3} parent=0
    #allocation3 [shape = 'u8[512]{0}', space=vmem, size = 0x400, scoped, tag = 'input window, operand 5, single buffered']
    #allocation4 [shape = 's32[1]{0}', space=sflag, size = 0x4, scoped, tag = 'scoped memory for tst_clip_forward.3']
    #allocation5 [shape = 'u8[512]{0}', space=vmem, size = 0x400, scoped, tag = 'input window, operand 6, single buffered']
    #allocation6 [shape = 's32[1]{0}', space=sflag, size = 0x4, scoped, tag = 'scoped memory for tst_clip_forward.3']
    #allocation7 [shape = 'u8[512]{0}', space=vmem, size = 0x400, scoped, tag = 'input window, operand 7, single buffered']
    %13 = vsyncpa [#allocation4], 0
    %14 = vsyncpa [#allocation6], 0
    // Predicated region
    $region2: #{tst_clip_forward.3} parent=1 // pred_check
      _
    $region3: #{tst_clip_forward.3} parent=1 // pred_check_branch
      %16 = sbr.rel (0) target = $region5
    $region4: #{tst_clip_forward.3} parent=1 // pred_region
      _
    $region5: #{tst_clip_forward.3} parent=1 // pred_fallthru
      _
    // Predicated region
    $region6: #{tst_clip_forward.3} parent=1 // pred_check
      _
    $region7: #{tst_clip_forward.3} parent=1 // pred_check_branch
      %18 = sbr.rel (0) target = $region9
    $region8: #{tst_clip_forward.3} parent=1 // pred_region
      _
    $region9: #{tst_clip_forward.3} parent=1 // pred_fallthru
      _
    // Predicated region
    $region10: #{tst_clip_forward.3} parent=1 // pred_check
      _
    $region11: #{tst_clip_forward.3} parent=1 // pred_check_branch
      %20 = sbr.rel (0) target = $region13
    $region12: #{tst_clip_forward.3} parent=1 // pred_region
      _
    $region13: #{tst_clip_forward.3} parent=1 // pred_fallthru
      _
    // Predicated region
    $region14: #{tst_clip_forward.3} parent=1 // pred_check
      _
    $region15: #{tst_clip_forward.3} parent=1 // pred_check_branch
      %22 = sbr.rel (0) target = $region17
    $region16: #{tst_clip_forward.3} parent=1 // pred_region
      _
    $region17: #{tst_clip_forward.3} parent=1 // pred_fallthru
      _
    // Predicated region
    $region18: #{tst_clip_forward.3} parent=1 // pred_check
      _
    $region19: #{tst_clip_forward.3} parent=1 // pred_check_branch
      %24 = sbr.rel (0) target = $region21
    $region20: #{tst_clip_forward.3} parent=1 // pred_region
      _
    $region21: #{tst_clip_forward.3} parent=1 // pred_fallthru
      _
    // Predicated region
    $region22: #{tst_clip_forward.3} parent=1 // pred_check
      _
    $region23: #{tst_clip_forward.3} parent=1 // pred_check_branch
      %26 = sbr.rel (0) target = $region25
    $region24: #{tst_clip_forward.3} parent=1 // pred_region
      %28 = vsyncadd [#allocation4], 0
      %s30 = sshll.u32 %s5, 4
      %s31 = int_to_ptr.hbm [resolvable:$true] %s30
      %s32 = sshll.u32 [#allocation3], 4
      %s33 = int_to_ptr.vmem [resolvable:$true] %s32
      %35 = dma.hbm_to_vmem [thread:$0]  %s31, 16, %s33, [#allocation4]
    $region25: #{tst_clip_forward.3} parent=1 // pred_fallthru
      _
    // Predicated region
    $region26: #{tst_clip_forward.3} parent=1 // pred_check
      _
    $region27: #{tst_clip_forward.3} parent=1 // pred_check_branch
      %37 = sbr.rel (0) target = $region29
    $region28: #{tst_clip_forward.3} parent=1 // pred_region
      %39 = vsyncadd [#allocation6], 0
      %s41 = sshll.u32 %s6, 4
      %s42 = int_to_ptr.hbm [resolvable:$true] %s41
      %s43 = sshll.u32 [#allocation5], 4
      %s44 = int_to_ptr.vmem [resolvable:$true] %s43
      %46 = dma.hbm_to_vmem [thread:$0]  %s42, 16, %s44, [#allocation6]
    $region29: #{tst_clip_forward.3} parent=1 // pred_fallthru
      _
    // Predicated region
    $region30: #{tst_clip_forward.3} parent=1 // pred_check
      _
    $region31: #{tst_clip_forward.3} parent=1 // pred_check_branch
      %48 = sbr.rel (0) target = $region33
    $region32: #{tst_clip_forward.3} parent=1 // pred_region
      %50 = vsyncadd [#allocation6], 0
      %s52 = sshll.u32 %s7, 4
      %s53 = int_to_ptr.hbm [resolvable:$true] %s52
      %s54 = sshll.u32 [#allocation7], 4
      %s55 = int_to_ptr.vmem [resolvable:$true] %s54
      %57 = dma.hbm_to_vmem [thread:$0]  %s53, 16, %s55, [#allocation6]
    $region33: #{tst_clip_forward.3} parent=1 // pred_fallthru
      _
    // Predicated region
    $region34: #{tst_clip_forward.3} parent=1 // pred_check
      _
    $region35: #{tst_clip_forward.3} parent=1 // pred_check_branch
      %59 = sbr.rel (0) target = $region37
    $region36: #{tst_clip_forward.3} parent=1 // pred_region
      %61 = dma.done [#allocation4], 16
    $region37: #{tst_clip_forward.3} parent=1 // pred_fallthru
      _
    // Predicated region
    $region38: #{tst_clip_forward.3} parent=1 // pred_check
      _
    $region39: #{tst_clip_forward.3} parent=1 // pred_check_branch
      %63 = sbr.rel (0) target = $region41
    $region40: #{tst_clip_forward.3} parent=1 // pred_region
      %65 = dma.done [#allocation6], 16
    $region41: #{tst_clip_forward.3} parent=1 // pred_fallthru
      _
    // Predicated region
    $region42: #{tst_clip_forward.3} parent=1 // pred_check
      _
    $region43: #{tst_clip_forward.3} parent=1 // pred_check_branch
      %67 = sbr.rel (0) target = $region45
    $region44: #{tst_clip_forward.3} parent=1 // pred_region
      %69 = dma.done [#allocation6], 16
    $region45: #{tst_clip_forward.3} parent=1 // pred_fallthru
      _
    %v71 = vld [vmem:[%s0] sm:$0xff]
    %v72 = vld [vmem:[%s0 + $0x8] sm:$0xff]
    %v73 = vpack.c.bf16 %v72, %v71
    %v74 = vld [vmem:[%s1] sm:$0xf]
    %v75 = vld [vmem:[%s1 + $0x4] sm:$0xf]
    %v76 = vld [vmem:[%s2] sm:$0x1]
    %v78 = vperm.slane %v76, 0
    %v82 = vunpack.c.l.b16 %v74
    %v83 = vunpack.c.l.b16 %v75
    %v84 = vpack.c.b16 %v83, %v82
    %vm86 = vcmask 130048
    %v88 = vsel %vm86, %v73, 0
    %90 = vmatpush.bf16.msra.mxu0 0
    %91 = vmatpush.bf16.msra.mxu0 0
    %92 = vmatpush.bf16.msra.mxu0 0
    %93 = vmatpush.bf16.msra.mxu0 0
    %94 = vmatpush.bf16.msra.mxu0 0
    %95 = vmatpush.bf16.msra.mxu0 0
    %96 = vmatpush.bf16.msra.mxu0 0
    %97 = vmatpush.bf16.msra.mxu0 %v84
    %98 = vmatmul.bf16.gmra.mxu0 %v88
    %v99 = vpop.f32.mrf.mxu0
    %v100 = vadd.f32 %v78, %v99
    %v101 = vpop.f32.mrf.mxu0
    %v102 = vadd.f32 %v78, %v101
    %103 = vdwg.mxu0
    %v104 = vld [vmem:[%s3] sm:$0xff]
    %v105 = vld [vmem:[%s3 + $0x8] sm:$0xff]
    %v106 = vld [vmem:[%s3 + $0x10] sm:$0xff]
    %v107 = vld [vmem:[%s3 + $0x18] sm:$0xff]
    %108 = vst [vmem:[#allocation2] sm:$0xff] %v104
    %109 = vst [vmem:[#allocation2 + $0x8] sm:$0xff] %v105
    %110 = vst [vmem:[#allocation2 + $0x10] sm:$0xff] %v106
    %111 = vst [vmem:[#allocation2 + $0x18] sm:$0xff] %v107
    %v112 = vld [vmem:[#allocation2] sm:$0xff]
    %v113 = vadd.f32 %v112, %v100
    %114 = vst [vmem:[#allocation2] sm:$0xff] %v113
    %v115 = vld [vmem:[#allocation2 + $0x10] sm:$0xff]
    %v116 = vadd.f32 %v115, %v102
    %117 = vst [vmem:[#allocation2 + $0x10] sm:$0xff] %v116
    %v118 = vld [vmem:[#allocation2] sm:$0xff]
    %v119 = vld [vmem:[#allocation2 + $0x8] sm:$0xff]
    %v120 = vld [vmem:[#allocation2 + $0x10] sm:$0xff]
    %v121 = vld [vmem:[#allocation2 + $0x18] sm:$0xff]
    %v122 = vpack.c.bf16 %v119, %v118
    %v123 = vpack.c.bf16 %v121, %v120
    %v124 = vld [vmem:[%s4] sm:$0xf]
    %v125 = vld [vmem:[%s4 + $0x4] sm:$0xf]
    %v126 = vld [vmem:[%s4 + $0x8] sm:$0xf]
    %v127 = vld [vmem:[%s4 + $0xc] sm:$0xf]
    %v128 = vld [vmem:[%s4 + $0x10] sm:$0xf]
    %v129 = vld [vmem:[%s4 + $0x14] sm:$0xf]
    %v130 = vld [vmem:[%s4 + $0x18] sm:$0xf]
    %v131 = vld [vmem:[%s4 + $0x1c] sm:$0xf]
    %v132 = vld [vmem:[%s4 + $0x20] sm:$0xf]
    %v133 = vld [vmem:[%s4 + $0x24] sm:$0xf]
    %v134 = vld [vmem:[%s4 + $0x28] sm:$0xf]
    %v135 = vld [vmem:[%s4 + $0x2c] sm:$0xf]
    %v136 = vld [vmem:[%s4 + $0x30] sm:$0xf]
    %v137 = vld [vmem:[%s4 + $0x34] sm:$0xf]
    %v138 = vld [vmem:[%s4 + $0x38] sm:$0xf]
    %v139 = vld [vmem:[%s4 + $0x3c] sm:$0xf]
    %v140 = vld [vmem:[#allocation3] sm:$0x1]
    %v142 = vperm.slane %v140, 0
    %v160 = vunpack.c.l.b16 %v124
    %v161 = vunpack.c.l.b16 %v125
    %v162 = vunpack.c.l.b16 %v126
    %v163 = vunpack.c.l.b16 %v127
    %v164 = vunpack.c.l.b16 %v128
    %v165 = vunpack.c.l.b16 %v129
    %v166 = vunpack.c.l.b16 %v130
    %v167 = vunpack.c.l.b16 %v131
    %v168 = vunpack.c.l.b16 %v132
    %v169 = vunpack.c.l.b16 %v133
    %v170 = vunpack.c.l.b16 %v134
    %v171 = vunpack.c.l.b16 %v135
    %v172 = vunpack.c.l.b16 %v136
    %v173 = vunpack.c.l.b16 %v137
    %v174 = vunpack.c.l.b16 %v138
    %v175 = vunpack.c.l.b16 %v139
    %v176 = vpack.c.b16 %v161, %v160
    %v177 = vpack.c.b16 %v163, %v162
    %v178 = vpack.c.b16 %v165, %v164
    %v179 = vpack.c.b16 %v167, %v166
    %v180 = vpack.c.b16 %v169, %v168
    %v181 = vpack.c.b16 %v171, %v170
    %v182 = vpack.c.b16 %v173, %v172
    %v183 = vpack.c.b16 %v175, %v174
    %192 = vmatpush.bf16.msra.mxu0 %v183
    %193 = vmatpush.bf16.msra.mxu0 %v182
    %194 = vmatpush.bf16.msra.mxu0 %v181
    %195 = vmatpush.bf16.msra.mxu0 %v180
    %196 = vmatpush.bf16.msra.mxu0 %v179
    %197 = vmatpush.bf16.msra.mxu0 %v178
    %198 = vmatpush.bf16.msra.mxu0 %v177
    %199 = vmatpush.bf16.msra.mxu0 %v176
    %200 = vmatmul.bf16.gmra.mxu0 %v122
    %v201 = vpop.f32.mrf.mxu0
    %v202 = vadd.f32 %v142, %v201
    %v203 = vpop.f32.mrf.mxu0
    %v204 = vadd.f32 %v142, %v203
    %205 = vmatmul.bf16.gmra.mxu0 %v123
    %v206 = vpop.f32.mrf.mxu0
    %v207 = vadd.f32 %v142, %v206
    %v208 = vpop.f32.mrf.mxu0
    %v209 = vadd.f32 %v142, %v208
    %210 = vdwg.mxu0
    %v211 = vld [vmem:[#allocation5] sm:$0x1]
    %v212 = vld [vmem:[#allocation7] sm:$0x1]
    %213 = vadd.xlane.f32.xlu0 %v202
    %v214 = vpop.xlane.xlu0 %213
    %215 = vadd.xlane.f32.xlu0 %v204
    %v216 = vpop.xlane.xlu0 %215
    %217 = vadd.xlane.f32.xlu0 %v207
    %v218 = vpop.xlane.xlu0 %217
    %219 = vadd.xlane.f32.xlu0 %v209
    %v220 = vpop.xlane.xlu0 %219
    %v221 = vrcp.pop 128.0
    %v222 = vmul.f32 128.0, %v221
    %v223 = vsub.f32 1.0, %v222
    %v224 = vmul.f32 %v221, %v223
    %v225 = vadd.f32 %v221, %v224
    %vm226 = vweird.f32 %v221
    %v227 = vsel %vm226, %v221, %v225
    %v228 = vmul.f32 %v214, %v227
    %v229 = vmul.f32 %v216, %v227
    %v230 = vmul.f32 %v218, %v227
    %v231 = vmul.f32 %v220, %v227
    %v232 = vsub.f32 %v202, %v228
    %v233 = vsub.f32 %v204, %v229
    %v234 = vsub.f32 %v207, %v230
    %v235 = vsub.f32 %v209, %v231
    %v236 = vmul.f32 %v232, %v232
    %v237 = vmul.f32 %v233, %v233
    %v238 = vmul.f32 %v234, %v234
    %v239 = vmul.f32 %v235, %v235
    %240 = vadd.xlane.f32.xlu0 %v236
    %v241 = vpop.xlane.xlu0 %240
    %242 = vadd.xlane.f32.xlu0 %v237
    %v243 = vpop.xlane.xlu0 %242
    %244 = vadd.xlane.f32.xlu0 %v238
    %v245 = vpop.xlane.xlu0 %244
    %246 = vadd.xlane.f32.xlu0 %v239
    %v247 = vpop.xlane.xlu0 %246
    %v248 = vmul.f32 %v241, %v227
    %v249 = vmul.f32 %v243, %v227
    %v250 = vmul.f32 %v245, %v227
    %v251 = vmul.f32 %v247, %v227
    %v252 = vadd.f32 %v248, 1e-05
    %v253 = vadd.f32 %v249, 1e-05
    %v254 = vadd.f32 %v250, 1e-05
    %v255 = vadd.f32 %v251, 1e-05
    %v256 = vrsqrt.pop %v252
    %v257 = vmul.f32 %v256, %v252
    %v258 = vmul.f32 %v257, %v256
    %v259 = vmul.f32 0.5, %v258
    %v260 = vsub.f32 1.5, %v259
    %v261 = vmul.f32 %v256, %v260
    %vm262 = vweird.f32 %v252
    %vm263 = vweird.f32 %v256
    %vm264 = vmor %vm262, %vm263
    %v265 = vsel %vm264, %v256, %v261
    %v266 = vrsqrt.pop %v253
    %v267 = vmul.f32 %v266, %v253
    %v268 = vmul.f32 %v267, %v266
    %v269 = vmul.f32 0.5, %v268
    %v270 = vsub.f32 1.5, %v269
    %v271 = vmul.f32 %v266, %v270
    %vm272 = vweird.f32 %v253
    %vm273 = vweird.f32 %v266
    %vm274 = vmor %vm272, %vm273
    %v275 = vsel %vm274, %v266, %v271
    %v276 = vrsqrt.pop %v254
    %v277 = vmul.f32 %v276, %v254
    %v278 = vmul.f32 %v277, %v276
    %v279 = vmul.f32 0.5, %v278
    %v280 = vsub.f32 1.5, %v279
    %v281 = vmul.f32 %v276, %v280
    %vm282 = vweird.f32 %v254
    %vm283 = vweird.f32 %v276
    %vm284 = vmor %vm282, %vm283
    %v285 = vsel %vm284, %v276, %v281
    %v286 = vrsqrt.pop %v255
    %v287 = vmul.f32 %v286, %v255
    %v288 = vmul.f32 %v287, %v286
    %v289 = vmul.f32 0.5, %v288
    %v290 = vsub.f32 1.5, %v289
    %v291 = vmul.f32 %v286, %v290
    %vm292 = vweird.f32 %v255
    %vm293 = vweird.f32 %v286
    %vm294 = vmor %vm292, %vm293
    %v295 = vsel %vm294, %v286, %v291
    %v296 = vmul.f32 %v232, %v265
    %v297 = vmul.f32 %v233, %v275
    %v298 = vmul.f32 %v234, %v285
    %v299 = vmul.f32 %v235, %v295
    %v301 = vperm.slane %v211, 0
    %v303 = vmul.f32 %v296, %v301
    %v304 = vmul.f32 %v297, %v301
    %v305 = vmul.f32 %v298, %v301
    %v306 = vmul.f32 %v299, %v301
    %v308 = vperm.slane %v212, 0
    %v310 = vadd.f32 %v303, %v308
    %v311 = vadd.f32 %v304, %v308
    %v312 = vadd.f32 %v305, %v308
    %v313 = vadd.f32 %v306, %v308
    %v314 = vmax.f32 %v310, 0.0
    %v315 = vmax.f32 %v311, 0.0
    %v316 = vmax.f32 %v312, 0.0
    %v317 = vmax.f32 %v313, 0.0
    %318 = vst [vmem:[%s8] sm:$0xff] %v314
    %319 = vst [vmem:[%s8 + $0x8] sm:$0xff] %v315
    %320 = vst [vmem:[%s8 + $0x10] sm:$0xff] %v316
    %321 = vst [vmem:[%s8 + $0x18] sm:$0xff] %v317
    // Predicated region
    $region46: #{tst_clip_forward.3} parent=1 // pred_check
      _
    $region47: #{tst_clip_forward.3} parent=1 // pred_check_branch
      %323 = sbr.rel (0) target = $region49
    $region48: #{tst_clip_forward.3} parent=1 // pred_region
      _
    $region49: #{tst_clip_forward.3} parent=1 // pred_fallthru
      _
    // Predicated region
    $region50: #{tst_clip_forward.3} parent=1 // pred_check
      _
    $region51: #{tst_clip_forward.3} parent=1 // pred_check_branch
      %325 = sbr.rel (0) target = $region53
    $region52: #{tst_clip_forward.3} parent=1 // pred_region
      _
    $region53: #{tst_clip_forward.3} parent=1 // pred_fallthru
      _
    %326 = vsyncpa [#allocation4], 1
    %327 = vsyncpa [#allocation6], 1

// kernel: tst_clip_forward.5
$region0: #{tst_clip_forward.5}
  #allocation0 [shape = 'u32[]', space=smem, size = 0x4, offset = 0x4, fixed_abs, tag = 'smem constant byte address 0x4 - core index']
  #allocation1 [shape = 'u32[72,128]{1,0:T(1,128)}', space=vmem, size = 0x9000, scoped, tag = 'internal scratch']
  #allocation2 [shape = 'f32[1,1]{1,0:T(1,128)S(1)}', space=vmem, size = 0x200, scoped, tag = 'scoped memory for tst_clip_forward.5']
  %s0 = inlined_call_operand.vmem [shape: f32[2,128], index: 0, kind: input, shape index: {}]
  %s1 = inlined_call_operand.vmem [shape: f32[2,512], index: 1, kind: input, shape index: {}]
  %s2 = inlined_call_operand.vmem [shape: bf16[512,128], index: 2, kind: input, shape index: {}]
  %s3 = inlined_call_operand.vmem [shape: f32[1,128], index: 3, kind: input, shape index: {}]
  %s4 = inlined_call_operand.<no memory space> [shape: f32[1,1], index: 4, kind: input, shape index: {}]
  %s5 = inlined_call_operand.vmem [shape: f32[2,2], index: 5, kind: output, shape index: {}]
  %s6 = sld [smem:[#allocation0]]
  $region30: #{tst_clip_forward.5} parent=0
    _
  %s8 = ssub.s32 1, %s6
  %s9 = scalar_select 0, %s8, %s6
  %v10 = vstv %s4
  %11 = vst [vmem:[#allocation2] sm:$0x1] %v10
  // Predicated region
  $region2: #{tst_clip_forward.5} parent=0 // pred_check
    _
  $region3: #{tst_clip_forward.5} parent=0 // pred_check_branch
    %13 = sbr.rel (0) target = $region5
  $region4: #{tst_clip_forward.5} parent=0 // pred_region
    _
  $region5: #{tst_clip_forward.5} parent=0 // pred_fallthru
    _
  // Predicated region
  $region6: #{tst_clip_forward.5} parent=0 // pred_check
    _
  $region7: #{tst_clip_forward.5} parent=0 // pred_check_branch
    %15 = sbr.rel (0) target = $region9
  $region8: #{tst_clip_forward.5} parent=0 // pred_region
    _
  $region9: #{tst_clip_forward.5} parent=0 // pred_fallthru
    _
  // Predicated region
  $region10: #{tst_clip_forward.5} parent=0 // pred_check
    _
  $region11: #{tst_clip_forward.5} parent=0 // pred_check_branch
    %17 = sbr.rel (0) target = $region13
  $region12: #{tst_clip_forward.5} parent=0 // pred_region
    _
  $region13: #{tst_clip_forward.5} parent=0 // pred_fallthru
    _
  // Predicated region
  $region14: #{tst_clip_forward.5} parent=0 // pred_check
    _
  $region15: #{tst_clip_forward.5} parent=0 // pred_check_branch
    %19 = sbr.rel (0) target = $region17
  $region16: #{tst_clip_forward.5} parent=0 // pred_region
    _
  $region17: #{tst_clip_forward.5} parent=0 // pred_fallthru
    _
  // Predicated region
  $region18: #{tst_clip_forward.5} parent=0 // pred_check
    _
  $region19: #{tst_clip_forward.5} parent=0 // pred_check_branch
    %21 = sbr.rel (0) target = $region21
  $region20: #{tst_clip_forward.5} parent=0 // pred_region
    _
  $region21: #{tst_clip_forward.5} parent=0 // pred_fallthru
    _
  %v22 = vld [vmem:[%s0] sm:$0x3]
  %v23 = vmul.f32 %v22, %v22
  %vm24 = vcmask 1041408
  %v25 = vsel %vm24, %v23, 0.0
  %26 = vadd.xlane.f32.xlu0 %v25
  %v27 = vpop.xlane.xlu0 %26
  %v28 = vrsqrt.pop %v27
  %v29 = vmul.f32 %v28, %v27
  %v30 = vmul.f32 %v29, %v28
  %v31 = vmul.f32 0.5, %v30
  %v32 = vsub.f32 1.5, %v31
  %v33 = vmul.f32 %v28, %v32
  %vm34 = vweird.f32 %v27
  %vm35 = vweird.f32 %v28
  %vm36 = vmor %vm34, %vm35
  %v37 = vsel %vm36, %v28, %v33
  %v38 = vmul.f32 %v22, %v37
  %v39 = vld [vmem:[%s1] sm:$0xff]
  %41 = vst [vmem:[#allocation1] ss:$4 sm:$0xff] %v39
  %v42 = vld.sshfl [vmem:[#allocation1] sm:$0xff pattern:$0x73625140]
  %v43 = vld.sshfl [vmem:[#allocation1 + $0x8] sm:$0xff pattern:$0x73625140]
  %v44 = vld.sshfl [vmem:[#allocation1 + $0x10] sm:$0xff pattern:$0x73625140]
  %v45 = vld.sshfl [vmem:[#allocation1 + $0x18] sm:$0xff pattern:$0x73625140]
  %v50 = vpack.c.bf16 %v42, %v42
  %v51 = vpack.c.bf16 %v43, %v43
  %v52 = vpack.c.bf16 %v44, %v44
  %v53 = vpack.c.bf16 %v45, %v45
  %v54 = vld [vmem:[%s2] sm:$0xf]
  %v55 = vld [vmem:[%s2 + $0x4] sm:$0xf]
  %v56 = vld [vmem:[%s2 + $0x8] sm:$0xf]
  %v57 = vld [vmem:[%s2 + $0xc] sm:$0xf]
  %v58 = vld [vmem:[%s2 + $0x10] sm:$0xf]
  %v59 = vld [vmem:[%s2 + $0x14] sm:$0xf]
  %v60 = vld [vmem:[%s2 + $0x18] sm:$0xf]
  %v61 = vld [vmem:[%s2 + $0x1c] sm:$0xf]
  %v62 = vld [vmem:[%s2 + $0x20] sm:$0xf]
  %v63 = vld [vmem:[%s2 + $0x24] sm:$0xf]
  %v64 = vld [vmem:[%s2 + $0x28] sm:$0xf]
  %v65 = vld [vmem:[%s2 + $0x2c] sm:$0xf]
  %v66 = vld [vmem:[%s2 + $0x30] sm:$0xf]
  %v67 = vld [vmem:[%s2 + $0x34] sm:$0xf]
  %v68 = vld [vmem:[%s2 + $0x38] sm:$0xf]
  %v69 = vld [vmem:[%s2 + $0x3c] sm:$0xf]
  %v70 = vld [vmem:[%s2 + $0x40] sm:$0xf]
  %v71 = vld [vmem:[%s2 + $0x44] sm:$0xf]
  %v72 = vld [vmem:[%s2 + $0x48] sm:$0xf]
  %v73 = vld [vmem:[%s2 + $0x4c] sm:$0xf]
  %v74 = vld [vmem:[%s2 + $0x50] sm:$0xf]
  %v75 = vld [vmem:[%s2 + $0x54] sm:$0xf]
  %v76 = vld [vmem:[%s2 + $0x58] sm:$0xf]
  %v77 = vld [vmem:[%s2 + $0x5c] sm:$0xf]
  %v78 = vld [vmem:[%s2 + $0x60] sm:$0xf]
  %v79 = vld [vmem:[%s2 + $0x64] sm:$0xf]
  %v80 = vld [vmem:[%s2 + $0x68] sm:$0xf]
  %v81 = vld [vmem:[%s2 + $0x6c] sm:$0xf]
  %v82 = vld [vmem:[%s2 + $0x70] sm:$0xf]
  %v83 = vld [vmem:[%s2 + $0x74] sm:$0xf]
  %v84 = vld [vmem:[%s2 + $0x78] sm:$0xf]
  %v85 = vld [vmem:[%s2 + $0x7c] sm:$0xf]
  %v86 = vld [vmem:[%s2 + $0x80] sm:$0xf]
  %v87 = vld [vmem:[%s2 + $0x84] sm:$0xf]
  %v88 = vld [vmem:[%s2 + $0x88] sm:$0xf]
  %v89 = vld [vmem:[%s2 + $0x8c] sm:$0xf]
  %v90 = vld [vmem:[%s2 + $0x90] sm:$0xf]
  %v91 = vld [vmem:[%s2 + $0x94] sm:$0xf]
  %v92 = vld [vmem:[%s2 + $0x98] sm:$0xf]
  %v93 = vld [vmem:[%s2 + $0x9c] sm:$0xf]
  %v94 = vld [vmem:[%s2 + $0xa0] sm:$0xf]
  %v95 = vld [vmem:[%s2 + $0xa4] sm:$0xf]
  %v96 = vld [vmem:[%s2 + $0xa8] sm:$0xf]
  %v97 = vld [vmem:[%s2 + $0xac] sm:$0xf]
  %v98 = vld [vmem:[%s2 + $0xb0] sm:$0xf]
  %v99 = vld [vmem:[%s2 + $0xb4] sm:$0xf]
  %v100 = vld [vmem:[%s2 + $0xb8] sm:$0xf]
  %v101 = vld [vmem:[%s2 + $0xbc] sm:$0xf]
  %v102 = vld [vmem:[%s2 + $0xc0] sm:$0xf]
  %v103 = vld [vmem:[%s2 + $0xc4] sm:$0xf]
  %v104 = vld [vmem:[%s2 + $0xc8] sm:$0xf]
  %v105 = vld [vmem:[%s2 + $0xcc] sm:$0xf]
  %v106 = vld [vmem:[%s2 + $0xd0] sm:$0xf]
  %v107 = vld [vmem:[%s2 + $0xd4] sm:$0xf]
  %v108 = vld [vmem:[%s2 + $0xd8] sm:$0xf]
  %v109 = vld [vmem:[%s2 + $0xdc] sm:$0xf]
  %v110 = vld [vmem:[%s2 + $0xe0] sm:$0xf]
  %v111 = vld [vmem:[%s2 + $0xe4] sm:$0xf]
  %v112 = vld [vmem:[%s2 + $0xe8] sm:$0xf]
  %v113 = vld [vmem:[%s2 + $0xec] sm:$0xf]
  %v114 = vld [vmem:[%s2 + $0xf0] sm:$0xf]
  %v115 = vld [vmem:[%s2 + $0xf4] sm:$0xf]
  %v116 = vld [vmem:[%s2 + $0xf8] sm:$0xf]
  %v117 = vld [vmem:[%s2 + $0xfc] sm:$0xf]
  %v118 = vld [vmem:[%s3] sm:$0x1]
  %v120 = vperm.slane %v118, 0
  %v186 = vunpack.c.l.b16 %v54
  %v187 = vunpack.c.l.b16 %v55
  %v188 = vunpack.c.l.b16 %v56
  %v189 = vunpack.c.l.b16 %v57
  %v190 = vunpack.c.l.b16 %v58
  %v191 = vunpack.c.l.b16 %v59
  %v192 = vunpack.c.l.b16 %v60
  %v193 = vunpack.c.l.b16 %v61
  %v194 = vunpack.c.l.b16 %v62
  %v195 = vunpack.c.l.b16 %v63
  %v196 = vunpack.c.l.b16 %v64
  %v197 = vunpack.c.l.b16 %v65
  %v198 = vunpack.c.l.b16 %v66
  %v199 = vunpack.c.l.b16 %v67
  %v200 = vunpack.c.l.b16 %v68
  %v201 = vunpack.c.l.b16 %v69
  %v202 = vunpack.c.l.b16 %v70
  %v203 = vunpack.c.l.b16 %v71
  %v204 = vunpack.c.l.b16 %v72
  %v205 = vunpack.c.l.b16 %v73
  %v206 = vunpack.c.l.b16 %v74
  %v207 = vunpack.c.l.b16 %v75
  %v208 = vunpack.c.l.b16 %v76
  %v209 = vunpack.c.l.b16 %v77
  %v210 = vunpack.c.l.b16 %v78
  %v211 = vunpack.c.l.b16 %v79
  %v212 = vunpack.c.l.b16 %v80
  %v213 = vunpack.c.l.b16 %v81
  %v214 = vunpack.c.l.b16 %v82
  %v215 = vunpack.c.l.b16 %v83
  %v216 = vunpack.c.l.b16 %v84
  %v217 = vunpack.c.l.b16 %v85
  %v218 = vunpack.c.l.b16 %v86
  %v219 = vunpack.c.l.b16 %v87
  %v220 = vunpack.c.l.b16 %v88
  %v221 = vunpack.c.l.b16 %v89
  %v222 = vunpack.c.l.b16 %v90
  %v223 = vunpack.c.l.b16 %v91
  %v224 = vunpack.c.l.b16 %v92
  %v225 = vunpack.c.l.b16 %v93
  %v226 = vunpack.c.l.b16 %v94
  %v227 = vunpack.c.l.b16 %v95
  %v228 = vunpack.c.l.b16 %v96
  %v229 = vunpack.c.l.b16 %v97
  %v230 = vunpack.c.l.b16 %v98
  %v231 = vunpack.c.l.b16 %v99
  %v232 = vunpack.c.l.b16 %v100
  %v233 = vunpack.c.l.b16 %v101
  %v234 = vunpack.c.l.b16 %v102
  %v235 = vunpack.c.l.b16 %v103
  %v236 = vunpack.c.l.b16 %v104
  %v237 = vunpack.c.l.b16 %v105
  %v238 = vunpack.c.l.b16 %v106
  %v239 = vunpack.c.l.b16 %v107
  %v240 = vunpack.c.l.b16 %v108
  %v241 = vunpack.c.l.b16 %v109
  %v242 = vunpack.c.l.b16 %v110
  %v243 = vunpack.c.l.b16 %v111
  %v244 = vunpack.c.l.b16 %v112
  %v245 = vunpack.c.l.b16 %v113
  %v246 = vunpack.c.l.b16 %v114
  %v247 = vunpack.c.l.b16 %v115
  %v248 = vunpack.c.l.b16 %v116
  %v249 = vunpack.c.l.b16 %v117
  %v250 = vpack.c.b16 %v187, %v186
  %v251 = vpack.c.b16 %v189, %v188
  %v252 = vpack.c.b16 %v191, %v190
  %v253 = vpack.c.b16 %v193, %v192
  %v254 = vpack.c.b16 %v195, %v194
  %v255 = vpack.c.b16 %v197, %v196
  %v256 = vpack.c.b16 %v199, %v198
  %v257 = vpack.c.b16 %v201, %v200
  %v258 = vpack.c.b16 %v203, %v202
  %v259 = vpack.c.b16 %v205, %v204
  %v260 = vpack.c.b16 %v207, %v206
  %v261 = vpack.c.b16 %v209, %v208
  %v262 = vpack.c.b16 %v211, %v210
  %v263 = vpack.c.b16 %v213, %v212
  %v264 = vpack.c.b16 %v215, %v214
  %v265 = vpack.c.b16 %v217, %v216
  %v266 = vpack.c.b16 %v219, %v218
  %v267 = vpack.c.b16 %v221, %v220
  %v268 = vpack.c.b16 %v223, %v222
  %v269 = vpack.c.b16 %v225, %v224
  %v270 = vpack.c.b16 %v227, %v226
  %v271 = vpack.c.b16 %v229, %v228
  %v272 = vpack.c.b16 %v231, %v230
  %v273 = vpack.c.b16 %v233, %v232
  %v274 = vpack.c.b16 %v235, %v234
  %v275 = vpack.c.b16 %v237, %v236
  %v276 = vpack.c.b16 %v239, %v238
  %v277 = vpack.c.b16 %v241, %v240
  %v278 = vpack.c.b16 %v243, %v242
  %v279 = vpack.c.b16 %v245, %v244
  %v280 = vpack.c.b16 %v247, %v246
  %v281 = vpack.c.b16 %v249, %v248
  %314 = vmatpush.bf16.msra.mxu0 %v257
  %315 = vmatpush.bf16.msra.mxu0 %v256
  %316 = vmatpush.bf16.msra.mxu0 %v255
  %317 = vmatpush.bf16.msra.mxu0 %v254
  %318 = vmatpush.bf16.msra.mxu0 %v253
  %319 = vmatpush.bf16.msra.mxu0 %v252
  %320 = vmatpush.bf16.msra.mxu0 %v251
  %321 = vmatpush.bf16.msra.mxu0 %v250
  %322 = vmatmul.bf16.gmra.mxu0 %v50
  %v323 = vpop.f32.mrf.mxu0
  %v324 = vadd.f32 %v120, %v323
  %v325 = vpop.f32.mrf.mxu0
  %326 = vdwg.mxu0
  %327 = vmatpush.bf16.msra.mxu0 %v265
  %328 = vmatpush.bf16.msra.mxu0 %v264
  %329 = vmatpush.bf16.msra.mxu0 %v263
  %330 = vmatpush.bf16.msra.mxu0 %v262
  %331 = vmatpush.bf16.msra.mxu0 %v261
  %332 = vmatpush.bf16.msra.mxu0 %v260
  %333 = vmatpush.bf16.msra.mxu0 %v259
  %334 = vmatpush.bf16.msra.mxu0 %v258
  %335 = vmatmul.bf16.gmra.mxu0 %v51
  %v336 = vpop.f32.mrf.mxu0
  %v337 = vadd.f32 %v324, %v336
  %v338 = vpop.f32.mrf.mxu0
  %339 = vdwg.mxu0
  %340 = vmatpush.bf16.msra.mxu0 %v273
  %341 = vmatpush.bf16.msra.mxu0 %v272
  %342 = vmatpush.bf16.msra.mxu0 %v271
  %343 = vmatpush.bf16.msra.mxu0 %v270
  %344 = vmatpush.bf16.msra.mxu0 %v269
  %345 = vmatpush.bf16.msra.mxu0 %v268
  %346 = vmatpush.bf16.msra.mxu0 %v267
  %347 = vmatpush.bf16.msra.mxu0 %v266
  %348 = vmatmul.bf16.gmra.mxu0 %v52
  %v349 = vpop.f32.mrf.mxu0
  %v350 = vadd.f32 %v337, %v349
  %v351 = vpop.f32.mrf.mxu0
  %352 = vdwg.mxu0
  %353 = vmatpush.bf16.msra.mxu0 %v281
  %354 = vmatpush.bf16.msra.mxu0 %v280
  %355 = vmatpush.bf16.msra.mxu0 %v279
  %356 = vmatpush.bf16.msra.mxu0 %v278
  %357 = vmatpush.bf16.msra.mxu0 %v277
  %358 = vmatpush.bf16.msra.mxu0 %v276
  %359 = vmatpush.bf16.msra.mxu0 %v275
  %360 = vmatpush.bf16.msra.mxu0 %v274
  %361 = vmatmul.bf16.gmra.mxu0 %v53
  %v362 = vpop.f32.mrf.mxu0
  %v363 = vadd.f32 %v350, %v362
  %v364 = vpop.f32.mrf.mxu0
  %365 = vdwg.mxu0
  %v366 = vmul.f32 %v363, %v363
  %v367 = vsel %vm24, %v366, 0.0
  %368 = vadd.xlane.f32.xlu0 %v367
  %v369 = vpop.xlane.xlu0 %368
  %v370 = vrsqrt.pop %v369
  %v371 = vmul.f32 %v370, %v369
  %v372 = vmul.f32 %v371, %v370
  %v373 = vmul.f32 0.5, %v372
  %v374 = vsub.f32 1.5, %v373
  %v375 = vmul.f32 %v370, %v374
  %vm376 = vweird.f32 %v369
  %vm377 = vweird.f32 %v370
  %vm378 = vmor %vm376, %vm377
  %v379 = vsel %vm378, %v370, %v375
  %v380 = vmul.f32 %v363, %v379
  %v381 = vld [vmem:[#allocation2] sm:$0x1]
  %v382 = vmul.f32 %v381, 1.442695
  %v383 = vpow.pop %v382
  %384 = vmatpush.xpose.msra.mxu0 0.0
  %385 = vmatpush.xpose.msra.mxu0 0.0
  %386 = vmatpush.xpose.msra.mxu0 0.0
  %387 = vmatpush.xpose.msra.mxu0 0.0
  %388 = vmatpush.xpose.msra.mxu0 0.0
  %389 = vmatpush.xpose.msra.mxu0 0.0
  %390 = vmatpush.xpose.msra.mxu0 0.0
  %391 = vmatpush.xpose.msra.mxu0 0.0
  %392 = vmatpush.xpose.msra.mxu0 0.0
  %393 = vmatpush.xpose.msra.mxu0 0.0
  %394 = vmatpush.xpose.msra.mxu0 0.0
  %395 = vmatpush.xpose.msra.mxu0 0.0
  %396 = vmatpush.xpose.msra.mxu0 0.0
  %397 = vmatpush.xpose.msra.mxu0 0.0
  %398 = vmatpush.xpose.msra.mxu0 0.0
  %399 = vmatpush.xpose.msra.mxu0 %v380
  %400 = vmatmul.f32.gmra.mxu0 %v38
  %v401 = vpop.f32.mrf.mxu0
  %v402 = vadd.f32 0.0, %v401
  %403 = vdwg.mxu0
  %v405 = vperm.slane %v383, 0
  %406 = vset.pattern.permute.xlu0 0
  %407 = vperm.xlu0 %406, %v405
  %v408 = vpop.permute.xlu0 %407
  %v410 = vmul.f32 %v408, %v402
  %vm411 = vcmask 9216
  %412 = vst.msk [vmem:[%s5] sm:$0x3] %vm411, %v410
  // Predicated region
  $region22: #{tst_clip_forward.5} parent=0 // pred_check
    _
  $region23: #{tst_clip_forward.5} parent=0 // pred_check_branch
    %414 = sbr.rel (0) target = $region25
  $region24: #{tst_clip_forward.5} parent=0 // pred_region
    _
  $region25: #{tst_clip_forward.5} parent=0 // pred_fallthru
    _
  // Predicated region
  $region26: #{tst_clip_forward.5} parent=0 // pred_check
    _
  $region27: #{tst_clip_forward.5} parent=0 // pred_check_branch
    %416 = sbr.rel (0) target = $region29
  $region28: #{tst_clip_forward.5} parent=0 // pred_region
    _
  $region29: #{tst_clip_forward.5} parent=0 // pred_fallthru
    _

// kernel: tst_clip_forward.4
$region0: #{tst_clip_forward.4}
  #allocation0 [shape = 'u32[]', space=smem, size = 0x4, offset = 0x4, fixed_abs, tag = 'smem constant byte address 0x4 - core index']
  #allocation1 [shape = 'u32[72,128]{1,0:T(1,128)}', space=vmem, size = 0x9000, scoped, tag = 'internal scratch']
  #allocation2 [shape = 'f32[32,128]{1,0:T(8,128)}', space=vmem, size = 0x4000, scoped, tag = 'scratch operand']
  %s0 = inlined_call_operand.vmem [shape: f32[32,128], index: 0, kind: input, shape index: {}, may-alias: {0,12}]
  %s1 = inlined_call_operand.vmem [shape: f32[2,1,128], index: 1, kind: input, shape index: {}]
  %s2 = inlined_call_operand.vmem [shape: f32[2,1,128], index: 2, kind: input, shape index: {}]
  %s3 = inlined_call_operand.hbm [shape: bf16[2,128,384], index: 3, kind: input, shape index: {}]
  %s4 = inlined_call_operand.hbm [shape: bf16[2,128,128], index: 4, kind: input, shape index: {}]
  %s5 = inlined_call_operand.vmem [shape: f32[2,1,128], index: 5, kind: input, shape index: {}]
  %s6 = inlined_call_operand.vmem [shape: f32[2,1,128], index: 6, kind: input, shape index: {}]
  %s7 = inlined_call_operand.vmem [shape: f32[2,1,128], index: 7, kind: input, shape index: {}]
  %s8 = inlined_call_operand.hbm [shape: bf16[2,128,256], index: 8, kind: input, shape index: {}]
  %s9 = inlined_call_operand.vmem [shape: f32[2,1,256], index: 9, kind: input, shape index: {}]
  %s10 = inlined_call_operand.hbm [shape: bf16[2,256,128], index: 10, kind: input, shape index: {}]
  %s11 = inlined_call_operand.vmem [shape: f32[2,1,128], index: 11, kind: input, shape index: {}]
  %s12 = inlined_call_operand.vmem [shape: f32[32,128], index: 12, kind: output, shape index: {}, may-alias: {0,12}]
  %s13 = sld [smem:[#allocation0]]
  $region101: #{tst_clip_forward.4} parent=0
    _
  %s15 = ssub.s32 1, %s13
  %s16 = scalar_select 0, %s15, %s13
  $region1: #{tst_clip_forward.4} parent=0
    #allocation3 [shape = 'u8[196608]{0}', space=vmem, size = 0x30000, scoped, tag = 'input window, operand 3']
    #allocation4 [shape = 's32[2]{0}', space=sflag, size = 0x8, scoped, tag = 'scoped memory for tst_clip_forward.4']
    #allocation5 [shape = 'u8[65536]{0}', space=vmem, size = 0x10000, scoped, tag = 'input window, operand 4']
    #allocation6 [shape = 's32[2]{0}', space=sflag, size = 0x8, scoped, tag = 'scoped memory for tst_clip_forward.4']
    #allocation7 [shape = 'u8[131072]{0}', space=vmem, size = 0x20000, scoped, tag = 'input window, operand 8']
    #allocation8 [shape = 'u8[131072]{0}', space=vmem, size = 0x20000, scoped, tag = 'input window, operand 10']
    #allocation9 [shape = 's32[2]{0}', space=sflag, size = 0x8, scoped, tag = 'scoped memory for tst_clip_forward.4']
    %17 = vsyncpa [#allocation4], 0
    %s18 = scalar_lea.sflag [#allocation4], 1
    %19 = vsyncpa %s18, 0
    %20 = vsyncpa [#allocation6], 0
    %s21 = scalar_lea.sflag [#allocation6], 1
    %22 = vsyncpa %s21, 0
    %23 = vsyncpa [#allocation9], 0
    %s24 = scalar_lea.sflag [#allocation9], 1
    %25 = vsyncpa %s24, 0
    loop: start=0, step=1, limit=4
    $region2: #{tst_clip_forward.4} parent=1 // loop_pre_header
      _
    $region3: #{tst_clip_forward.4} parent=1 // loop_header
      %s27 = sphi 0, %s31
      %p28 = scmp.ge.s32.totalorder %s27, 4
      %s34 = sphi 0, %s46
      %s35 = sphi 0, %s42
      %s36 = sphi 0, %s34
      %s37 = sphi 0, %s35
      %s38 = sphi 0, %s36
      %s39 = sphi 0, %s37
      %s49 = sphi 0, %s51
      %s52 = sphi 0, %s49
      %s53 = sphi 0, %s52
      %s69 = sphi 0, %s53
      %s75 = sphi 0, %s77
      %s78 = sphi 0, %s75
      %s79 = sphi 0, %s78
      %s95 = sphi 0, %s79
      %s101 = sphi 0, %s103
      %s104 = sphi 0, %s101
      %s105 = sphi 0, %s104
      %s121 = sphi 0, %s105
      %s127 = sphi 0, %s129
      %s130 = sphi 0, %s127
      %s131 = sphi 0, %s130
      %s147 = sphi 0, %s131
      %s153 = sphi 0, %s155
      %s156 = sphi 0, %s153
      %s157 = sphi 0, %s156
      %s173 = sphi 0, %s157
      %s179 = sphi 0, %s181
      %s182 = sphi 0, %s179
      %s183 = sphi 0, %s182
      %s199 = sphi 0, %s183
      %s205 = sphi 0, %s207
      %s208 = sphi 0, %s205
      %s209 = sphi 0, %s208
      %s225 = sphi 0, %s209
      %s231 = sphi 0, %s233
      %s234 = sphi 0, %s231
      %s235 = sphi 0, %s234
      %s251 = sphi 0, %s235
      %s257 = sphi 0, %s259
      %s260 = sphi 0, %s257
      %s261 = sphi 0, %s260
      %s277 = sphi 0, %s261
      %s283 = sphi 0, %s285
      %s286 = sphi 0, %s283
      %s287 = sphi 0, %s286
      %s303 = sphi 0, %s287
      %s309 = sphi 0, %s311
      %s312 = sphi 0, %s309
      %s313 = sphi 0, %s312
      %s329 = sphi 0, %s313
      %s335 = sphi 0, %s337
      %s338 = sphi 0, %s335
      %s339 = sphi 0, %s338
      %s355 = sphi 0, %s339
      %s361 = sphi 0, %s363
      %s364 = sphi 0, %s361
      %s365 = sphi 0, %s364
      %s381 = sphi 0, %s365
    $region4: #{tst_clip_forward.4} parent=1 // loop_header_branch
      %30 = sbr.rel (%p28) target = $region8
    $region5: #{tst_clip_forward.4} parent=1 // loop_body
      %s32 = ssub.s32 %s27, 1
      %s33 = ssub.s32 %s27, 2
      %s40 = sadd.s32 1, %s35
      %p41 = scmp.ge.s32.totalorder %s40, 2
      %s42 = scalar_select %p41, 0, %s40
      %s43 = sadd.s32 1, %s34
      %s44 = scalar_select %p41, %s43, %s34
      %p45 = scmp.ge.s32.totalorder %s44, 1
      %s46 = scalar_select %p45, 0, %s44
      %s47 = ssub.s32 %s34, %s46
      %p48 = scmp.eq.s32.totalorder %s47, 0
      %s50 = sadd.s32 %s49, 1
      %s51 = scalar_select %p48, %s49, %s50
      %p54 = pneg %p48
      %p55 = scmp.eq.s32.totalorder %s27, 1
      %p56 = por %p54, %p55
      %p57 = scmp.ne.s32.totalorder %s49, %s52
      %p58 = scmp.eq.s32.totalorder %s27, 0
      %p59 = por %p57, %p58
      %p60 = scmp.ne.s32.totalorder %s49, %s52
      %p61 = scmp.eq.s32.totalorder %s32, 1
      %p62 = por %p60, %p61
      %p63 = scmp.ne.s32.totalorder %s52, %s53
      %p64 = scmp.eq.s32.totalorder %s32, 0
      %p65 = por %p63, %p64
      %p66 = scmp.ne.s32.totalorder %s52, %s53
      %p67 = scmp.eq.s32.totalorder %s33, 1
      %p68 = por %p66, %p67
      %p70 = scmp.ne.s32.totalorder %s53, %s69
      %p71 = scmp.eq.s32.totalorder %s33, 0
      %p72 = por %p70, %p71
      %s73 = ssub.s32 %s35, %s42
      %p74 = scmp.eq.s32.totalorder %s73, 0
      %s76 = sadd.s32 %s75, 1
      %s77 = scalar_select %p74, %s75, %s76
      %p80 = pneg %p74
      %p81 = scmp.eq.s32.totalorder %s27, 1
      %p82 = por %p80, %p81
      %p83 = scmp.ne.s32.totalorder %s75, %s78
      %p84 = scmp.eq.s32.totalorder %s27, 0
      %p85 = por %p83, %p84
      %p86 = scmp.ne.s32.totalorder %s75, %s78
      %p87 = scmp.eq.s32.totalorder %s32, 1
      %p88 = por %p86, %p87
      %p89 = scmp.ne.s32.totalorder %s78, %s79
      %p90 = scmp.eq.s32.totalorder %s32, 0
      %p91 = por %p89, %p90
      %p92 = scmp.ne.s32.totalorder %s78, %s79
      %p93 = scmp.eq.s32.totalorder %s33, 1
      %p94 = por %p92, %p93
      %p96 = scmp.ne.s32.totalorder %s79, %s95
      %p97 = scmp.eq.s32.totalorder %s33, 0
      %p98 = por %p96, %p97
      %s99 = ssub.s32 %s35, %s42
      %p100 = scmp.eq.s32.totalorder %s99, 0
      %s102 = sadd.s32 %s101, 1
      %s103 = scalar_select %p100, %s101, %s102
      %p106 = pneg %p100
      %p107 = scmp.eq.s32.totalorder %s27, 1
      %p108 = por %p106, %p107
      %p109 = scmp.ne.s32.totalorder %s101, %s104
      %p110 = scmp.eq.s32.totalorder %s27, 0
      %p111 = por %p109, %p110
      %p112 = scmp.ne.s32.totalorder %s101, %s104
      %p113 = scmp.eq.s32.totalorder %s32, 1
      %p114 = por %p112, %p113
      %p115 = scmp.ne.s32.totalorder %s104, %s105
      %p116 = scmp.eq.s32.totalorder %s32, 0
      %p117 = por %p115, %p116
      %p118 = scmp.ne.s32.totalorder %s104, %s105
      %p119 = scmp.eq.s32.totalorder %s33, 1
      %p120 = por %p118, %p119
      %p122 = scmp.ne.s32.totalorder %s105, %s121
      %p123 = scmp.eq.s32.totalorder %s33, 0
      %p124 = por %p122, %p123
      %s125 = ssub.s32 %s35, %s42
      %p126 = scmp.eq.s32.totalorder %s125, 0
      %s128 = sadd.s32 %s127, 1
      %s129 = scalar_select %p126, %s127, %s128
      %p132 = pneg %p126
      %p133 = scmp.eq.s32.totalorder %s27, 1
      %p134 = por %p132, %p133
      %p135 = scmp.ne.s32.totalorder %s127, %s130
      %p136 = scmp.eq.s32.totalorder %s27, 0
      %p137 = por %p135, %p136
      %p138 = scmp.ne.s32.totalorder %s127, %s130
      %p139 = scmp.eq.s32.totalorder %s32, 1
      %p140 = por %p138, %p139
      %p141 = scmp.ne.s32.totalorder %s130, %s131
      %p142 = scmp.eq.s32.totalorder %s32, 0
      %p143 = por %p141, %p142
      %p144 = scmp.ne.s32.totalorder %s130, %s131
      %p145 = scmp.eq.s32.totalorder %s33, 1
      %p146 = por %p144, %p145
      %p148 = scmp.ne.s32.totalorder %s131, %s147
      %p149 = scmp.eq.s32.totalorder %s33, 0
      %p150 = por %p148, %p149
      %s151 = ssub.s32 %s35, %s42
      %p152 = scmp.eq.s32.totalorder %s151, 0
      %s154 = sadd.s32 %s153, 1
      %s155 = scalar_select %p152, %s153, %s154
      %p158 = pneg %p152
      %p159 = scmp.eq.s32.totalorder %s27, 1
      %p160 = por %p158, %p159
      %p161 = scmp.ne.s32.totalorder %s153, %s156
      %p162 = scmp.eq.s32.totalorder %s27, 0
      %p163 = por %p161, %p162
      %p164 = scmp.ne.s32.totalorder %s153, %s156
      %p165 = scmp.eq.s32.totalorder %s32, 1
      %p166 = por %p164, %p165
      %p167 = scmp.ne.s32.totalorder %s156, %s157
      %p168 = scmp.eq.s32.totalorder %s32, 0
      %p169 = por %p167, %p168
      %p170 = scmp.ne.s32.totalorder %s156, %s157
      %p171 = scmp.eq.s32.totalorder %s33, 1
      %p172 = por %p170, %p171
      %p174 = scmp.ne.s32.totalorder %s157, %s173
      %p175 = scmp.eq.s32.totalorder %s33, 0
      %p176 = por %p174, %p175
      %s177 = ssub.s32 %s35, %s42
      %p178 = scmp.eq.s32.totalorder %s177, 0
      %s180 = sadd.s32 %s179, 1
      %s181 = scalar_select %p178, %s179, %s180
      %p184 = pneg %p178
      %p185 = scmp.eq.s32.totalorder %s27, 1
      %p186 = por %p184, %p185
      %p187 = scmp.ne.s32.totalorder %s179, %s182
      %p188 = scmp.eq.s32.totalorder %s27, 0
      %p189 = por %p187, %p188
      %p190 = scmp.ne.s32.totalorder %s179, %s182
      %p191 = scmp.eq.s32.totalorder %s32, 1
      %p192 = por %p190, %p191
      %p193 = scmp.ne.s32.totalorder %s182, %s183
      %p194 = scmp.eq.s32.totalorder %s32, 0
      %p195 = por %p193, %p194
      %p196 = scmp.ne.s32.totalorder %s182, %s183
      %p197 = scmp.eq.s32.totalorder %s33, 1
      %p198 = por %p196, %p197
      %p200 = scmp.ne.s32.totalorder %s183, %s199
      %p201 = scmp.eq.s32.totalorder %s33, 0
      %p202 = por %p200, %p201
      %s203 = ssub.s32 %s35, %s42
      %p204 = scmp.eq.s32.totalorder %s203, 0
      %s206 = sadd.s32 %s205, 1
      %s207 = scalar_select %p204, %s205, %s206
      %p210 = pneg %p204
      %p211 = scmp.eq.s32.totalorder %s27, 1
      %p212 = por %p210, %p211
      %p213 = scmp.ne.s32.totalorder %s205, %s208
      %p214 = scmp.eq.s32.totalorder %s27, 0
      %p215 = por %p213, %p214
      %p216 = scmp.ne.s32.totalorder %s205, %s208
      %p217 = scmp.eq.s32.totalorder %s32, 1
      %p218 = por %p216, %p217
      %p219 = scmp.ne.s32.totalorder %s208, %s209
      %p220 = scmp.eq.s32.totalorder %s32, 0
      %p221 = por %p219, %p220
      %p222 = scmp.ne.s32.totalorder %s208, %s209
      %p223 = scmp.eq.s32.totalorder %s33, 1
      %p224 = por %p222, %p223
      %p226 = scmp.ne.s32.totalorder %s209, %s225
      %p227 = scmp.eq.s32.totalorder %s33, 0
      %p228 = por %p226, %p227
      %s229 = ssub.s32 %s35, %s42
      %p230 = scmp.eq.s32.totalorder %s229, 0
      %s232 = sadd.s32 %s231, 1
      %s233 = scalar_select %p230, %s231, %s232
      %p236 = pneg %p230
      %p237 = scmp.eq.s32.totalorder %s27, 1
      %p238 = por %p236, %p237
      %p239 = scmp.ne.s32.totalorder %s231, %s234
      %p240 = scmp.eq.s32.totalorder %s27, 0
      %p241 = por %p239, %p240
      %p242 = scmp.ne.s32.totalorder %s231, %s234
      %p243 = scmp.eq.s32.totalorder %s32, 1
      %p244 = por %p242, %p243
      %p245 = scmp.ne.s32.totalorder %s234, %s235
      %p246 = scmp.eq.s32.totalorder %s32, 0
      %p247 = por %p245, %p246
      %p248 = scmp.ne.s32.totalorder %s234, %s235
      %p249 = scmp.eq.s32.totalorder %s33, 1
      %p250 = por %p248, %p249
      %p252 = scmp.ne.s32.totalorder %s235, %s251
      %p253 = scmp.eq.s32.totalorder %s33, 0
      %p254 = por %p252, %p253
      %s255 = ssub.s32 %s35, %s42
      %p256 = scmp.eq.s32.totalorder %s255, 0
      %s258 = sadd.s32 %s257, 1
      %s259 = scalar_select %p256, %s257, %s258
      %p262 = pneg %p256
      %p263 = scmp.eq.s32.totalorder %s27, 1
      %p264 = por %p262, %p263
      %p265 = scmp.ne.s32.totalorder %s257, %s260
      %p266 = scmp.eq.s32.totalorder %s27, 0
      %p267 = por %p265, %p266
      %p268 = scmp.ne.s32.totalorder %s257, %s260
      %p269 = scmp.eq.s32.totalorder %s32, 1
      %p270 = por %p268, %p269
      %p271 = scmp.ne.s32.totalorder %s260, %s261
      %p272 = scmp.eq.s32.totalorder %s32, 0
      %p273 = por %p271, %p272
      %p274 = scmp.ne.s32.totalorder %s260, %s261
      %p275 = scmp.eq.s32.totalorder %s33, 1
      %p276 = por %p274, %p275
      %p278 = scmp.ne.s32.totalorder %s261, %s277
      %p279 = scmp.eq.s32.totalorder %s33, 0
      %p280 = por %p278, %p279
      %s281 = ssub.s32 %s35, %s42
      %p282 = scmp.eq.s32.totalorder %s281, 0
      %s284 = sadd.s32 %s283, 1
      %s285 = scalar_select %p282, %s283, %s284
      %p288 = pneg %p282
      %p289 = scmp.eq.s32.totalorder %s27, 1
      %p290 = por %p288, %p289
      %p291 = scmp.ne.s32.totalorder %s283, %s286
      %p292 = scmp.eq.s32.totalorder %s27, 0
      %p293 = por %p291, %p292
      %p294 = scmp.ne.s32.totalorder %s283, %s286
      %p295 = scmp.eq.s32.totalorder %s32, 1
      %p296 = por %p294, %p295
      %p297 = scmp.ne.s32.totalorder %s286, %s287
      %p298 = scmp.eq.s32.totalorder %s32, 0
      %p299 = por %p297, %p298
      %p300 = scmp.ne.s32.totalorder %s286, %s287
      %p301 = scmp.eq.s32.totalorder %s33, 1
      %p302 = por %p300, %p301
      %p304 = scmp.ne.s32.totalorder %s287, %s303
      %p305 = scmp.eq.s32.totalorder %s33, 0
      %p306 = por %p304, %p305
      %s307 = ssub.s32 %s35, %s42
      %p308 = scmp.eq.s32.totalorder %s307, 0
      %s310 = sadd.s32 %s309, 1
      %s311 = scalar_select %p308, %s309, %s310
      %p314 = pneg %p308
      %p315 = scmp.eq.s32.totalorder %s27, 1
      %p316 = por %p314, %p315
      %p317 = scmp.ne.s32.totalorder %s309, %s312
      %p318 = scmp.eq.s32.totalorder %s27, 0
      %p319 = por %p317, %p318
      %p320 = scmp.ne.s32.totalorder %s309, %s312
      %p321 = scmp.eq.s32.totalorder %s32, 1
      %p322 = por %p320, %p321
      %p323 = scmp.ne.s32.totalorder %s312, %s313
      %p324 = scmp.eq.s32.totalorder %s32, 0
      %p325 = por %p323, %p324
      %p326 = scmp.ne.s32.totalorder %s312, %s313
      %p327 = scmp.eq.s32.totalorder %s33, 1
      %p328 = por %p326, %p327
      %p330 = scmp.ne.s32.totalorder %s313, %s329
      %p331 = scmp.eq.s32.totalorder %s33, 0
      %p332 = por %p330, %p331
      %s333 = ssub.s32 %s35, %s42
      %p334 = scmp.eq.s32.totalorder %s333, 0
      %s336 = sadd.s32 %s335, 1
      %s337 = scalar_select %p334, %s335, %s336
      %p340 = pneg %p334
      %p341 = scmp.eq.s32.totalorder %s27, 1
      %p342 = por %p340, %p341
      %p343 = scmp.ne.s32.totalorder %s335, %s338
      %p344 = scmp.eq.s32.totalorder %s27, 0
      %p345 = por %p343, %p344
      %p346 = scmp.ne.s32.totalorder %s335, %s338
      %p347 = scmp.eq.s32.totalorder %s32, 1
      %p348 = por %p346, %p347
      %p349 = scmp.ne.s32.totalorder %s338, %s339
      %p350 = scmp.eq.s32.totalorder %s32, 0
      %p351 = por %p349, %p350
      %p352 = scmp.ne.s32.totalorder %s338, %s339
      %p353 = scmp.eq.s32.totalorder %s33, 1
      %p354 = por %p352, %p353
      %p356 = scmp.ne.s32.totalorder %s339, %s355
      %p357 = scmp.eq.s32.totalorder %s33, 0
      %p358 = por %p356, %p357
      %s359 = ssub.s32 %s34, %s46
      %p360 = scmp.eq.s32.totalorder %s359, 0
      %s362 = sadd.s32 %s361, 1
      %s363 = scalar_select %p360, %s361, %s362
      %p366 = pneg %p360
      %p367 = scmp.eq.s32.totalorder %s27, 1
      %p368 = por %p366, %p367
      %p369 = scmp.ne.s32.totalorder %s361, %s364
      %p370 = scmp.eq.s32.totalorder %s27, 0
      %p371 = por %p369, %p370
      %p372 = scmp.ne.s32.totalorder %s361, %s364
      %p373 = scmp.eq.s32.totalorder %s32, 1
      %p374 = por %p372, %p373
      %p375 = scmp.ne.s32.totalorder %s364, %s365
      %p376 = scmp.eq.s32.totalorder %s32, 0
      %p377 = por %p375, %p376
      %p378 = scmp.ne.s32.totalorder %s364, %s365
      %p379 = scmp.eq.s32.totalorder %s33, 1
      %p380 = por %p378, %p379
      %p382 = scmp.ne.s32.totalorder %s365, %s381
      %p383 = scmp.eq.s32.totalorder %s33, 0
      %p384 = por %p382, %p383
      %p385 = scmp.le.s32.totalorder 1, %s27
      %p386 = scmp.lt.s32.totalorder %s27, 3
      %p387 = pnand %p385, %p386
      %p388 = pneg %p387
      // Predicated region
      $region9: #{tst_clip_forward.4} parent=5 // pred_check
        _
      $region10: #{tst_clip_forward.4} parent=5 // pred_check_branch
        %390 = sbr.rel (%p387) target = $region12
      $region11: #{tst_clip_forward.4} parent=5 // pred_region
        %s391 = ssub.s32 %s27, 1
        // Predicated region
        $region13: #{tst_clip_forward.4} parent=11 // pred_check
          %p392 = pneg %p65
        $region14: #{tst_clip_forward.4} parent=11 // pred_check_branch
          %394 = sbr.rel (%p392) target = $region16
        $region15: #{tst_clip_forward.4} parent=11 // pred_region
          %s395 = smul.u32 4, %s36
          %p396 = scmp.lt.s32.totalorder %s395, 3
          %s397 = scalar_select %p396, %s395, 3
          %s398 = smul.addr %s397, 8
          %s399 = scalar_lea.vmem %s0, %s398
          %s400 = smul.u32 4, %s36
        $region16: #{tst_clip_forward.4} parent=11 // pred_fallthru
          _
      $region12: #{tst_clip_forward.4} parent=5 // pred_fallthru
        _
      %p401 = scmp.lt.s32.totalorder %s27, 2
      // Predicated region
      $region17: #{tst_clip_forward.4} parent=5 // pred_check
        %p402 = pneg %p401
      $region18: #{tst_clip_forward.4} parent=5 // pred_check_branch
        %404 = sbr.rel (%p402) target = $region20
      $region19: #{tst_clip_forward.4} parent=5 // pred_region
        // Predicated region
        $region21: #{tst_clip_forward.4} parent=19 // pred_check
          %p405 = pneg %p85
        $region22: #{tst_clip_forward.4} parent=19 // pred_check_branch
          %407 = sbr.rel (%p405) target = $region24
        $region23: #{tst_clip_forward.4} parent=19 // pred_region
          %p408 = scmp.lt.s32.totalorder %s35, 1
          %s409 = scalar_select %p408, %s35, 1
          %s410 = scalar_lea.vmem %s1, %s409
        $region24: #{tst_clip_forward.4} parent=19 // pred_fallthru
          _
        // Predicated region
        $region25: #{tst_clip_forward.4} parent=19 // pred_check
          %p411 = pneg %p111
        $region26: #{tst_clip_forward.4} parent=19 // pred_check_branch
          %413 = sbr.rel (%p411) target = $region28
        $region27: #{tst_clip_forward.4} parent=19 // pred_region
          %p414 = scmp.lt.s32.totalorder %s35, 1
          %s415 = scalar_select %p414, %s35, 1
          %s416 = scalar_lea.vmem %s2, %s415
        $region28: #{tst_clip_forward.4} parent=19 // pred_fallthru
          _
        // Predicated region
        $region29: #{tst_clip_forward.4} parent=19 // pred_check
          %p417 = pneg %p137
        $region30: #{tst_clip_forward.4} parent=19 // pred_check_branch
          %419 = sbr.rel (%p417) target = $region32
        $region31: #{tst_clip_forward.4} parent=19 // pred_region
          %s420 = sand.u32 %s127, 1
          %s421 = scalar_lea.sflag [#allocation4], %s420
          %s422 = sand.u32 %s127, 1
          %s423 = smul.addr %s422, 192
          %s424 = scalar_lea.vmem [#allocation3], %s423
          %426 = vsyncadd %s421, 0
          %s427 = smul.addr %s35, 48
          %s428 = smul.addr %s427, 4
          %s429 = scalar_lea.hbm %s3, %s428
          %s430 = sshll.u32 %s429, 4
          %s431 = int_to_ptr.hbm [resolvable:$true] %s430
          %s432 = sshll.u32 %s424, 4
          %s433 = int_to_ptr.vmem [resolvable:$true] %s432
          %438 = dma.hbm_to_vmem [thread:$0]  %s431, 3072, %s433, %s421, 192, 192, 12
        $region32: #{tst_clip_forward.4} parent=19 // pred_fallthru
          _
        // Predicated region
        $region33: #{tst_clip_forward.4} parent=19 // pred_check
          %p439 = pneg %p163
        $region34: #{tst_clip_forward.4} parent=19 // pred_check_branch
          %441 = sbr.rel (%p439) target = $region36
        $region35: #{tst_clip_forward.4} parent=19 // pred_region
          %s442 = sand.u32 %s27, 1
          %s443 = scalar_lea.sflag [#allocation6], %s442
          %s444 = sand.u32 %s153, 1
          %s445 = smul.addr %s444, 64
          %s446 = scalar_lea.vmem [#allocation5], %s445
          %448 = vsyncadd %s443, 0
          %s449 = smul.addr %s35, 16
          %s450 = smul.addr %s449, 4
          %s451 = scalar_lea.hbm %s4, %s450
          %s452 = sshll.u32 %s451, 4
          %s453 = int_to_ptr.hbm [resolvable:$true] %s452
          %s454 = sshll.u32 %s446, 4
          %s455 = int_to_ptr.vmem [resolvable:$true] %s454
          %460 = dma.hbm_to_vmem [thread:$0]  %s453, 1024, %s455, %s443, 64, 64, 4
        $region36: #{tst_clip_forward.4} parent=19 // pred_fallthru
          _
        // Predicated region
        $region37: #{tst_clip_forward.4} parent=19 // pred_check
          %p461 = pneg %p189
        $region38: #{tst_clip_forward.4} parent=19 // pred_check_branch
          %463 = sbr.rel (%p461) target = $region40
        $region39: #{tst_clip_forward.4} parent=19 // pred_region
          %p464 = scmp.lt.s32.totalorder %s35, 1
          %s465 = scalar_select %p464, %s35, 1
          %s466 = scalar_lea.vmem %s5, %s465
        $region40: #{tst_clip_forward.4} parent=19 // pred_fallthru
          _
        // Predicated region
        $region41: #{tst_clip_forward.4} parent=19 // pred_check
          %p467 = pneg %p215
        $region42: #{tst_clip_forward.4} parent=19 // pred_check_branch
          %469 = sbr.rel (%p467) target = $region44
        $region43: #{tst_clip_forward.4} parent=19 // pred_region
          %p470 = scmp.lt.s32.totalorder %s35, 1
          %s471 = scalar_select %p470, %s35, 1
          %s472 = scalar_lea.vmem %s6, %s471
        $region44: #{tst_clip_forward.4} parent=19 // pred_fallthru
          _
        // Predicated region
        $region45: #{tst_clip_forward.4} parent=19 // pred_check
          %p473 = pneg %p241
        $region46: #{tst_clip_forward.4} parent=19 // pred_check_branch
          %475 = sbr.rel (%p473) target = $region48
        $region47: #{tst_clip_forward.4} parent=19 // pred_region
          %p476 = scmp.lt.s32.totalorder %s35, 1
          %s477 = scalar_select %p476, %s35, 1
          %s478 = scalar_lea.vmem %s7, %s477
        $region48: #{tst_clip_forward.4} parent=19 // pred_fallthru
          _
        // Predicated region
        $region49: #{tst_clip_forward.4} parent=19 // pred_check
          %p479 = pneg %p267
        $region50: #{tst_clip_forward.4} parent=19 // pred_check_branch
          %481 = sbr.rel (%p479) target = $region52
        $region51: #{tst_clip_forward.4} parent=19 // pred_region
          %s482 = sand.u32 %s27, 1
          %s483 = scalar_lea.sflag [#allocation6], %s482
          %s484 = sand.u32 %s257, 1
          %s485 = smul.addr %s484, 128
          %s486 = scalar_lea.vmem [#allocation7], %s485
          %488 = vsyncadd %s483, 0
          %s489 = smul.addr %s35, 32
          %s490 = smul.addr %s489, 4
          %s491 = scalar_lea.hbm %s8, %s490
          %s492 = sshll.u32 %s491, 4
          %s493 = int_to_ptr.hbm [resolvable:$true] %s492
          %s494 = sshll.u32 %s486, 4
          %s495 = int_to_ptr.vmem [resolvable:$true] %s494
          %500 = dma.hbm_to_vmem [thread:$0]  %s493, 2048, %s495, %s483, 128, 128, 8
        $region52: #{tst_clip_forward.4} parent=19 // pred_fallthru
          _
        // Predicated region
        $region53: #{tst_clip_forward.4} parent=19 // pred_check
          %p501 = pneg %p293
        $region54: #{tst_clip_forward.4} parent=19 // pred_check_branch
          %503 = sbr.rel (%p501) target = $region56
        $region55: #{tst_clip_forward.4} parent=19 // pred_region
          %p504 = scmp.lt.s32.totalorder %s35, 1
          %s505 = scalar_select %p504, %s35, 1
          %s506 = smul.addr %s505, 2
          %s507 = scalar_lea.vmem %s9, %s506
        $region56: #{tst_clip_forward.4} parent=19 // pred_fallthru
          _
        // Predicated region
        $region57: #{tst_clip_forward.4} parent=19 // pred_check
          %p508 = pneg %p319
        $region58: #{tst_clip_forward.4} parent=19 // pred_check_branch
          %510 = sbr.rel (%p508) target = $region60
        $region59: #{tst_clip_forward.4} parent=19 // pred_region
          %s511 = sand.u32 %s309, 1
          %s512 = scalar_lea.sflag [#allocation9], %s511
          %s513 = sand.u32 %s309, 1
          %s514 = smul.addr %s513, 128
          %s515 = scalar_lea.vmem [#allocation8], %s514
          %517 = vsyncadd %s512, 0
          %s518 = smul.addr %s35, 32
          %s519 = smul.addr %s518, 4
          %s520 = scalar_lea.hbm %s10, %s519
          %s521 = sshll.u32 %s520, 4
          %s522 = int_to_ptr.hbm [resolvable:$true] %s521
          %s523 = sshll.u32 %s515, 4
          %s524 = int_to_ptr.vmem [resolvable:$true] %s523
          %529 = dma.hbm_to_vmem [thread:$0]  %s522, 2048, %s524, %s512, 64, 64, 4
        $region60: #{tst_clip_forward.4} parent=19 // pred_fallthru
          _
        // Predicated region
        $region61: #{tst_clip_forward.4} parent=19 // pred_check
          %p530 = pneg %p345
        $region62: #{tst_clip_forward.4} parent=19 // pred_check_branch
          %532 = sbr.rel (%p530) target = $region64
        $region63: #{tst_clip_forward.4} parent=19 // pred_region
          %p533 = scmp.lt.s32.totalorder %s35, 1
          %s534 = scalar_select %p533, %s35, 1
          %s535 = scalar_lea.vmem %s11, %s534
        $region64: #{tst_clip_forward.4} parent=19 // pred_fallthru
          _
      $region20: #{tst_clip_forward.4} parent=5 // pred_fallthru
        _
      %p536 = scmp.le.s32.totalorder 1, %s27
      %p537 = scmp.lt.s32.totalorder %s27, 3
      %p538 = pnand %p536, %p537
      %p539 = pneg %p538
      // Predicated region
      $region65: #{tst_clip_forward.4} parent=5 // pred_check
        _
      $region66: #{tst_clip_forward.4} parent=5 // pred_check_branch
        %541 = sbr.rel (%p538) target = $region68
      $region67: #{tst_clip_forward.4} parent=5 // pred_region
        %s542 = ssub.s32 %s27, 1
        %s543 = sand.u32 %s130, 1
        %s544 = scalar_lea.sflag [#allocation4], %s543
        %s545 = sand.u32 %s130, 1
        %s546 = smul.addr %s545, 192
        %s547 = scalar_lea.vmem [#allocation3], %s546
        // Predicated region
        $region69: #{tst_clip_forward.4} parent=67 // pred_check
          %p548 = pneg %p143
        $region70: #{tst_clip_forward.4} parent=67 // pred_check_branch
          %550 = sbr.rel (%p548) target = $region72
        $region71: #{tst_clip_forward.4} parent=67 // pred_region
          %552 = dma.done %s544, 3072
        $region72: #{tst_clip_forward.4} parent=67 // pred_fallthru
          _
        %s553 = sand.u32 %s32, 1
        %s554 = scalar_lea.sflag [#allocation6], %s553
        %s555 = sand.u32 %s156, 1
        %s556 = smul.addr %s555, 64
        %s557 = scalar_lea.vmem [#allocation5], %s556
        // Predicated region
        $region73: #{tst_clip_forward.4} parent=67 // pred_check
          %p558 = pneg %p169
        $region74: #{tst_clip_forward.4} parent=67 // pred_check_branch
          %560 = sbr.rel (%p558) target = $region76
        $region75: #{tst_clip_forward.4} parent=67 // pred_region
          %562 = dma.done %s554, 1024
        $region76: #{tst_clip_forward.4} parent=67 // pred_fallthru
          _
        %s563 = sand.u32 %s32, 1
        %s564 = scalar_lea.sflag [#allocation6], %s563
        %s565 = sand.u32 %s260, 1
        %s566 = smul.addr %s565, 128
        %s567 = scalar_lea.vmem [#allocation7], %s566
        // Predicated region
        $region77: #{tst_clip_forward.4} parent=67 // pred_check
          %p568 = pneg %p273
        $region78: #{tst_clip_forward.4} parent=67 // pred_check_branch
          %570 = sbr.rel (%p568) target = $region80
        $region79: #{tst_clip_forward.4} parent=67 // pred_region
          %572 = dma.done %s564, 2048
        $region80: #{tst_clip_forward.4} parent=67 // pred_fallthru
          _
        %s573 = sand.u32 %s312, 1
        %s574 = scalar_lea.sflag [#allocation9], %s573
        %s575 = sand.u32 %s312, 1
        %s576 = smul.addr %s575, 128
        %s577 = scalar_lea.vmem [#allocation8], %s576
        // Predicated region
        $region81: #{tst_clip_forward.4} parent=67 // pred_check
          %p578 = pneg %p325
        $region82: #{tst_clip_forward.4} parent=67 // pred_check_branch
          %580 = sbr.rel (%p578) target = $region84
        $region83: #{tst_clip_forward.4} parent=67 // pred_region
          %582 = dma.done %s574, 2048
        $region84: #{tst_clip_forward.4} parent=67 // pred_fallthru
          _
        %s583 = smul.u32 4, %s36
        %p584 = scmp.lt.s32.totalorder %s583, 3
        %s585 = scalar_select %p584, %s583, 3
        %s586 = smul.addr %s585, 8
        %s587 = scalar_lea.vmem %s0, %s586
        %p588 = pneg %p65
        %p589 = pneg %p62
        %p590 = scmp.lt.s32.totalorder %s37, 1
        %s591 = scalar_select %p590, %s37, 1
        %s592 = scalar_lea.vmem %s1, %s591
        %p593 = pneg %p91
        %p594 = pneg %p88
        %p595 = scmp.lt.s32.totalorder %s37, 1
        %s596 = scalar_select %p595, %s37, 1
        %s597 = scalar_lea.vmem %s2, %s596
        %p598 = pneg %p117
        %p599 = pneg %p114
        %s600 = sand.u32 %s130, 1
        %s601 = scalar_lea.sflag [#allocation4], %s600
        %s602 = sand.u32 %s130, 1
        %s603 = smul.addr %s602, 192
        %s604 = scalar_lea.vmem [#allocation3], %s603
        %p605 = pneg %p143
        %p606 = pneg %p140
        %s607 = sand.u32 %s32, 1
        %s608 = scalar_lea.sflag [#allocation6], %s607
        %s609 = sand.u32 %s156, 1
        %s610 = smul.addr %s609, 64
        %s611 = scalar_lea.vmem [#allocation5], %s610
        %p612 = pneg %p169
        %p613 = pneg %p166
        %p614 = scmp.lt.s32.totalorder %s37, 1
        %s615 = scalar_select %p614, %s37, 1
        %s616 = scalar_lea.vmem %s5, %s615
        %p617 = pneg %p195
        %p618 = pneg %p192
        %p619 = scmp.lt.s32.totalorder %s37, 1
        %s620 = scalar_select %p619, %s37, 1
        %s621 = scalar_lea.vmem %s6, %s620
        %p622 = pneg %p221
        %p623 = pneg %p218
        %p624 = scmp.lt.s32.totalorder %s37, 1
        %s625 = scalar_select %p624, %s37, 1
        %s626 = scalar_lea.vmem %s7, %s625
        %p627 = pneg %p247
        %p628 = pneg %p244
        %s629 = sand.u32 %s32, 1
        %s630 = scalar_lea.sflag [#allocation6], %s629
        %s631 = sand.u32 %s260, 1
        %s632 = smul.addr %s631, 128
        %s633 = scalar_lea.vmem [#allocation7], %s632
        %p634 = pneg %p273
        %p635 = pneg %p270
        %p636 = scmp.lt.s32.totalorder %s37, 1
        %s637 = scalar_select %p636, %s37, 1
        %s638 = smul.addr %s637, 2
        %s639 = scalar_lea.vmem %s9, %s638
        %p640 = pneg %p299
        %p641 = pneg %p296
        %s642 = sand.u32 %s312, 1
        %s643 = scalar_lea.sflag [#allocation9], %s642
        %s644 = sand.u32 %s312, 1
        %s645 = smul.addr %s644, 128
        %s646 = scalar_lea.vmem [#allocation8], %s645
        %p647 = pneg %p325
        %p648 = pneg %p322
        %p649 = scmp.lt.s32.totalorder %s37, 1
        %s650 = scalar_select %p649, %s37, 1
        %s651 = scalar_lea.vmem %s11, %s650
        %p652 = pneg %p351
        %p653 = pneg %p348
        %p654 = pneg %p377
        %p655 = pneg %p374
        %s656 = smul.u32 4, %s36
        %p657 = scmp.lt.s32.totalorder %s656, 3
        %s658 = scalar_select %p657, %s656, 3
        %s659 = smul.addr %s658, 8
        %s660 = scalar_lea.vmem %s12, %s659
        %s661 = smul.u32 4, %s36
        %p662 = scmp.lt.s32.totalorder %s661, 3
        %s663 = scalar_select %p662, %s661, 3
        %s664 = smul.addr %s663, 8
        %s665 = scalar_lea.vmem %s0, %s664
        %s666 = smul.u32 4, %s36
        %p667 = scmp.lt.s32.totalorder %s37, 1
        %s668 = scalar_select %p667, %s37, 1
        %s669 = scalar_lea.vmem %s1, %s668
        %p670 = scmp.lt.s32.totalorder %s37, 1
        %s671 = scalar_select %p670, %s37, 1
        %s672 = scalar_lea.vmem %s2, %s671
        %p673 = scmp.lt.s32.totalorder %s37, 1
        %s674 = scalar_select %p673, %s37, 1
        %s675 = scalar_lea.vmem %s5, %s674
        %p676 = scmp.lt.s32.totalorder %s37, 1
        %s677 = scalar_select %p676, %s37, 1
        %s678 = scalar_lea.vmem %s6, %s677
        %p679 = scmp.lt.s32.totalorder %s37, 1
        %s680 = scalar_select %p679, %s37, 1
        %s681 = scalar_lea.vmem %s7, %s680
        %p682 = scmp.lt.s32.totalorder %s37, 1
        %s683 = scalar_select %p682, %s37, 1
        %s684 = smul.addr %s683, 2
        %s685 = scalar_lea.vmem %s9, %s684
        %p686 = scmp.lt.s32.totalorder %s37, 1
        %s687 = scalar_select %p686, %s37, 1
        %s688 = scalar_lea.vmem %s11, %s687
        %s689 = smul.u32 4, %s36
        %p690 = scmp.lt.s32.totalorder %s689, 3
        %s691 = scalar_select %p690, %s689, 3
        %s692 = smul.addr %s691, 8
        %s693 = scalar_lea.vmem %s12, %s692
        %s694 = smul.u32 4, %s36
        %p696 = scmp.eq.s32.totalorder %s37, 0
        // Predicated region
        $region85: #{tst_clip_forward.4} parent=67 // pred_check
          %p697 = pneg %p696
        $region86: #{tst_clip_forward.4} parent=67 // pred_check_branch
          %699 = sbr.rel (%p697) target = $region88
        $region87: #{tst_clip_forward.4} parent=67 // pred_region
          %v700 = vld [vmem:[%s665] sm:$0xff]
          %v701 = vld [vmem:[%s665 + $0x8] sm:$0xff]
          %v702 = vld [vmem:[%s665 + $0x10] sm:$0xff]
          %v703 = vld [vmem:[%s665 + $0x18] sm:$0xff]
          %704 = vst [vmem:[%s693] sm:$0xff] %v700
          %705 = vst [vmem:[%s693 + $0x8] sm:$0xff] %v701
          %706 = vst [vmem:[%s693 + $0x10] sm:$0xff] %v702
          %707 = vst [vmem:[%s693 + $0x18] sm:$0xff] %v703
        $region88: #{tst_clip_forward.4} parent=67 // pred_fallthru
          _
        %v708 = vld [vmem:[%s693] sm:$0xff]
        %v709 = vld [vmem:[%s693 + $0x8] sm:$0xff]
        %v710 = vld [vmem:[%s693 + $0x10] sm:$0xff]
        %v711 = vld [vmem:[%s693 + $0x18] sm:$0xff]
        %v712 = vld [vmem:[%s669] sm:$0x1]
        %v713 = vld [vmem:[%s672] sm:$0x1]
        %714 = vadd.xlane.f32.xlu0 %v708
        %v715 = vpop.xlane.xlu0 %714
        %716 = vadd.xlane.f32.xlu0 %v709
        %v717 = vpop.xlane.xlu0 %716
        %718 = vadd.xlane.f32.xlu0 %v710
        %v719 = vpop.xlane.xlu0 %718
        %720 = vadd.xlane.f32.xlu0 %v711
        %v721 = vpop.xlane.xlu0 %720
        %v722 = vrcp.pop 128.0
        %v723 = vmul.f32 128.0, %v722
        %v724 = vsub.f32 1.0, %v723
        %v725 = vmul.f32 %v722, %v724
        %v726 = vadd.f32 %v722, %v725
        %vm727 = vweird.f32 %v722
        %v728 = vsel %vm727, %v722, %v726
        %v729 = vmul.f32 %v715, %v728
        %v730 = vmul.f32 %v717, %v728
        %v731 = vmul.f32 %v719, %v728
        %v732 = vmul.f32 %v721, %v728
        %v733 = vsub.f32 %v708, %v729
        %v734 = vsub.f32 %v709, %v730
        %v735 = vsub.f32 %v710, %v731
        %v736 = vsub.f32 %v711, %v732
        %v737 = vmul.f32 %v733, %v733
        %v738 = vmul.f32 %v734, %v734
        %v739 = vmul.f32 %v735, %v735
        %v740 = vmul.f32 %v736, %v736
        %741 = vadd.xlane.f32.xlu0 %v737
        %v742 = vpop.xlane.xlu0 %741
        %743 = vadd.xlane.f32.xlu0 %v738
        %v744 = vpop.xlane.xlu0 %743
        %745 = vadd.xlane.f32.xlu0 %v739
        %v746 = vpop.xlane.xlu0 %745
        %747 = vadd.xlane.f32.xlu0 %v740
        %v748 = vpop.xlane.xlu0 %747
        %v749 = vmul.f32 %v742, %v728
        %v750 = vmul.f32 %v744, %v728
        %v751 = vmul.f32 %v746, %v728
        %v752 = vmul.f32 %v748, %v728
        %v753 = vadd.f32 %v749, 1e-05
        %v754 = vadd.f32 %v750, 1e-05
        %v755 = vadd.f32 %v751, 1e-05
        %v756 = vadd.f32 %v752, 1e-05
        %v757 = vrsqrt.pop %v753
        %v758 = vmul.f32 %v757, %v753
        %v759 = vmul.f32 %v758, %v757
        %v760 = vmul.f32 0.5, %v759
        %v761 = vsub.f32 1.5, %v760
        %v762 = vmul.f32 %v757, %v761
        %vm763 = vweird.f32 %v753
        %vm764 = vweird.f32 %v757
        %vm765 = vmor %vm763, %vm764
        %v766 = vsel %vm765, %v757, %v762
        %v767 = vrsqrt.pop %v754
        %v768 = vmul.f32 %v767, %v754
        %v769 = vmul.f32 %v768, %v767
        %v770 = vmul.f32 0.5, %v769
        %v771 = vsub.f32 1.5, %v770
        %v772 = vmul.f32 %v767, %v771
        %vm773 = vweird.f32 %v754
        %vm774 = vweird.f32 %v767
        %vm775 = vmor %vm773, %vm774
        %v776 = vsel %vm775, %v767, %v772
        %v777 = vrsqrt.pop %v755
        %v778 = vmul.f32 %v777, %v755
        %v779 = vmul.f32 %v778, %v777
        %v780 = vmul.f32 0.5, %v779
        %v781 = vsub.f32 1.5, %v780
        %v782 = vmul.f32 %v777, %v781
        %vm783 = vweird.f32 %v755
        %vm784 = vweird.f32 %v777
        %vm785 = vmor %vm783, %vm784
        %v786 = vsel %vm785, %v777, %v782
        %v787 = vrsqrt.pop %v756
        %v788 = vmul.f32 %v787, %v756
        %v789 = vmul.f32 %v788, %v787
        %v790 = vmul.f32 0.5, %v789
        %v791 = vsub.f32 1.5, %v790
        %v792 = vmul.f32 %v787, %v791
        %vm793 = vweird.f32 %v756
        %vm794 = vweird.f32 %v787
        %vm795 = vmor %vm793, %vm794
        %v796 = vsel %vm795, %v787, %v792
        %v797 = vmul.f32 %v733, %v766
        %v798 = vmul.f32 %v734, %v776
        %v799 = vmul.f32 %v735, %v786
        %v800 = vmul.f32 %v736, %v796
        %v802 = vperm.slane %v712, 0
        %v804 = vmul.f32 %v797, %v802
        %v805 = vmul.f32 %v798, %v802
        %v806 = vmul.f32 %v799, %v802
        %v807 = vmul.f32 %v800, %v802
        %v809 = vperm.slane %v713, 0
        %v811 = vadd.f32 %v804, %v809
        %v812 = vadd.f32 %v805, %v809
        %v813 = vadd.f32 %v806, %v809
        %v814 = vadd.f32 %v807, %v809
        %v815 = vpack.c.bf16 %v812, %v811
        %v816 = vpack.c.bf16 %v814, %v813
        %v817 = vld [vmem:[%s547] sm:$0xff]
        %v818 = vld [vmem:[%s547 + $0x8] sm:$0xf]
        %v819 = vld [vmem:[%s547 + $0xc] sm:$0xff]
        %v820 = vld [vmem:[%s547 + $0x14] sm:$0xf]
        %v821 = vld [vmem:[%s547 + $0x18] sm:$0xff]
        %v822 = vld [vmem:[%s547 + $0x20] sm:$0xf]
        %v823 = vld [vmem:[%s547 + $0x24] sm:$0xff]
        %v824 = vld [vmem:[%s547 + $0x2c] sm:$0xf]
        %v825 = vld [vmem:[%s547 + $0x30] sm:$0xff]
        %v826 = vld [vmem:[%s547 + $0x38] sm:$0xf]
        %v827 = vld [vmem:[%s547 + $0x3c] sm:$0xff]
        %v828 = vld [vmem:[%s547 + $0x44] sm:$0xf]
        %v829 = vld [vmem:[%s547 + $0x48] sm:$0xff]
        %v830 = vld [vmem:[%s547 + $0x50] sm:$0xf]
        %v831 = vld [vmem:[%s547 + $0x54] sm:$0xff]
        %v832 = vld [vmem:[%s547 + $0x5c] sm:$0xf]
        %v833 = vld [vmem:[%s547 + $0x60] sm:$0xff]
        %v834 = vld [vmem:[%s547 + $0x68] sm:$0xf]
        %v835 = vld [vmem:[%s547 + $0x6c] sm:$0xff]
        %v836 = vld [vmem:[%s547 + $0x74] sm:$0xf]
        %v837 = vld [vmem:[%s547 + $0x78] sm:$0xff]
        %v838 = vld [vmem:[%s547 + $0x80] sm:$0xf]
        %v839 = vld [vmem:[%s547 + $0x84] sm:$0xff]
        %v840 = vld [vmem:[%s547 + $0x8c] sm:$0xf]
        %v841 = vld [vmem:[%s547 + $0x90] sm:$0xff]
        %v842 = vld [vmem:[%s547 + $0x98] sm:$0xf]
        %v843 = vld [vmem:[%s547 + $0x9c] sm:$0xff]
        %v844 = vld [vmem:[%s547 + $0xa4] sm:$0xf]
        %v845 = vld [vmem:[%s547 + $0xa8] sm:$0xff]
        %v846 = vld [vmem:[%s547 + $0xb0] sm:$0xf]
        %v847 = vld [vmem:[%s547 + $0xb4] sm:$0xff]
        %v848 = vld [vmem:[%s547 + $0xbc] sm:$0xf]
        %v881 = vunpack.c.l.b16 %v817
        %v882 = vunpack.c.h.b16 %v817
        %v883 = vunpack.c.l.b16 %v818
        %v884 = vunpack.c.l.b16 %v819
        %v885 = vunpack.c.h.b16 %v819
        %v886 = vunpack.c.l.b16 %v820
        %v887 = vunpack.c.l.b16 %v821
        %v888 = vunpack.c.h.b16 %v821
        %v889 = vunpack.c.l.b16 %v822
        %v890 = vunpack.c.l.b16 %v823
        %v891 = vunpack.c.h.b16 %v823
        %v892 = vunpack.c.l.b16 %v824
        %v893 = vunpack.c.l.b16 %v825
        %v894 = vunpack.c.h.b16 %v825
        %v895 = vunpack.c.l.b16 %v826
        %v896 = vunpack.c.l.b16 %v827
        %v897 = vunpack.c.h.b16 %v827
        %v898 = vunpack.c.l.b16 %v828
        %v899 = vunpack.c.l.b16 %v829
        %v900 = vunpack.c.h.b16 %v829
        %v901 = vunpack.c.l.b16 %v830
        %v902 = vunpack.c.l.b16 %v831
        %v903 = vunpack.c.h.b16 %v831
        %v904 = vunpack.c.l.b16 %v832
        %v905 = vunpack.c.l.b16 %v833
        %v906 = vunpack.c.h.b16 %v833
        %v907 = vunpack.c.l.b16 %v834
        %v908 = vunpack.c.l.b16 %v835
        %v909 = vunpack.c.h.b16 %v835
        %v910 = vunpack.c.l.b16 %v836
        %v911 = vunpack.c.l.b16 %v837
        %v912 = vunpack.c.h.b16 %v837
        %v913 = vunpack.c.l.b16 %v838
        %v914 = vunpack.c.l.b16 %v839
        %v915 = vunpack.c.h.b16 %v839
        %v916 = vunpack.c.l.b16 %v840
        %v917 = vunpack.c.l.b16 %v841
        %v918 = vunpack.c.h.b16 %v841
        %v919 = vunpack.c.l.b16 %v842
        %v920 = vunpack.c.l.b16 %v843
        %v921 = vunpack.c.h.b16 %v843
        %v922 = vunpack.c.l.b16 %v844
        %v923 = vunpack.c.l.b16 %v845
        %v924 = vunpack.c.h.b16 %v845
        %v925 = vunpack.c.l.b16 %v846
        %v926 = vunpack.c.l.b16 %v847
        %v927 = vunpack.c.h.b16 %v847
        %v928 = vunpack.c.l.b16 %v848
        %v929 = vpack.c.b16 %v884, %v881
        %v930 = vpack.c.b16 %v885, %v882
        %v931 = vpack.c.b16 %v886, %v883
        %v932 = vpack.c.b16 %v890, %v887
        %v933 = vpack.c.b16 %v891, %v888
        %v934 = vpack.c.b16 %v892, %v889
        %v935 = vpack.c.b16 %v896, %v893
        %v936 = vpack.c.b16 %v897, %v894
        %v937 = vpack.c.b16 %v898, %v895
        %v938 = vpack.c.b16 %v902, %v899
        %v939 = vpack.c.b16 %v903, %v900
        %v940 = vpack.c.b16 %v904, %v901
        %v941 = vpack.c.b16 %v908, %v905
        %v942 = vpack.c.b16 %v909, %v906
        %v943 = vpack.c.b16 %v910, %v907
        %v944 = vpack.c.b16 %v914, %v911
        %v945 = vpack.c.b16 %v915, %v912
        %v946 = vpack.c.b16 %v916, %v913
        %v947 = vpack.c.b16 %v920, %v917
        %v948 = vpack.c.b16 %v921, %v918
        %v949 = vpack.c.b16 %v922, %v919
        %v950 = vpack.c.b16 %v926, %v923
        %v951 = vpack.c.b16 %v927, %v924
        %v952 = vpack.c.b16 %v928, %v925
        %977 = vmatpush.bf16.msra.mxu0 %v950
        %978 = vmatpush.bf16.msra.mxu0 %v947
        %979 = vmatpush.bf16.msra.mxu0 %v944
        %980 = vmatpush.bf16.msra.mxu0 %v941
        %981 = vmatpush.bf16.msra.mxu0 %v938
        %982 = vmatpush.bf16.msra.mxu0 %v935
        %983 = vmatpush.bf16.msra.mxu0 %v932
        %984 = vmatpush.bf16.msra.mxu0 %v929
        %985 = vmatmul.bf16.gmra.mxu0 %v815
        %v986 = vpop.f32.mrf.mxu0
        %v987 = vadd.f32 0.0, %v986
        %v988 = vpop.f32.mrf.mxu0
        %v989 = vadd.f32 0.0, %v988
        %990 = vmatmul.bf16.gmra.mxu0 %v816
        %v991 = vpop.f32.mrf.mxu0
        %v992 = vadd.f32 0.0, %v991
        %v993 = vpop.f32.mrf.mxu0
        %v994 = vadd.f32 0.0, %v993
        %995 = vdwg.mxu0
        %996 = vmatpush.bf16.msra.mxu0 %v951
        %997 = vmatpush.bf16.msra.mxu0 %v948
        %998 = vmatpush.bf16.msra.mxu0 %v945
        %999 = vmatpush.bf16.msra.mxu0 %v942
        %1000 = vmatpush.bf16.msra.mxu0 %v939
        %1001 = vmatpush.bf16.msra.mxu0 %v936
        %1002 = vmatpush.bf16.msra.mxu0 %v933
        %1003 = vmatpush.bf16.msra.mxu0 %v930
        %1004 = vmatmul.bf16.gmra.mxu0 %v815
        %v1005 = vpop.f32.mrf.mxu0
        %v1006 = vadd.f32 0.0, %v1005
        %v1007 = vpop.f32.mrf.mxu0
        %v1008 = vadd.f32 0.0, %v1007
        %1009 = vmatmul.bf16.gmra.mxu0 %v816
        %v1010 = vpop.f32.mrf.mxu0
        %v1011 = vadd.f32 0.0, %v1010
        %v1012 = vpop.f32.mrf.mxu0
        %v1013 = vadd.f32 0.0, %v1012
        %1014 = vdwg.mxu0
        %1015 = vmatpush.bf16.msra.mxu0 %v952
        %1016 = vmatpush.bf16.msra.mxu0 %v949
        %1017 = vmatpush.bf16.msra.mxu0 %v946
        %1018 = vmatpush.bf16.msra.mxu0 %v943
        %1019 = vmatpush.bf16.msra.mxu0 %v940
        %1020 = vmatpush.bf16.msra.mxu0 %v937
        %1021 = vmatpush.bf16.msra.mxu0 %v934
        %1022 = vmatpush.bf16.msra.mxu0 %v931
        %1023 = vmatmul.bf16.gmra.mxu0 %v815
        %v1024 = vpop.f32.mrf.mxu0
        %v1025 = vadd.f32 0.0, %v1024
        %v1026 = vpop.f32.mrf.mxu0
        %v1027 = vadd.f32 0.0, %v1026
        %1028 = vmatmul.bf16.gmra.mxu0 %v816
        %v1029 = vpop.f32.mrf.mxu0
        %v1030 = vadd.f32 0.0, %v1029
        %v1031 = vpop.f32.mrf.mxu0
        %v1032 = vadd.f32 0.0, %v1031
        %1033 = vdwg.mxu0
        %v1034 = vpack.c.bf16 %v989, %v987
        %v1035 = vpack.c.bf16 %v1008, %v1006
        %vm1036 = vcmask 523264
        %v1038 = vsel %vm1036, %v1034, 0
        %v1041 = vsel %vm1036, %v1035, 0
        %1043 = vmatpush.bf16.xpose.msra.mxu0 0
        %1044 = vmatpush.bf16.xpose.msra.mxu0 0
        %1045 = vmatpush.bf16.xpose.msra.mxu0 0
        %1046 = vmatpush.bf16.xpose.msra.mxu0 0
        %1047 = vmatpush.bf16.xpose.msra.mxu0 0
        %1048 = vmatpush.bf16.xpose.msra.mxu0 0
        %1049 = vmatpush.bf16.xpose.msra.mxu0 0
        %1050 = vmatpush.bf16.xpose.msra.mxu0 %v1041
        %1051 = vmatmul.bf16.gmra.mxu0 %v1038
        %v1052 = vpop.f32.mrf.mxu0
        %v1053 = vadd.f32 0.0, %v1052
        %v1054 = vpop.f32.mrf.mxu0
        %v1055 = vadd.f32 0.0, %v1054
        %1056 = vdwg.mxu0
        %v1057 = vmul.f32 %v1053, 0.125
        %v1058 = vmul.f32 %v1055, 0.125
        %v1059 = vlaneseq
        %v1060 = vand.u32 %v1059, 127
        %vm1061 = vcmp.lt.s32.totalorder %v1060, 9
        %v1062 = vsel %vm1061, %v1057, -1e+30
        %v1063 = vsel %vm1061, %v1058, -1e+30
        %vm1064 = vcmask 130048
        %v1065 = vsel %vm1064, %v1062, -inf
        %1066 = vmax.xlane.f32.xlu0 %v1065
        %v1067 = vpop.xlane.xlu0 %1066
        %v1068 = vsel %vm1064, %v1063, -inf
        %1069 = vmax.xlane.f32.xlu0 %v1068
        %v1070 = vpop.xlane.xlu0 %1069
        %v1071 = vsub.f32 %v1062, %v1067
        %v1072 = vsub.f32 %v1063, %v1070
        %v1073 = vmul.f32 %v1071, 1.442695
        %v1074 = vpow.pop %v1073
        %v1075 = vmul.f32 %v1072, 1.442695
        %v1076 = vpow.pop %v1075
        %v1077 = vsel %vm1064, %v1074, 0.0
        %1078 = vadd.xlane.f32.xlu0 %v1077
        %v1079 = vpop.xlane.xlu0 %1078
        %v1080 = vsel %vm1064, %v1076, 0.0
        %1081 = vadd.xlane.f32.xlu0 %v1080
        %v1082 = vpop.xlane.xlu0 %1081
        %v1083 = vrcp.pop %v1079
        %v1084 = vrcp.pop %v1082
        %v1085 = vmul.f32 %v1074, %v1083
        %v1086 = vmul.f32 %v1076, %v1084
        %v1087 = vpack.c.bf16 %v1086, %v1085
        %v1088 = vpack.c.bf16 %v1027, %v1025
        %v1090 = vsel %vm1064, %v1087, 0
        %1092 = vmatpush.bf16.msra.mxu0 0
        %1093 = vmatpush.bf16.msra.mxu0 0
        %1094 = vmatpush.bf16.msra.mxu0 0
        %1095 = vmatpush.bf16.msra.mxu0 0
        %1096 = vmatpush.bf16.msra.mxu0 0
        %1097 = vmatpush.bf16.msra.mxu0 0
        %1098 = vmatpush.bf16.msra.mxu0 0
        %1099 = vmatpush.bf16.msra.mxu0 %v1088
        %1100 = vmatmul.bf16.gmra.mxu0 %v1090
        %v1101 = vpop.f32.mrf.mxu0
        %v1102 = vadd.f32 0.0, %v1101
        %v1103 = vpop.f32.mrf.mxu0
        %v1104 = vadd.f32 0.0, %v1103
        %1105 = vdwg.mxu0
        %1106 = vst.msk [vmem:[#allocation2] sm:$0xff] %vm1036, %v1102
        %1107 = vst.msk [vmem:[#allocation2 + $0x8] sm:$0xff] %vm1036, %v1104
        %1109 = vrot.lane.b32.xlu0 %v1034, 64
        %v1110 = vpop.permute.xlu0 %1109
        %1112 = vrot.lane.b32.xlu0 %v1035, 64
        %v1113 = vpop.permute.xlu0 %1112
        %v1115 = vsel %vm1036, %v1110, 0
        %v1118 = vsel %vm1036, %v1113, 0
        %1120 = vmatpush.bf16.xpose.msra.mxu0 0
        %1121 = vmatpush.bf16.xpose.msra.mxu0 0
        %1122 = vmatpush.bf16.xpose.msra.mxu0 0
        %1123 = vmatpush.bf16.xpose.msra.mxu0 0
        %1124 = vmatpush.bf16.xpose.msra.mxu0 0
        %1125 = vmatpush.bf16.xpose.msra.mxu0 0
        %1126 = vmatpush.bf16.xpose.msra.mxu0 0
        %1127 = vmatpush.bf16.xpose.msra.mxu0 %v1118
        %1128 = vmatmul.bf16.gmra.mxu0 %v1115
        %v1129 = vpop.f32.mrf.mxu0
        %v1130 = vadd.f32 0.0, %v1129
        %v1131 = vpop.f32.mrf.mxu0
        %v1132 = vadd.f32 0.0, %v1131
        %1133 = vdwg.mxu0
        %v1134 = vmul.f32 %v1130, 0.125
        %v1135 = vmul.f32 %v1132, 0.125
        %v1136 = vsel %vm1061, %v1134, -1e+30
        %v1137 = vsel %vm1061, %v1135, -1e+30
        %v1138 = vsel %vm1064, %v1136, -inf
        %1139 = vmax.xlane.f32.xlu0 %v1138
        %v1140 = vpop.xlane.xlu0 %1139
        %v1141 = vsel %vm1064, %v1137, -inf
        %1142 = vmax.xlane.f32.xlu0 %v1141
        %v1143 = vpop.xlane.xlu0 %1142
        %v1144 = vsub.f32 %v1136, %v1140
        %v1145 = vsub.f32 %v1137, %v1143
        %v1146 = vmul.f32 %v1144, 1.442695
        %v1147 = vpow.pop %v1146
        %v1148 = vmul.f32 %v1145, 1.442695
        %v1149 = vpow.pop %v1148
        %v1150 = vsel %vm1064, %v1147, 0.0
        %1151 = vadd.xlane.f32.xlu0 %v1150
        %v1152 = vpop.xlane.xlu0 %1151
        %v1153 = vsel %vm1064, %v1149, 0.0
        %1154 = vadd.xlane.f32.xlu0 %v1153
        %v1155 = vpop.xlane.xlu0 %1154
        %v1156 = vrcp.pop %v1152
        %v1157 = vrcp.pop %v1155
        %v1158 = vmul.f32 %v1147, %v1156
        %v1159 = vmul.f32 %v1149, %v1157
        %v1160 = vpack.c.bf16 %v1159, %v1158
        %1162 = vrot.lane.b32.xlu0 %v1088, 64
        %v1163 = vpop.permute.xlu0 %1162
        %v1166 = vsel %vm1064, %v1160, 0
        %1168 = vmatpush.bf16.msra.mxu0 0
        %1169 = vmatpush.bf16.msra.mxu0 0
        %1170 = vmatpush.bf16.msra.mxu0 0
        %1171 = vmatpush.bf16.msra.mxu0 0
        %1172 = vmatpush.bf16.msra.mxu0 0
        %1173 = vmatpush.bf16.msra.mxu0 0
        %1174 = vmatpush.bf16.msra.mxu0 0
        %1175 = vmatpush.bf16.msra.mxu0 %v1163
        %1176 = vmatmul.bf16.gmra.mxu0 %v1166
        %v1177 = vpop.f32.mrf.mxu0
        %v1178 = vadd.f32 0.0, %v1177
        %v1179 = vpop.f32.mrf.mxu0
        %v1180 = vadd.f32 0.0, %v1179
        %1181 = vdwg.mxu0
        %1184 = vrot.lane.b32.xlu0 %v1178, 64
        %v1185 = vpop.permute.xlu0 %1184
        %1186 = vrot.lane.b32.xlu0 %v1180, 64
        %v1187 = vpop.permute.xlu0 %1186
        %vm1190 = vcmask 1048064
        %1191 = vst.msk [vmem:[#allocation2] sm:$0xff] %vm1190, %v1185
        %1192 = vst.msk [vmem:[#allocation2 + $0x8] sm:$0xff] %vm1190, %v1187
        %v1193 = vpack.c.bf16 %v994, %v992
        %v1194 = vpack.c.bf16 %v1013, %v1011
        %v1196 = vsel %vm1036, %v1193, 0
        %v1199 = vsel %vm1036, %v1194, 0
        %1201 = vmatpush.bf16.xpose.msra.mxu0 0
        %1202 = vmatpush.bf16.xpose.msra.mxu0 0
        %1203 = vmatpush.bf16.xpose.msra.mxu0 0
        %1204 = vmatpush.bf16.xpose.msra.mxu0 0
        %1205 = vmatpush.bf16.xpose.msra.mxu0 0
        %1206 = vmatpush.bf16.xpose.msra.mxu0 0
        %1207 = vmatpush.bf16.xpose.msra.mxu0 0
        %1208 = vmatpush.bf16.xpose.msra.mxu0 %v1199
        %1209 = vmatmul.bf16.gmra.mxu0 %v1196
        %v1210 = vpop.f32.mrf.mxu0
        %v1211 = vadd.f32 0.0, %v1210
        %v1212 = vpop.f32.mrf.mxu0
        %v1213 = vadd.f32 0.0, %v1212
        %1214 = vdwg.mxu0
        %v1215 = vmul.f32 %v1211, 0.125
        %v1216 = vmul.f32 %v1213, 0.125
        %v1217 = vsel %vm1061, %v1215, -1e+30
        %v1218 = vsel %vm1061, %v1216, -1e+30
        %v1219 = vsel %vm1064, %v1217, -inf
        %1220 = vmax.xlane.f32.xlu0 %v1219
        %v1221 = vpop.xlane.xlu0 %1220
        %v1222 = vsel %vm1064, %v1218, -inf
        %1223 = vmax.xlane.f32.xlu0 %v1222
        %v1224 = vpop.xlane.xlu0 %1223
        %v1225 = vsub.f32 %v1217, %v1221
        %v1226 = vsub.f32 %v1218, %v1224
        %v1227 = vmul.f32 %v1225, 1.442695
        %v1228 = vpow.pop %v1227
        %v1229 = vmul.f32 %v1226, 1.442695
        %v1230 = vpow.pop %v1229
        %v1231 = vsel %vm1064, %v1228, 0.0
        %1232 = vadd.xlane.f32.xlu0 %v1231
        %v1233 = vpop.xlane.xlu0 %1232
        %v1234 = vsel %vm1064, %v1230, 0.0
        %1235 = vadd.xlane.f32.xlu0 %v1234
        %v1236 = vpop.xlane.xlu0 %1235
        %v1237 = vrcp.pop %v1233
        %v1238 = vrcp.pop %v1236
        %v1239 = vmul.f32 %v1228, %v1237
        %v1240 = vmul.f32 %v1230, %v1238
        %v1241 = vpack.c.bf16 %v1240, %v1239
        %v1242 = vpack.c.bf16 %v1032, %v1030
        %v1244 = vsel %vm1064, %v1241, 0
        %1246 = vmatpush.bf16.msra.mxu0 0
        %1247 = vmatpush.bf16.msra.mxu0 0
        %1248 = vmatpush.bf16.msra.mxu0 0
        %1249 = vmatpush.bf16.msra.mxu0 0
        %1250 = vmatpush.bf16.msra.mxu0 0
        %1251 = vmatpush.bf16.msra.mxu0 0
        %1252 = vmatpush.bf16.msra.mxu0 0
        %1253 = vmatpush.bf16.msra.mxu0 %v1242
        %1254 = vmatmul.bf16.gmra.mxu0 %v1244
        %v1255 = vpop.f32.mrf.mxu0
        %v1256 = vadd.f32 0.0, %v1255
        %v1257 = vpop.f32.mrf.mxu0
        %v1258 = vadd.f32 0.0, %v1257
        %1259 = vdwg.mxu0
        %1260 = vst.msk [vmem:[#allocation2 + $0x10] sm:$0xff] %vm1036, %v1256
        %1261 = vst.msk [vmem:[#allocation2 + $0x18] sm:$0xff] %vm1036, %v1258
        %1263 = vrot.lane.b32.xlu0 %v1193, 64
        %v1264 = vpop.permute.xlu0 %1263
        %1266 = vrot.lane.b32.xlu0 %v1194, 64
        %v1267 = vpop.permute.xlu0 %1266
        %v1269 = vsel %vm1036, %v1264, 0
        %v1272 = vsel %vm1036, %v1267, 0
        %1274 = vmatpush.bf16.xpose.msra.mxu0 0
        %1275 = vmatpush.bf16.xpose.msra.mxu0 0
        %1276 = vmatpush.bf16.xpose.msra.mxu0 0
        %1277 = vmatpush.bf16.xpose.msra.mxu0 0
        %1278 = vmatpush.bf16.xpose.msra.mxu0 0
        %1279 = vmatpush.bf16.xpose.msra.mxu0 0
        %1280 = vmatpush.bf16.xpose.msra.mxu0 0
        %1281 = vmatpush.bf16.xpose.msra.mxu0 %v1272
        %1282 = vmatmul.bf16.gmra.mxu0 %v1269
        %v1283 = vpop.f32.mrf.mxu0
        %v1284 = vadd.f32 0.0, %v1283
        %v1285 = vpop.f32.mrf.mxu0
        %v1286 = vadd.f32 0.0, %v1285
        %1287 = vdwg.mxu0
        %v1288 = vmul.f32 %v1284, 0.125
        %v1289 = vmul.f32 %v1286, 0.125
        %v1290 = vsel %vm1061, %v1288, -1e+30
        %v1291 = vsel %vm1061, %v1289, -1e+30
        %v1292 = vsel %vm1064, %v1290, -inf
        %1293 = vmax.xlane.f32.xlu0 %v1292
        %v1294 = vpop.xlane.xlu0 %1293
        %v1295 = vsel %vm1064, %v1291, -inf
        %1296 = vmax.xlane.f32.xlu0 %v1295
        %v1297 = vpop.xlane.xlu0 %1296
        %v1298 = vsub.f32 %v1290, %v1294
        %v1299 = vsub.f32 %v1291, %v1297
        %v1300 = vmul.f32 %v1298, 1.442695
        %v1301 = vpow.pop %v1300
        %v1302 = vmul.f32 %v1299, 1.442695
        %v1303 = vpow.pop %v1302
        %v1304 = vsel %vm1064, %v1301, 0.0
        %1305 = vadd.xlane.f32.xlu0 %v1304
        %v1306 = vpop.xlane.xlu0 %1305
        %v1307 = vsel %vm1064, %v1303, 0.0
        %1308 = vadd.xlane.f32.xlu0 %v1307
        %v1309 = vpop.xlane.xlu0 %1308
        %v1310 = vrcp.pop %v1306
        %v1311 = vrcp.pop %v1309
        %v1312 = vmul.f32 %v1301, %v1310
        %v1313 = vmul.f32 %v1303, %v1311
        %v1314 = vpack.c.bf16 %v1313, %v1312
        %1316 = vrot.lane.b32.xlu0 %v1242, 64
        %v1317 = vpop.permute.xlu0 %1316
        %v1320 = vsel %vm1064, %v1314, 0
        %1322 = vmatpush.bf16.msra.mxu0 0
        %1323 = vmatpush.bf16.msra.mxu0 0
        %1324 = vmatpush.bf16.msra.mxu0 0
        %1325 = vmatpush.bf16.msra.mxu0 0
        %1326 = vmatpush.bf16.msra.mxu0 0
        %1327 = vmatpush.bf16.msra.mxu0 0
        %1328 = vmatpush.bf16.msra.mxu0 0
        %1329 = vmatpush.bf16.msra.mxu0 %v1317
        %1330 = vmatmul.bf16.gmra.mxu0 %v1320
        %v1331 = vpop.f32.mrf.mxu0
        %v1332 = vadd.f32 0.0, %v1331
        %v1333 = vpop.f32.mrf.mxu0
        %v1334 = vadd.f32 0.0, %v1333
        %1335 = vdwg.mxu0
        %1338 = vrot.lane.b32.xlu0 %v1332, 64
        %v1339 = vpop.permute.xlu0 %1338
        %1340 = vrot.lane.b32.xlu0 %v1334, 64
        %v1341 = vpop.permute.xlu0 %1340
        %1344 = vst.msk [vmem:[#allocation2 + $0x10] sm:$0xff] %vm1190, %v1339
        %1345 = vst.msk [vmem:[#allocation2 + $0x18] sm:$0xff] %vm1190, %v1341
        %v1346 = vld [vmem:[#allocation2] sm:$0xff]
        %v1347 = vld [vmem:[#allocation2 + $0x8] sm:$0xff]
        %v1348 = vld [vmem:[#allocation2 + $0x10] sm:$0xff]
        %v1349 = vld [vmem:[#allocation2 + $0x18] sm:$0xff]
        %v1350 = vpack.c.bf16 %v1347, %v1346
        %v1351 = vpack.c.bf16 %v1349, %v1348
        %v1352 = vld [vmem:[%s557] sm:$0xf]
        %v1353 = vld [vmem:[%s557 + $0x4] sm:$0xf]
        %v1354 = vld [vmem:[%s557 + $0x8] sm:$0xf]
        %v1355 = vld [vmem:[%s557 + $0xc] sm:$0xf]
        %v1356 = vld [vmem:[%s557 + $0x10] sm:$0xf]
        %v1357 = vld [vmem:[%s557 + $0x14] sm:$0xf]
        %v1358 = vld [vmem:[%s557 + $0x18] sm:$0xf]
        %v1359 = vld [vmem:[%s557 + $0x1c] sm:$0xf]
        %v1360 = vld [vmem:[%s557 + $0x20] sm:$0xf]
        %v1361 = vld [vmem:[%s557 + $0x24] sm:$0xf]
        %v1362 = vld [vmem:[%s557 + $0x28] sm:$0xf]
        %v1363 = vld [vmem:[%s557 + $0x2c] sm:$0xf]
        %v1364 = vld [vmem:[%s557 + $0x30] sm:$0xf]
        %v1365 = vld [vmem:[%s557 + $0x34] sm:$0xf]
        %v1366 = vld [vmem:[%s557 + $0x38] sm:$0xf]
        %v1367 = vld [vmem:[%s557 + $0x3c] sm:$0xf]
        %v1384 = vunpack.c.l.b16 %v1352
        %v1385 = vunpack.c.l.b16 %v1353
        %v1386 = vunpack.c.l.b16 %v1354
        %v1387 = vunpack.c.l.b16 %v1355
        %v1388 = vunpack.c.l.b16 %v1356
        %v1389 = vunpack.c.l.b16 %v1357
        %v1390 = vunpack.c.l.b16 %v1358
        %v1391 = vunpack.c.l.b16 %v1359
        %v1392 = vunpack.c.l.b16 %v1360
        %v1393 = vunpack.c.l.b16 %v1361
        %v1394 = vunpack.c.l.b16 %v1362
        %v1395 = vunpack.c.l.b16 %v1363
        %v1396 = vunpack.c.l.b16 %v1364
        %v1397 = vunpack.c.l.b16 %v1365
        %v1398 = vunpack.c.l.b16 %v1366
        %v1399 = vunpack.c.l.b16 %v1367
        %v1400 = vpack.c.b16 %v1385, %v1384
        %v1401 = vpack.c.b16 %v1387, %v1386
        %v1402 = vpack.c.b16 %v1389, %v1388
        %v1403 = vpack.c.b16 %v1391, %v1390
        %v1404 = vpack.c.b16 %v1393, %v1392
        %v1405 = vpack.c.b16 %v1395, %v1394
        %v1406 = vpack.c.b16 %v1397, %v1396
        %v1407 = vpack.c.b16 %v1399, %v1398
        %1416 = vmatpush.bf16.msra.mxu0 %v1407
        %1417 = vmatpush.bf16.msra.mxu0 %v1406
        %1418 = vmatpush.bf16.msra.mxu0 %v1405
        %1419 = vmatpush.bf16.msra.mxu0 %v1404
        %1420 = vmatpush.bf16.msra.mxu0 %v1403
        %1421 = vmatpush.bf16.msra.mxu0 %v1402
        %1422 = vmatpush.bf16.msra.mxu0 %v1401
        %1423 = vmatpush.bf16.msra.mxu0 %v1400
        %1424 = vmatmul.bf16.gmra.mxu0 %v1350
        %v1425 = vpop.f32.mrf.mxu0
        %v1426 = vadd.f32 0.0, %v1425
        %v1427 = vpop.f32.mrf.mxu0
        %v1428 = vadd.f32 0.0, %v1427
        %1429 = vmatmul.bf16.gmra.mxu0 %v1351
        %v1430 = vpop.f32.mrf.mxu0
        %v1431 = vadd.f32 0.0, %v1430
        %v1432 = vpop.f32.mrf.mxu0
        %v1433 = vadd.f32 0.0, %v1432
        %1434 = vdwg.mxu0
        %v1435 = vadd.f32 %v708, %v1426
        %v1436 = vadd.f32 %v709, %v1428
        %v1437 = vadd.f32 %v710, %v1431
        %v1438 = vadd.f32 %v711, %v1433
        %v1439 = vld [vmem:[%s675] sm:$0x1]
        %v1441 = vperm.slane %v1439, 0
        %v1443 = vadd.f32 %v1435, %v1441
        %v1444 = vadd.f32 %v1436, %v1441
        %v1445 = vadd.f32 %v1437, %v1441
        %v1446 = vadd.f32 %v1438, %v1441
        %v1447 = vld [vmem:[%s678] sm:$0x1]
        %v1448 = vld [vmem:[%s681] sm:$0x1]
        %1449 = vadd.xlane.f32.xlu0 %v1443
        %v1450 = vpop.xlane.xlu0 %1449
        %1451 = vadd.xlane.f32.xlu0 %v1444
        %v1452 = vpop.xlane.xlu0 %1451
        %1453 = vadd.xlane.f32.xlu0 %v1445
        %v1454 = vpop.xlane.xlu0 %1453
        %1455 = vadd.xlane.f32.xlu0 %v1446
        %v1456 = vpop.xlane.xlu0 %1455
        %v1457 = vmul.f32 %v1450, %v728
        %v1458 = vmul.f32 %v1452, %v728
        %v1459 = vmul.f32 %v1454, %v728
        %v1460 = vmul.f32 %v1456, %v728
        %v1461 = vsub.f32 %v1443, %v1457
        %v1462 = vsub.f32 %v1444, %v1458
        %v1463 = vsub.f32 %v1445, %v1459
        %v1464 = vsub.f32 %v1446, %v1460
        %v1465 = vmul.f32 %v1461, %v1461
        %v1466 = vmul.f32 %v1462, %v1462
        %v1467 = vmul.f32 %v1463, %v1463
        %v1468 = vmul.f32 %v1464, %v1464
        %1469 = vadd.xlane.f32.xlu0 %v1465
        %v1470 = vpop.xlane.xlu0 %1469
        %1471 = vadd.xlane.f32.xlu0 %v1466
        %v1472 = vpop.xlane.xlu0 %1471
        %1473 = vadd.xlane.f32.xlu0 %v1467
        %v1474 = vpop.xlane.xlu0 %1473
        %1475 = vadd.xlane.f32.xlu0 %v1468
        %v1476 = vpop.xlane.xlu0 %1475
        %v1477 = vmul.f32 %v1470, %v728
        %v1478 = vmul.f32 %v1472, %v728
        %v1479 = vmul.f32 %v1474, %v728
        %v1480 = vmul.f32 %v1476, %v728
        %v1481 = vadd.f32 %v1477, 1e-05
        %v1482 = vadd.f32 %v1478, 1e-05
        %v1483 = vadd.f32 %v1479, 1e-05
        %v1484 = vadd.f32 %v1480, 1e-05
        %v1485 = vrsqrt.pop %v1481
        %v1486 = vmul.f32 %v1485, %v1481
        %v1487 = vmul.f32 %v1486, %v1485
        %v1488 = vmul.f32 0.5, %v1487
        %v1489 = vsub.f32 1.5, %v1488
        %v1490 = vmul.f32 %v1485, %v1489
        %vm1491 = vweird.f32 %v1481
        %vm1492 = vweird.f32 %v1485
        %vm1493 = vmor %vm1491, %vm1492
        %v1494 = vsel %vm1493, %v1485, %v1490
        %v1495 = vrsqrt.pop %v1482
        %v1496 = vmul.f32 %v1495, %v1482
        %v1497 = vmul.f32 %v1496, %v1495
        %v1498 = vmul.f32 0.5, %v1497
        %v1499 = vsub.f32 1.5, %v1498
        %v1500 = vmul.f32 %v1495, %v1499
        %vm1501 = vweird.f32 %v1482
        %vm1502 = vweird.f32 %v1495
        %vm1503 = vmor %vm1501, %vm1502
        %v1504 = vsel %vm1503, %v1495, %v1500
        %v1505 = vrsqrt.pop %v1483
        %v1506 = vmul.f32 %v1505, %v1483
        %v1507 = vmul.f32 %v1506, %v1505
        %v1508 = vmul.f32 0.5, %v1507
        %v1509 = vsub.f32 1.5, %v1508
        %v1510 = vmul.f32 %v1505, %v1509
        %vm1511 = vweird.f32 %v1483
        %vm1512 = vweird.f32 %v1505
        %vm1513 = vmor %vm1511, %vm1512
        %v1514 = vsel %vm1513, %v1505, %v1510
        %v1515 = vrsqrt.pop %v1484
        %v1516 = vmul.f32 %v1515, %v1484
        %v1517 = vmul.f32 %v1516, %v1515
        %v1518 = vmul.f32 0.5, %v1517
        %v1519 = vsub.f32 1.5, %v1518
        %v1520 = vmul.f32 %v1515, %v1519
        %vm1521 = vweird.f32 %v1484
        %vm1522 = vweird.f32 %v1515
        %vm1523 = vmor %vm1521, %vm1522
        %v1524 = vsel %vm1523, %v1515, %v1520
        %v1525 = vmul.f32 %v1461, %v1494
        %v1526 = vmul.f32 %v1462, %v1504
        %v1527 = vmul.f32 %v1463, %v1514
        %v1528 = vmul.f32 %v1464, %v1524
        %v1530 = vperm.slane %v1447, 0
        %v1532 = vmul.f32 %v1525, %v1530
        %v1533 = vmul.f32 %v1526, %v1530
        %v1534 = vmul.f32 %v1527, %v1530
        %v1535 = vmul.f32 %v1528, %v1530
        %v1537 = vperm.slane %v1448, 0
        %v1539 = vadd.f32 %v1532, %v1537
        %v1540 = vadd.f32 %v1533, %v1537
        %v1541 = vadd.f32 %v1534, %v1537
        %v1542 = vadd.f32 %v1535, %v1537
        %v1543 = vpack.c.bf16 %v1540, %v1539
        %v1544 = vpack.c.bf16 %v1542, %v1541
        %v1545 = vld [vmem:[%s567] sm:$0xff]
        %v1546 = vld [vmem:[%s567 + $0x8] sm:$0xff]
        %v1547 = vld [vmem:[%s567 + $0x10] sm:$0xff]
        %v1548 = vld [vmem:[%s567 + $0x18] sm:$0xff]
        %v1549 = vld [vmem:[%s567 + $0x20] sm:$0xff]
        %v1550 = vld [vmem:[%s567 + $0x28] sm:$0xff]
        %v1551 = vld [vmem:[%s567 + $0x30] sm:$0xff]
        %v1552 = vld [vmem:[%s567 + $0x38] sm:$0xff]
        %v1553 = vld [vmem:[%s567 + $0x40] sm:$0xff]
        %v1554 = vld [vmem:[%s567 + $0x48] sm:$0xff]
        %v1555 = vld [vmem:[%s567 + $0x50] sm:$0xff]
        %v1556 = vld [vmem:[%s567 + $0x58] sm:$0xff]
        %v1557 = vld [vmem:[%s567 + $0x60] sm:$0xff]
        %v1558 = vld [vmem:[%s567 + $0x68] sm:$0xff]
        %v1559 = vld [vmem:[%s567 + $0x70] sm:$0xff]
        %v1560 = vld [vmem:[%s567 + $0x78] sm:$0xff]
        %v1561 = vld [vmem:[%s685] sm:$0x3]
        %v1563 = vperm.slane %v1561, 0
        %v1564 = vperm.slane %v1561, 1
        %v1583 = vunpack.c.l.b16 %v1545
        %v1584 = vunpack.c.h.b16 %v1545
        %v1585 = vunpack.c.l.b16 %v1546
        %v1586 = vunpack.c.h.b16 %v1546
        %v1587 = vunpack.c.l.b16 %v1547
        %v1588 = vunpack.c.h.b16 %v1547
        %v1589 = vunpack.c.l.b16 %v1548
        %v1590 = vunpack.c.h.b16 %v1548
        %v1591 = vunpack.c.l.b16 %v1549
        %v1592 = vunpack.c.h.b16 %v1549
        %v1593 = vunpack.c.l.b16 %v1550
        %v1594 = vunpack.c.h.b16 %v1550
        %v1595 = vunpack.c.l.b16 %v1551
        %v1596 = vunpack.c.h.b16 %v1551
        %v1597 = vunpack.c.l.b16 %v1552
        %v1598 = vunpack.c.h.b16 %v1552
        %v1599 = vunpack.c.l.b16 %v1553
        %v1600 = vunpack.c.h.b16 %v1553
        %v1601 = vunpack.c.l.b16 %v1554
        %v1602 = vunpack.c.h.b16 %v1554
        %v1603 = vunpack.c.l.b16 %v1555
        %v1604 = vunpack.c.h.b16 %v1555
        %v1605 = vunpack.c.l.b16 %v1556
        %v1606 = vunpack.c.h.b16 %v1556
        %v1607 = vunpack.c.l.b16 %v1557
        %v1608 = vunpack.c.h.b16 %v1557
        %v1609 = vunpack.c.l.b16 %v1558
        %v1610 = vunpack.c.h.b16 %v1558
        %v1611 = vunpack.c.l.b16 %v1559
        %v1612 = vunpack.c.h.b16 %v1559
        %v1613 = vunpack.c.l.b16 %v1560
        %v1614 = vunpack.c.h.b16 %v1560
        %v1615 = vpack.c.b16 %v1585, %v1583
        %v1616 = vpack.c.b16 %v1586, %v1584
        %v1617 = vpack.c.b16 %v1589, %v1587
        %v1618 = vpack.c.b16 %v1590, %v1588
        %v1619 = vpack.c.b16 %v1593, %v1591
        %v1620 = vpack.c.b16 %v1594, %v1592
        %v1621 = vpack.c.b16 %v1597, %v1595
        %v1622 = vpack.c.b16 %v1598, %v1596
        %v1623 = vpack.c.b16 %v1601, %v1599
        %v1624 = vpack.c.b16 %v1602, %v1600
        %v1625 = vpack.c.b16 %v1605, %v1603
        %v1626 = vpack.c.b16 %v1606, %v1604
        %v1627 = vpack.c.b16 %v1609, %v1607
        %v1628 = vpack.c.b16 %v1610, %v1608
        %v1629 = vpack.c.b16 %v1613, %v1611
        %v1630 = vpack.c.b16 %v1614, %v1612
        %1647 = vmatpush.bf16.msra.mxu0 %v1629
        %1648 = vmatpush.bf16.msra.mxu0 %v1627
        %1649 = vmatpush.bf16.msra.mxu0 %v1625
        %1650 = vmatpush.bf16.msra.mxu0 %v1623
        %1651 = vmatpush.bf16.msra.mxu0 %v1621
        %1652 = vmatpush.bf16.msra.mxu0 %v1619
        %1653 = vmatpush.bf16.msra.mxu0 %v1617
        %1654 = vmatpush.bf16.msra.mxu0 %v1615
        %1655 = vmatmul.bf16.gmra.mxu0 %v1543
        %v1656 = vpop.f32.mrf.mxu0
        %v1657 = vadd.f32 %v1563, %v1656
        %v1658 = vpop.f32.mrf.mxu0
        %v1659 = vadd.f32 %v1563, %v1658
        %1660 = vmatmul.bf16.gmra.mxu0 %v1544
        %v1661 = vpop.f32.mrf.mxu0
        %v1662 = vadd.f32 %v1563, %v1661
        %v1663 = vpop.f32.mrf.mxu0
        %v1664 = vadd.f32 %v1563, %v1663
        %1665 = vdwg.mxu0
        %1666 = vmatpush.bf16.msra.mxu0 %v1630
        %1667 = vmatpush.bf16.msra.mxu0 %v1628
        %1668 = vmatpush.bf16.msra.mxu0 %v1626
        %1669 = vmatpush.bf16.msra.mxu0 %v1624
        %1670 = vmatpush.bf16.msra.mxu0 %v1622
        %1671 = vmatpush.bf16.msra.mxu0 %v1620
        %1672 = vmatpush.bf16.msra.mxu0 %v1618
        %1673 = vmatpush.bf16.msra.mxu0 %v1616
        %1674 = vmatmul.bf16.gmra.mxu0 %v1543
        %v1675 = vpop.f32.mrf.mxu0
        %v1676 = vadd.f32 %v1564, %v1675
        %v1677 = vpop.f32.mrf.mxu0
        %v1678 = vadd.f32 %v1564, %v1677
        %1679 = vmatmul.bf16.gmra.mxu0 %v1544
        %v1680 = vpop.f32.mrf.mxu0
        %v1681 = vadd.f32 %v1564, %v1680
        %v1682 = vpop.f32.mrf.mxu0
        %v1683 = vadd.f32 %v1564, %v1682
        %1684 = vdwg.mxu0
        %v1685 = vmul.f32 %v1657, 0.5
        %v1686 = vmul.f32 %v1676, 0.5
        %v1687 = vmul.f32 %v1659, 0.5
        %v1688 = vmul.f32 %v1678, 0.5
        %v1689 = vmul.f32 %v1662, 0.5
        %v1690 = vmul.f32 %v1681, 0.5
        %v1691 = vmul.f32 %v1664, 0.5
        %v1692 = vmul.f32 %v1683, 0.5
        %v1693 = vmul.f32 %v1657, 0.70710677
        %v1694 = vmul.f32 %v1676, 0.70710677
        %v1695 = vmul.f32 %v1659, 0.70710677
        %v1696 = vmul.f32 %v1678, 0.70710677
        %v1697 = vmul.f32 %v1662, 0.70710677
        %v1698 = vmul.f32 %v1681, 0.70710677
        %v1699 = vmul.f32 %v1664, 0.70710677
        %v1700 = vmul.f32 %v1683, 0.70710677
        %vm1701 = vcmp.lt.f32.partialorder %v1693, 0.0
        %vm1702 = vcmp.lt.f32.partialorder %v1694, 0.0
        %vm1703 = vcmp.lt.f32.partialorder %v1695, 0.0
        %vm1704 = vcmp.lt.f32.partialorder %v1696, 0.0
        %vm1705 = vcmp.lt.f32.partialorder %v1697, 0.0
        %vm1706 = vcmp.lt.f32.partialorder %v1698, 0.0
        %vm1707 = vcmp.lt.f32.partialorder %v1699, 0.0
        %vm1708 = vcmp.lt.f32.partialorder %v1700, 0.0
        %v1709 = vsel %vm1701, -1.0, 1.0
        %v1710 = vsel %vm1702, -1.0, 1.0
        %v1711 = vsel %vm1703, -1.0, 1.0
        %v1712 = vsel %vm1704, -1.0, 1.0
        %v1713 = vsel %vm1705, -1.0, 1.0
        %v1714 = vsel %vm1706, -1.0, 1.0
        %v1715 = vsel %vm1707, -1.0, 1.0
        %v1716 = vsel %vm1708, -1.0, 1.0
        %v1717 = vand.u32 2147483647, %v1693
        %v1718 = vand.u32 2147483647, %v1694
        %v1719 = vand.u32 2147483647, %v1695
        %v1720 = vand.u32 2147483647, %v1696
        %v1721 = vand.u32 2147483647, %v1697
        %v1722 = vand.u32 2147483647, %v1698
        %v1723 = vand.u32 2147483647, %v1699
        %v1724 = vand.u32 2147483647, %v1700
        %v1725 = vmul.f32 %v1717, 0.3275911
        %v1726 = vmul.f32 %v1718, 0.3275911
        %v1727 = vmul.f32 %v1719, 0.3275911
        %v1728 = vmul.f32 %v1720, 0.3275911
        %v1729 = vmul.f32 %v1721, 0.3275911
        %v1730 = vmul.f32 %v1722, 0.3275911
        %v1731 = vmul.f32 %v1723, 0.3275911
        %v1732 = vmul.f32 %v1724, 0.3275911
        %v1733 = vadd.f32 %v1725, 1.0
        %v1734 = vadd.f32 %v1726, 1.0
        %v1735 = vadd.f32 %v1727, 1.0
        %v1736 = vadd.f32 %v1728, 1.0
        %v1737 = vadd.f32 %v1729, 1.0
        %v1738 = vadd.f32 %v1730, 1.0
        %v1739 = vadd.f32 %v1731, 1.0
        %v1740 = vadd.f32 %v1732, 1.0
        %v1741 = vrcp.pop %v1733
        %v1742 = vmul.f32 %v1733, %v1741
        %v1743 = vsub.f32 1.0, %v1742
        %v1744 = vmul.f32 %v1741, %v1743
        %v1745 = vadd.f32 %v1741, %v1744
        %vm1746 = vweird.f32 %v1733
        %vm1747 = vweird.f32 %v1741
        %vm1748 = vmor %vm1746, %vm1747
        %v1749 = vsel %vm1748, %v1741, %v1745
        %v1750 = vand.u32 2147483647, %v1733
        %vm1751 = vcmp.eq.f32.partialorder %v1750, 8.507059e+37
        %v1752 = vand.u32 %v1733, 2147483648
        %v1753 = vor.u32 1.1754944e-38, %v1752
        %v1754 = vsel %vm1751, %v1753, %v1749
        %v1755 = vmul.f32 1.0, %v1754
        %v1756 = vrcp.pop %v1734
        %v1757 = vmul.f32 %v1734, %v1756
        %v1758 = vsub.f32 1.0, %v1757
        %v1759 = vmul.f32 %v1756, %v1758
        %v1760 = vadd.f32 %v1756, %v1759
        %vm1761 = vweird.f32 %v1734
        %vm1762 = vweird.f32 %v1756
        %vm1763 = vmor %vm1761, %vm1762
        %v1764 = vsel %vm1763, %v1756, %v1760
        %v1765 = vand.u32 2147483647, %v1734
        %vm1766 = vcmp.eq.f32.partialorder %v1765, 8.507059e+37
        %v1767 = vand.u32 %v1734, 2147483648
        %v1768 = vor.u32 1.1754944e-38, %v1767
        %v1769 = vsel %vm1766, %v1768, %v1764
        %v1770 = vmul.f32 1.0, %v1769
        %v1771 = vrcp.pop %v1735
        %v1772 = vmul.f32 %v1735, %v1771
        %v1773 = vsub.f32 1.0, %v1772
        %v1774 = vmul.f32 %v1771, %v1773
        %v1775 = vadd.f32 %v1771, %v1774
        %vm1776 = vweird.f32 %v1735
        %vm1777 = vweird.f32 %v1771
        %vm1778 = vmor %vm1776, %vm1777
        %v1779 = vsel %vm1778, %v1771, %v1775
        %v1780 = vand.u32 2147483647, %v1735
        %vm1781 = vcmp.eq.f32.partialorder %v1780, 8.507059e+37
        %v1782 = vand.u32 %v1735, 2147483648
        %v1783 = vor.u32 1.1754944e-38, %v1782
        %v1784 = vsel %vm1781, %v1783, %v1779
        %v1785 = vmul.f32 1.0, %v1784
        %v1786 = vrcp.pop %v1736
        %v1787 = vmul.f32 %v1736, %v1786
        %v1788 = vsub.f32 1.0, %v1787
        %v1789 = vmul.f32 %v1786, %v1788
        %v1790 = vadd.f32 %v1786, %v1789
        %vm1791 = vweird.f32 %v1736
        %vm1792 = vweird.f32 %v1786
        %vm1793 = vmor %vm1791, %vm1792
        %v1794 = vsel %vm1793, %v1786, %v1790
        %v1795 = vand.u32 2147483647, %v1736
        %vm1796 = vcmp.eq.f32.partialorder %v1795, 8.507059e+37
        %v1797 = vand.u32 %v1736, 2147483648
        %v1798 = vor.u32 1.1754944e-38, %v1797
        %v1799 = vsel %vm1796, %v1798, %v1794
        %v1800 = vmul.f32 1.0, %v1799
        %v1801 = vrcp.pop %v1737
        %v1802 = vmul.f32 %v1737, %v1801
        %v1803 = vsub.f32 1.0, %v1802
        %v1804 = vmul.f32 %v1801, %v1803
        %v1805 = vadd.f32 %v1801, %v1804
        %vm1806 = vweird.f32 %v1737
        %vm1807 = vweird.f32 %v1801
        %vm1808 = vmor %vm1806, %vm1807
        %v1809 = vsel %vm1808, %v1801, %v1805
        %v1810 = vand.u32 2147483647, %v1737
        %vm1811 = vcmp.eq.f32.partialorder %v1810, 8.507059e+37
        %v1812 = vand.u32 %v1737, 2147483648
        %v1813 = vor.u32 1.1754944e-38, %v1812
        %v1814 = vsel %vm1811, %v1813, %v1809
        %v1815 = vmul.f32 1.0, %v1814
        %v1816 = vrcp.pop %v1738
        %v1817 = vmul.f32 %v1738, %v1816
        %v1818 = vsub.f32 1.0, %v1817
        %v1819 = vmul.f32 %v1816, %v1818
        %v1820 = vadd.f32 %v1816, %v1819
        %vm1821 = vweird.f32 %v1738
        %vm1822 = vweird.f32 %v1816
        %vm1823 = vmor %vm1821, %vm1822
        %v1824 = vsel %vm1823, %v1816, %v1820
        %v1825 = vand.u32 2147483647, %v1738
        %vm1826 = vcmp.eq.f32.partialorder %v1825, 8.507059e+37
        %v1827 = vand.u32 %v1738, 2147483648
        %v1828 = vor.u32 1.1754944e-38, %v1827
        %v1829 = vsel %vm1826, %v1828, %v1824
        %v1830 = vmul.f32 1.0, %v1829
        %v1831 = vrcp.pop %v1739
        %v1832 = vmul.f32 %v1739, %v1831
        %v1833 = vsub.f32 1.0, %v1832
        %v1834 = vmul.f32 %v1831, %v1833
        %v1835 = vadd.f32 %v1831, %v1834
        %vm1836 = vweird.f32 %v1739
        %vm1837 = vweird.f32 %v1831
        %vm1838 = vmor %vm1836, %vm1837
        %v1839 = vsel %vm1838, %v1831, %v1835
        %v1840 = vand.u32 2147483647, %v1739
        %vm1841 = vcmp.eq.f32.partialorder %v1840, 8.507059e+37
        %v1842 = vand.u32 %v1739, 2147483648
        %v1843 = vor.u32 1.1754944e-38, %v1842
        %v1844 = vsel %vm1841, %v1843, %v1839
        %v1845 = vmul.f32 1.0, %v1844
        %v1846 = vrcp.pop %v1740
        %v1847 = vmul.f32 %v1740, %v1846
        %v1848 = vsub.f32 1.0, %v1847
        %v1849 = vmul.f32 %v1846, %v1848
        %v1850 = vadd.f32 %v1846, %v1849
        %vm1851 = vweird.f32 %v1740
        %vm1852 = vweird.f32 %v1846
        %vm1853 = vmor %vm1851, %vm1852
        %v1854 = vsel %vm1853, %v1846, %v1850
        %v1855 = vand.u32 2147483647, %v1740
        %vm1856 = vcmp.eq.f32.partialorder %v1855, 8.507059e+37
        %v1857 = vand.u32 %v1740, 2147483648
        %v1858 = vor.u32 1.1754944e-38, %v1857
        %v1859 = vsel %vm1856, %v1858, %v1854
        %v1860 = vmul.f32 1.0, %v1859
        %v1861 = vmul.f32 %v1755, 1.0614054
        %v1862 = vmul.f32 %v1770, 1.0614054
        %v1863 = vmul.f32 %v1785, 1.0614054
        %v1864 = vmul.f32 %v1800, 1.0614054
        %v1865 = vmul.f32 %v1815, 1.0614054
        %v1866 = vmul.f32 %v1830, 1.0614054
        %v1867 = vmul.f32 %v1845, 1.0614054
        %v1868 = vmul.f32 %v1860, 1.0614054
        %v1869 = vadd.f32 %v1861, -1.4531521
        %v1870 = vadd.f32 %v1862, -1.4531521
        %v1871 = vadd.f32 %v1863, -1.4531521
        %v1872 = vadd.f32 %v1864, -1.4531521
        %v1873 = vadd.f32 %v1865, -1.4531521
        %v1874 = vadd.f32 %v1866, -1.4531521
        %v1875 = vadd.f32 %v1867, -1.4531521
        %v1876 = vadd.f32 %v1868, -1.4531521
        %v1877 = vmul.f32 %v1869, %v1755
        %v1878 = vmul.f32 %v1870, %v1770
        %v1879 = vmul.f32 %v1871, %v1785
        %v1880 = vmul.f32 %v1872, %v1800
        %v1881 = vmul.f32 %v1873, %v1815
        %v1882 = vmul.f32 %v1874, %v1830
        %v1883 = vmul.f32 %v1875, %v1845
        %v1884 = vmul.f32 %v1876, %v1860
        %v1885 = vadd.f32 %v1877, 1.4214138
        %v1886 = vadd.f32 %v1878, 1.4214138
        %v1887 = vadd.f32 %v1879, 1.4214138
        %v1888 = vadd.f32 %v1880, 1.4214138
        %v1889 = vadd.f32 %v1881, 1.4214138
        %v1890 = vadd.f32 %v1882, 1.4214138
        %v1891 = vadd.f32 %v1883, 1.4214138
        %v1892 = vadd.f32 %v1884, 1.4214138
        %v1893 = vmul.f32 %v1885, %v1755
        %v1894 = vmul.f32 %v1886, %v1770
        %v1895 = vmul.f32 %v1887, %v1785
        %v1896 = vmul.f32 %v1888, %v1800
        %v1897 = vmul.f32 %v1889, %v1815
        %v1898 = vmul.f32 %v1890, %v1830
        %v1899 = vmul.f32 %v1891, %v1845
        %v1900 = vmul.f32 %v1892, %v1860
        %v1901 = vadd.f32 %v1893, -0.28449672
        %v1902 = vadd.f32 %v1894, -0.28449672
        %v1903 = vadd.f32 %v1895, -0.28449672
        %v1904 = vadd.f32 %v1896, -0.28449672
        %v1905 = vadd.f32 %v1897, -0.28449672
        %v1906 = vadd.f32 %v1898, -0.28449672
        %v1907 = vadd.f32 %v1899, -0.28449672
        %v1908 = vadd.f32 %v1900, -0.28449672
        %v1909 = vmul.f32 %v1901, %v1755
        %v1910 = vmul.f32 %v1902, %v1770
        %v1911 = vmul.f32 %v1903, %v1785
        %v1912 = vmul.f32 %v1904, %v1800
        %v1913 = vmul.f32 %v1905, %v1815
        %v1914 = vmul.f32 %v1906, %v1830
        %v1915 = vmul.f32 %v1907, %v1845
        %v1916 = vmul.f32 %v1908, %v1860
        %v1917 = vadd.f32 %v1909, 0.2548296
        %v1918 = vadd.f32 %v1910, 0.2548296
        %v1919 = vadd.f32 %v1911, 0.2548296
        %v1920 = vadd.f32 %v1912, 0.2548296
        %v1921 = vadd.f32 %v1913, 0.2548296
        %v1922 = vadd.f32 %v1914, 0.2548296
        %v1923 = vadd.f32 %v1915, 0.2548296
        %v1924 = vadd.f32 %v1916, 0.2548296
        %v1925 = vmul.f32 %v1917, %v1755
        %v1926 = vmul.f32 %v1918, %v1770
        %v1927 = vmul.f32 %v1919, %v1785
        %v1928 = vmul.f32 %v1920, %v1800
        %v1929 = vmul.f32 %v1921, %v1815
        %v1930 = vmul.f32 %v1922, %v1830
        %v1931 = vmul.f32 %v1923, %v1845
        %v1932 = vmul.f32 %v1924, %v1860
        %v1933 = vsub.f32 0.0, %v1717
        %v1934 = vsub.f32 0.0, %v1718
        %v1935 = vsub.f32 0.0, %v1719
        %v1936 = vsub.f32 0.0, %v1720
        %v1937 = vsub.f32 0.0, %v1721
        %v1938 = vsub.f32 0.0, %v1722
        %v1939 = vsub.f32 0.0, %v1723
        %v1940 = vsub.f32 0.0, %v1724
        %v1941 = vmul.f32 %v1933, %v1717
        %v1942 = vmul.f32 %v1934, %v1718
        %v1943 = vmul.f32 %v1935, %v1719
        %v1944 = vmul.f32 %v1936, %v1720
        %v1945 = vmul.f32 %v1937, %v1721
        %v1946 = vmul.f32 %v1938, %v1722
        %v1947 = vmul.f32 %v1939, %v1723
        %v1948 = vmul.f32 %v1940, %v1724
        %v1949 = vmul.f32 %v1941, 1.442695
        %v1950 = vpow.pop %v1949
        %v1951 = vmul.f32 %v1942, 1.442695
        %v1952 = vpow.pop %v1951
        %v1953 = vmul.f32 %v1943, 1.442695
        %v1954 = vpow.pop %v1953
        %v1955 = vmul.f32 %v1944, 1.442695
        %v1956 = vpow.pop %v1955
        %v1957 = vmul.f32 %v1945, 1.442695
        %v1958 = vpow.pop %v1957
        %v1959 = vmul.f32 %v1946, 1.442695
        %v1960 = vpow.pop %v1959
        %v1961 = vmul.f32 %v1947, 1.442695
        %v1962 = vpow.pop %v1961
        %v1963 = vmul.f32 %v1948, 1.442695
        %v1964 = vpow.pop %v1963
        %v1965 = vmul.f32 %v1925, %v1950
        %v1966 = vmul.f32 %v1926, %v1952
        %v1967 = vmul.f32 %v1927, %v1954
        %v1968 = vmul.f32 %v1928, %v1956
        %v1969 = vmul.f32 %v1929, %v1958
        %v1970 = vmul.f32 %v1930, %v1960
        %v1971 = vmul.f32 %v1931, %v1962
        %v1972 = vmul.f32 %v1932, %v1964
        %v1973 = vsub.f32 1.0, %v1965
        %v1974 = vsub.f32 1.0, %v1966
        %v1975 = vsub.f32 1.0, %v1967
        %v1976 = vsub.f32 1.0, %v1968
        %v1977 = vsub.f32 1.0, %v1969
        %v1978 = vsub.f32 1.0, %v1970
        %v1979 = vsub.f32 1.0, %v1971
        %v1980 = vsub.f32 1.0, %v1972
        %v1981 = vmul.f32 %v1709, %v1973
        %v1982 = vmul.f32 %v1710, %v1974
        %v1983 = vmul.f32 %v1711, %v1975
        %v1984 = vmul.f32 %v1712, %v1976
        %v1985 = vmul.f32 %v1713, %v1977
        %v1986 = vmul.f32 %v1714, %v1978
        %v1987 = vmul.f32 %v1715, %v1979
        %v1988 = vmul.f32 %v1716, %v1980
        %v1989 = vadd.f32 %v1981, 1.0
        %v1990 = vadd.f32 %v1982, 1.0
        %v1991 = vadd.f32 %v1983, 1.0
        %v1992 = vadd.f32 %v1984, 1.0
        %v1993 = vadd.f32 %v1985, 1.0
        %v1994 = vadd.f32 %v1986, 1.0
        %v1995 = vadd.f32 %v1987, 1.0
        %v1996 = vadd.f32 %v1988, 1.0
        %v1997 = vmul.f32 %v1685, %v1989
        %v1998 = vmul.f32 %v1686, %v1990
        %v1999 = vmul.f32 %v1687, %v1991
        %v2000 = vmul.f32 %v1688, %v1992
        %v2001 = vmul.f32 %v1689, %v1993
        %v2002 = vmul.f32 %v1690, %v1994
        %v2003 = vmul.f32 %v1691, %v1995
        %v2004 = vmul.f32 %v1692, %v1996
        %v2005 = vpack.c.bf16 %v1999, %v1997
        %v2006 = vpack.c.bf16 %v2000, %v1998
        %v2007 = vpack.c.bf16 %v2003, %v2001
        %v2008 = vpack.c.bf16 %v2004, %v2002
        %v2009 = vld [vmem:[%s577] sm:$0xf]
        %v2010 = vld [vmem:[%s577 + $0x4] sm:$0xf]
        %v2011 = vld [vmem:[%s577 + $0x8] sm:$0xf]
        %v2012 = vld [vmem:[%s577 + $0xc] sm:$0xf]
        %v2013 = vld [vmem:[%s577 + $0x10] sm:$0xf]
        %v2014 = vld [vmem:[%s577 + $0x14] sm:$0xf]
        %v2015 = vld [vmem:[%s577 + $0x18] sm:$0xf]
        %v2016 = vld [vmem:[%s577 + $0x1c] sm:$0xf]
        %v2017 = vld [vmem:[%s577 + $0x20] sm:$0xf]
        %v2018 = vld [vmem:[%s577 + $0x24] sm:$0xf]
        %v2019 = vld [vmem:[%s577 + $0x28] sm:$0xf]
        %v2020 = vld [vmem:[%s577 + $0x2c] sm:$0xf]
        %v2021 = vld [vmem:[%s577 + $0x30] sm:$0xf]
        %v2022 = vld [vmem:[%s577 + $0x34] sm:$0xf]
        %v2023 = vld [vmem:[%s577 + $0x38] sm:$0xf]
        %v2024 = vld [vmem:[%s577 + $0x3c] sm:$0xf]
        %v2025 = vld [vmem:[%s577 + $0x40] sm:$0xf]
        %v2026 = vld [vmem:[%s577 + $0x44] sm:$0xf]
        %v2027 = vld [vmem:[%s577 + $0x48] sm:$0xf]
        %v2028 = vld [vmem:[%s577 + $0x4c] sm:$0xf]
        %v2029 = vld [vmem:[%s577 + $0x50] sm:$0xf]
        %v2030 = vld [vmem:[%s577 + $0x54] sm:$0xf]
        %v2031 = vld [vmem:[%s577 + $0x58] sm:$0xf]
        %v2032 = vld [vmem:[%s577 + $0x5c] sm:$0xf]
        %v2033 = vld [vmem:[%s577 + $0x60] sm:$0xf]
        %v2034 = vld [vmem:[%s577 + $0x64] sm:$0xf]
        %v2035 = vld [vmem:[%s577 + $0x68] sm:$0xf]
        %v2036 = vld [vmem:[%s577 + $0x6c] sm:$0xf]
        %v2037 = vld [vmem:[%s577 + $0x70] sm:$0xf]
        %v2038 = vld [vmem:[%s577 + $0x74] sm:$0xf]
        %v2039 = vld [vmem:[%s577 + $0x78] sm:$0xf]
        %v2040 = vld [vmem:[%s577 + $0x7c] sm:$0xf]
        %v2073 = vunpack.c.l.b16 %v2009
        %v2074 = vunpack.c.l.b16 %v2010
        %v2075 = vunpack.c.l.b16 %v2011
        %v2076 = vunpack.c.l.b16 %v2012
        %v2077 = vunpack.c.l.b16 %v2013
        %v2078 = vunpack.c.l.b16 %v2014
        %v2079 = vunpack.c.l.b16 %v2015
        %v2080 = vunpack.c.l.b16 %v2016
        %v2081 = vunpack.c.l.b16 %v2017
        %v2082 = vunpack.c.l.b16 %v2018
        %v2083 = vunpack.c.l.b16 %v2019
        %v2084 = vunpack.c.l.b16 %v2020
        %v2085 = vunpack.c.l.b16 %v2021
        %v2086 = vunpack.c.l.b16 %v2022
        %v2087 = vunpack.c.l.b16 %v2023
        %v2088 = vunpack.c.l.b16 %v2024
        %v2089 = vunpack.c.l.b16 %v2025
        %v2090 = vunpack.c.l.b16 %v2026
        %v2091 = vunpack.c.l.b16 %v2027
        %v2092 = vunpack.c.l.b16 %v2028
        %v2093 = vunpack.c.l.b16 %v2029
        %v2094 = vunpack.c.l.b16 %v2030
        %v2095 = vunpack.c.l.b16 %v2031
        %v2096 = vunpack.c.l.b16 %v2032
        %v2097 = vunpack.c.l.b16 %v2033
        %v2098 = vunpack.c.l.b16 %v2034
        %v2099 = vunpack.c.l.b16 %v2035
        %v2100 = vunpack.c.l.b16 %v2036
        %v2101 = vunpack.c.l.b16 %v2037
        %v2102 = vunpack.c.l.b16 %v2038
        %v2103 = vunpack.c.l.b16 %v2039
        %v2104 = vunpack.c.l.b16 %v2040
        %v2105 = vpack.c.b16 %v2074, %v2073
        %v2106 = vpack.c.b16 %v2076, %v2075
        %v2107 = vpack.c.b16 %v2078, %v2077
        %v2108 = vpack.c.b16 %v2080, %v2079
        %v2109 = vpack.c.b16 %v2082, %v2081
        %v2110 = vpack.c.b16 %v2084, %v2083
        %v2111 = vpack.c.b16 %v2086, %v2085
        %v2112 = vpack.c.b16 %v2088, %v2087
        %v2113 = vpack.c.b16 %v2090, %v2089
        %v2114 = vpack.c.b16 %v2092, %v2091
        %v2115 = vpack.c.b16 %v2094, %v2093
        %v2116 = vpack.c.b16 %v2096, %v2095
        %v2117 = vpack.c.b16 %v2098, %v2097
        %v2118 = vpack.c.b16 %v2100, %v2099
        %v2119 = vpack.c.b16 %v2102, %v2101
        %v2120 = vpack.c.b16 %v2104, %v2103
        %2137 = vmatpush.bf16.msra.mxu0 %v2112
        %2138 = vmatpush.bf16.msra.mxu0 %v2111
        %2139 = vmatpush.bf16.msra.mxu0 %v2110
        %2140 = vmatpush.bf16.msra.mxu0 %v2109
        %2141 = vmatpush.bf16.msra.mxu0 %v2108
        %2142 = vmatpush.bf16.msra.mxu0 %v2107
        %2143 = vmatpush.bf16.msra.mxu0 %v2106
        %2144 = vmatpush.bf16.msra.mxu0 %v2105
        %2145 = vmatmul.bf16.gmra.mxu0 %v2005
        %v2146 = vpop.f32.mrf.mxu0
        %v2147 = vadd.f32 0.0, %v2146
        %v2148 = vpop.f32.mrf.mxu0
        %v2149 = vadd.f32 0.0, %v2148
        %2150 = vmatmul.bf16.gmra.mxu0 %v2007
        %v2151 = vpop.f32.mrf.mxu0
        %v2152 = vadd.f32 0.0, %v2151
        %v2153 = vpop.f32.mrf.mxu0
        %v2154 = vadd.f32 0.0, %v2153
        %2155 = vdwg.mxu0
        %2156 = vmatpush.bf16.msra.mxu0 %v2120
        %2157 = vmatpush.bf16.msra.mxu0 %v2119
        %2158 = vmatpush.bf16.msra.mxu0 %v2118
        %2159 = vmatpush.bf16.msra.mxu0 %v2117
        %2160 = vmatpush.bf16.msra.mxu0 %v2116
        %2161 = vmatpush.bf16.msra.mxu0 %v2115
        %2162 = vmatpush.bf16.msra.mxu0 %v2114
        %2163 = vmatpush.bf16.msra.mxu0 %v2113
        %2164 = vmatmul.bf16.gmra.mxu0 %v2006
        %v2165 = vpop.f32.mrf.mxu0
        %v2166 = vadd.f32 %v2147, %v2165
        %v2167 = vpop.f32.mrf.mxu0
        %v2168 = vadd.f32 %v2149, %v2167
        %2169 = vmatmul.bf16.gmra.mxu0 %v2008
        %v2170 = vpop.f32.mrf.mxu0
        %v2171 = vadd.f32 %v2152, %v2170
        %v2172 = vpop.f32.mrf.mxu0
        %v2173 = vadd.f32 %v2154, %v2172
        %2174 = vdwg.mxu0
        %v2175 = vadd.f32 %v1443, %v2166
        %v2176 = vadd.f32 %v1444, %v2168
        %v2177 = vadd.f32 %v1445, %v2171
        %v2178 = vadd.f32 %v1446, %v2173
        %v2179 = vld [vmem:[%s688] sm:$0x1]
        %v2181 = vperm.slane %v2179, 0
        %v2183 = vadd.f32 %v2175, %v2181
        %v2184 = vadd.f32 %v2176, %v2181
        %v2185 = vadd.f32 %v2177, %v2181
        %v2186 = vadd.f32 %v2178, %v2181
        %2187 = vst [vmem:[%s693] sm:$0xff] %v2183
        %2188 = vst [vmem:[%s693 + $0x8] sm:$0xff] %v2184
        %2189 = vst [vmem:[%s693 + $0x10] sm:$0xff] %v2185
        %2190 = vst [vmem:[%s693 + $0x18] sm:$0xff] %v2186
        %s2191 = smul.u32 4, %s36
        %p2192 = scmp.lt.s32.totalorder %s2191, 3
        %s2193 = scalar_select %p2192, %s2191, 3
        %s2194 = smul.addr %s2193, 8
        %s2195 = scalar_lea.vmem %s12, %s2194
        // Predicated region
        $region89: #{tst_clip_forward.4} parent=67 // pred_check
          %p2196 = pneg %p374
        $region90: #{tst_clip_forward.4} parent=67 // pred_check_branch
          %2198 = sbr.rel (%p2196) target = $region92
        $region91: #{tst_clip_forward.4} parent=67 // pred_region
          %s2199 = smul.u32 4, %s36
        $region92: #{tst_clip_forward.4} parent=67 // pred_fallthru
          _
        // Predicated region
        $region93: #{tst_clip_forward.4} parent=67 // pred_check
          %p2200 = pneg %p374
        $region94: #{tst_clip_forward.4} parent=67 // pred_check_branch
          %2202 = sbr.rel (%p2200) target = $region96
        $region95: #{tst_clip_forward.4} parent=67 // pred_region
          %s2203 = smul.u32 4, %s36
          %p2204 = scmp.lt.s32.totalorder %s2203, 3
          %s2205 = scalar_select %p2204, %s2203, 3
          %s2206 = smul.addr %s2205, 8
          %s2207 = scalar_lea.vmem %s12, %s2206
        $region96: #{tst_clip_forward.4} parent=67 // pred_fallthru
          _
      $region68: #{tst_clip_forward.4} parent=5 // pred_fallthru
        _
      %p2208 = scmp.le.s32.totalorder 2, %s27
      // Predicated region
      $region97: #{tst_clip_forward.4} parent=5 // pred_check
        %p2209 = pneg %p2208
      $region98: #{tst_clip_forward.4} parent=5 // pred_check_branch
        %2211 = sbr.rel (%p2209) target = $region100
      $region99: #{tst_clip_forward.4} parent=5 // pred_region
        %s2212 = ssub.s32 %s27, 2
      $region100: #{tst_clip_forward.4} parent=5 // pred_fallthru
        _
    $region6: #{tst_clip_forward.4} parent=1 // loop_footer
      %s31 = sadd.s32 1, %s27
    $region7: #{tst_clip_forward.4} parent=1 // loop_footer_branch
      %26 = sbr.rel target = $region3
    $region8: #{tst_clip_forward.4} parent=1 // loop_exit
      _
    %2213 = vsyncpa [#allocation4], 1
    %s2214 = scalar_lea.sflag [#allocation4], 1
    %2215 = vsyncpa %s2214, 1
    %2216 = vsyncpa [#allocation6], 1
    %s2217 = scalar_lea.sflag [#allocation6], 1
    %2218 = vsyncpa %s2217, 1
    %2219 = vsyncpa [#allocation9], 1
    %s2220 = scalar_lea.sflag [#allocation9], 1
    %2221 = vsyncpa %s2220, 1

</llo_original>
